<compile_context>
chip_gen: v5e
topology: v5e:2x2
jax: 0.10.0
libtpu: 0.0.40
codegen_flags: <defaults>
</compile_context>

<pallas_src>
import jax
import jax.numpy as jnp
from jax import lax
from jax.experimental import pallas as pl
from jax.experimental.pallas import tpu as pltpu


def _round_up(x, m):
    return ((x + m - 1) // m) * m


# ----------------------------------------------------------------------------
# Kernel 1: fused  Conv3d(C->C, k=(2,3,3), stride=2) -> ReLU
#                  -> AdaptiveMaxPool3d((1,1,1)) -> Flatten -> Linear -> Sigmoid
# operating on an im2col patch tensor [P, E, K], K = 2*KH*KW*C.
# ----------------------------------------------------------------------------
def edge_feature_map_pallas(patches, wconv_col, bconv, wlin_t, blin, *, tile_e=128):
    P, E, K = patches.shape
    C = wconv_col.shape[1]

    TE = min(_round_up(tile_e, 8), _round_up(E, 8))
    Ep = _round_up(E, TE)
    if Ep != E:
        patches = jnp.pad(patches, ((0, 0), (0, Ep - E), (0, 0)))

    def kernel(p_ref, wc_ref, bc_ref, wl_ref, bl_ref, e_ref):
        # Single im2col matmul per tile: (P*TE, K) @ (K, C)  (K = 144 for C=8).
        lhs = p_ref[...].reshape(P * TE, K)
        conv = jnp.dot(lhs, wc_ref[...], preferred_element_type=jnp.float32)
        # Global max-pool over the P conv output positions; bias add and ReLU
        # commute with the max so they are hoisted out of the reduction.
        pooled = jnp.max(conv.reshape(P, TE, C), axis=0)
        pooled = jnp.maximum(pooled + bc_ref[...], 0.0)
        score = jnp.dot(pooled, wl_ref[...], preferred_element_type=jnp.float32) + bl_ref[...]
        e_ref[...] = jax.nn.sigmoid(score)

    e = pl.pallas_call(
        kernel,
        out_shape=jax.ShapeDtypeStruct((Ep, C), jnp.float32),
        grid_spec=pltpu.PrefetchScalarGridSpec(
            num_scalar_prefetch=0,
            grid=(Ep // TE,),
            in_specs=[
                pl.BlockSpec((P, TE, K), lambda i: (0, i, 0)),
                pl.BlockSpec((K, C), lambda i: (0, 0)),
                pl.BlockSpec((1, C), lambda i: (0, 0)),
                pl.BlockSpec((C, C), lambda i: (0, 0)),
                pl.BlockSpec((1, C), lambda i: (0, 0)),
            ],
            out_specs=pl.BlockSpec((TE, C), lambda i: (i, 0)),
        ),
        compiler_params=pltpu.CompilerParams(dimension_semantics=("parallel",)),
    )(patches, wconv_col, bconv, wlin_t, blin)
    return e[:E]


# ----------------------------------------------------------------------------
# Kernel 2: SAGE head:  fc_self(x) + fc_neigh(mean-aggregated messages) + bias
#           -> leaky_relu -> F.normalize(dim=1)
# Inputs are lane-dense [N, C, H*W] slabs; weights are block-diagonal
# [H*W, H*F] so the Linear over the last (tiny) dim is one wide matmul.
# ----------------------------------------------------------------------------
def sage_head_pallas(xs, ag, w_self_bd, w_neigh_bd, bias_tiled, *, tile_n=32):
    N, C, HW = xs.shape
    HF = w_self_bd.shape[1]

    TN = min(_round_up(tile_n, 8), _round_up(N, 8))
    Np = _round_up(N, TN)
    if Np != N:
        pad = ((0, Np - N), (0, 0), (0, 0))
        xs = jnp.pad(xs, pad)
        ag = jnp.pad(ag, pad)

    def kernel(x_ref, g_ref, ws_ref, wn_ref, b_ref, o_ref):
        xr = x_ref[...].reshape(TN * C, HW)
        gr = g_ref[...].reshape(TN * C, HW)
        a = (jnp.dot(xr, ws_ref[...], preferred_element_type=jnp.float32)
             + jnp.dot(gr, wn_ref[...], preferred_element_type=jnp.float32)
             + b_ref[...])
        a = jnp.where(a >= 0.0, a, 0.01 * a)          # F.leaky_relu (slope 0.01)
        a = a.reshape(TN, C, HF)
        ss = jnp.sum(a * a, axis=1, keepdims=True)    # reduce over C (dim=1)
        # F.normalize(dim=1): A / max(||A||, 1e-12)  ==  A * rsqrt(max(ss, 1e-24))
        o_ref[...] = a * lax.rsqrt(jnp.maximum(ss, 1e-24))

    out = pl.pallas_call(
        kernel,
        out_shape=jax.ShapeDtypeStruct((Np, C, HF), jnp.float32),
        grid_spec=pltpu.PrefetchScalarGridSpec(
            num_scalar_prefetch=0,
            grid=(Np // TN,),
            in_specs=[
                pl.BlockSpec((TN, C, HW), lambda i: (i, 0, 0)),
                pl.BlockSpec((TN, C, HW), lambda i: (i, 0, 0)),
                pl.BlockSpec((HW, HF), lambda i: (0, 0)),
                pl.BlockSpec((HW, HF), lambda i: (0, 0)),
                pl.BlockSpec((1, HF), lambda i: (0, 0)),
            ],
            out_specs=pl.BlockSpec((TN, C, HF), lambda i: (i, 0, 0)),
        ),
        compiler_params=pltpu.CompilerParams(dimension_semantics=("parallel",)),
    )(xs, ag, w_self_bd, w_neigh_bd, bias_tiled)
    return out[:N]


# ----------------------------------------------------------------------------
# Wrapper-side layout plumbing (gather / im2col / scatter-mean stay in XLA)
# ----------------------------------------------------------------------------
def im2col_edge_patches(x, src, dst):
    """Build [P, E, K] im2col patches (K = 2*KH*KW*C) for the Conv3d((2,3,3),
    stride=2) over stacked (src, dst) node feature maps, plus the NHWC src
    gather reused for message passing."""
    N, C, H, W = x.shape
    KH, KW, S = 3, 3, 2
    HO = (H - KH) // S + 1
    WO = (W - KW) // S + 1
    xl = jnp.transpose(x, (0, 2, 3, 1))                         # [N, H, W, C]
    # TODO(synk): per-edge node gather is data dependent; it stays in plain JAX.
    hu = xl[src]                                                # [E, H, W, C]
    hv = xl[dst]

    def patches_of(h):
        cols = []
        for kh in range(KH):
            for kw in range(KW):
                cols.append(h[:, kh:kh + S * (HO - 1) + 1:S,
                                kw:kw + S * (WO - 1) + 1:S, :])  # [E, HO, WO, C]
        p = jnp.stack(cols, axis=3)                             # [E, HO, WO, KH*KW, C]
        return p.reshape(h.shape[0], HO * WO, KH * KW * C)

    patches = jnp.concatenate([patches_of(hu), patches_of(hv)], axis=-1)  # [E, P, K]
    return jnp.transpose(patches, (1, 0, 2)), hu                # [P, E, K], hu NHWC


def _block_diag(wt, H):
    """wt: [W, F].  Returns [H*W, H*F] with H copies of wt on the diagonal, so
    that (x reshaped to [.., H*W]) @ result == per-h Linear over the last dim."""
    W, F = wt.shape
    eye = jnp.eye(H, dtype=wt.dtype)
    return jnp.einsum("hk,wf->hwkf", eye, wt).reshape(H * W, H * F)


def my_gnn_cnn_forward(params, x, src, dst, num_nodes, *, tile_e=128, tile_n=32):
    N, C, H, W = x.shape
    if W != C:
        raise ValueError("myGNNCNN requires W == in_feats == C (Linear over last NCHW dim)")

    # --- apply_edges_feature_map: e[edge] = conv_feature_map(stack(x[src], x[dst])) ---
    patches, hu_nhwc = im2col_edge_patches(x, src, dst)
    e = edge_feature_map_pallas(patches, params["wconv_col"], params["bconv"],
                                params["wlin_t"], params["blin"], tile_e=tile_e)

    # --- SAGEConv('mean') message passing with per-channel edge weights ---
    # TODO(synk): the data-dependent scatter-mean (DGL update_all) stays in plain
    # JAX (segment_sum); a Pallas version would need scalar-prefetch index maps.
    msg = hu_nhwc * e[:, None, None, :]                          # u_mul_e (NHWC)
    ones = jnp.ones((src.shape[0],), jnp.float32)
    deg = jax.ops.segment_sum(ones, dst, num_segments=num_nodes)
    agg = jax.ops.segment_sum(msg, dst, num_segments=num_nodes)
    agg = agg / jnp.maximum(deg, 1.0)[:, None, None, None]
    agg = jnp.transpose(agg, (0, 3, 1, 2))                       # back to NCHW

    # lane-dense slabs + block-diagonal weights for the SAGE head
    xs = x.reshape(N, C, H * W)
    ag = agg.reshape(N, C, H * W)
    w_self_bd = _block_diag(params["wself_t"], H)                # [H*W, H*F]
    w_neigh_bd = _block_diag(params["wneigh_t"], H)
    bias_tiled = jnp.tile(params["bsage_v"], H).reshape(1, H * C)

    A = sage_head_pallas(xs, ag, w_self_bd, w_neigh_bd, bias_tiled, tile_n=tile_n)
    return A.reshape(N, C, H, C), e


# ----------------------------------------------------------------------------
# Deterministic parameter init (shapes per the module's __init__)
# ----------------------------------------------------------------------------
def init_params(key, in_feats):
    C = in_feats
    ks = jax.random.split(key, 7)
    wc = 0.1 * jax.random.normal(ks[0], (C, C, 2, 3, 3), jnp.float32)   # Conv3d [O,I,D,Kh,Kw]
    bc = 0.05 * jax.random.normal(ks[1], (C,), jnp.float32)
    wl = 0.1 * jax.random.normal(ks[2], (C, C), jnp.float32)            # Linear [out,in]
    bl = 0.05 * jax.random.normal(ks[3], (C,), jnp.float32)
    wself = 0.1 * jax.random.normal(ks[4], (C, C), jnp.float32)         # SAGE fc_self
    wneigh = 0.1 * jax.random.normal(ks[5], (C, C), jnp.float32)        # SAGE fc_neigh
    bsage = 0.05 * jax.random.normal(ks[6], (C,), jnp.float32)          # SAGE bias

    # im2col column order must be (d, kh, kw, c_in) to match the patch layout
    wconv_col = jnp.transpose(wc, (2, 3, 4, 1, 0)).reshape(2 * 3 * 3 * C, C)
    return dict(
        wconv_col=wconv_col, bconv=bc.reshape(1, C),
        wlin_t=wl.T, blin=bl.reshape(1, C),
        wself_t=wself.T, wneigh_t=wneigh.T, bsage_v=bsage,
        # raw tensors kept for the pure-JAX reference check
        wc=wc, bc=bc, wl=wl, bl=bl, wself=wself, wneigh=wneigh,
    )


# ----------------------------------------------------------------------------
# Independent pure-JAX reference (for correctness check)
# ----------------------------------------------------------------------------
def reference_forward(params, x, src, dst, num_nodes):
    hu = x[src]
    hv = x[dst]
    huv = jnp.stack([hu, hv], axis=2)            # [E, C, 2, H, W]
    conv = lax.conv_general_dilated(huv, params["wc"], window_strides=(2, 2, 2),
                                    padding="VALID",
                                    dimension_numbers=("NCDHW", "OIDHW", "NCDHW"))
    conv = conv + params["bc"][None, :, None, None, None]
    conv = jnp.maximum(conv, 0.0)
    pooled = jnp.max(conv, axis=(2, 3, 4))
    e = jax.nn.sigmoid(pooled @ params["wl"].T + params["bl"])

    msg = hu * e[:, :, None, None]
    ones = jnp.ones((src.shape[0],), jnp.float32)
    deg = jax.ops.segment_sum(ones, dst, num_segments=num_nodes)
    agg = jax.ops.segment_sum(msg, dst, num_segments=num_nodes)
    agg = agg / jnp.maximum(deg, 1.0)[:, None, None, None]

    hself = jnp.einsum("nchw,jw->nchj", x, params["wself"])
    hneigh = jnp.einsum("nchw,jw->nchj", agg, params["wneigh"])
    A = hself + hneigh + params["bsage_v"]
    A = jnp.where(A >= 0, A, 0.01 * A)
    nrm = jnp.sqrt(jnp.sum(A * A, axis=1, keepdims=True))
    A = A / jnp.maximum(nrm, 1e-12)
    return A, e


if __name__ == "__main__":
    key = jax.random.PRNGKey(0)
    in_feats = 8                       # C == W == in_feats (module requirement)
    N, E, H = 64, 256, 8               # nodes, edges, spatial height (grid >= 2 per kernel)
    k_x, k_s, k_d, k_p = jax.random.split(key, 4)

    x = jax.random.normal(k_x, (N, in_feats, H, in_feats), jnp.float32)   # NCHW node features
    src = jax.random.randint(k_s, (E,), 0, N, dtype=jnp.int32)
    dst = jax.random.randint(k_d, (E,), 0, N, dtype=jnp.int32)
    params = init_params(k_p, in_feats)

    A, e = my_gnn_cnn_forward(params, x, src, dst, N)
    A = jax.block_until_ready(A)
    e = jax.block_until_ready(e)

    A_ref, e_ref = reference_forward(params, x, src, dst, N)
    assert bool(jnp.allclose(e, e_ref, atol=1e-4, rtol=1e-3)), "edge score mismatch"
    assert bool(jnp.allclose(A, A_ref, atol=1e-4, rtol=1e-3)), "node output mismatch"

    print("KERNEL_OK")
</pallas_src>

<mosaic_0001>
module attributes {stable_mosaic.version = 11 : i64} {
  func.func @kernel(%arg0: i32, %arg1: memref<9x128x144xf32, #tpu.memory_space<vmem>>, %arg2: memref<144x8xf32, #tpu.memory_space<vmem>>, %arg3: memref<1x8xf32, #tpu.memory_space<vmem>>, %arg4: memref<8x8xf32, #tpu.memory_space<vmem>>, %arg5: memref<1x8xf32, #tpu.memory_space<vmem>>, %arg6: memref<128x8xf32, #tpu.memory_space<vmem>>) attributes {dimension_semantics = [#tpu.dimension_semantics<parallel>], iteration_bounds = array<i64: 2>, scalar_prefetch = 0 : i64, scratch_operands = 0 : i64, tpu.core_type = #tpu.core_type<tc>, window_params = [{transform_indices = @transform_0, window_bounds = array<i64: 9, 128, 144>}, {pipeline_mode = #tpu.pipeline_mode<synchronous>, transform_indices = @transform_1, window_bounds = array<i64: 144, 8>}, {pipeline_mode = #tpu.pipeline_mode<synchronous>, transform_indices = @transform_2, window_bounds = array<i64: 1, 8>}, {pipeline_mode = #tpu.pipeline_mode<synchronous>, transform_indices = @transform_3, window_bounds = array<i64: 8, 8>}, {pipeline_mode = #tpu.pipeline_mode<synchronous>, transform_indices = @transform_4, window_bounds = array<i64: 1, 8>}, {transform_indices = @transform_5, window_bounds = array<i64: 128, 8>}]} {
    %c0 = arith.constant 0 : index
    %c0_0 = arith.constant 0 : index
    %c0_1 = arith.constant 0 : index
    %0 = vector.load %arg1[%c0, %c0_0, %c0_1] : memref<9x128x144xf32, #tpu.memory_space<vmem>>, vector<9x128x144xf32>
    %1 = vector.shape_cast %0 : vector<9x128x144xf32> to vector<1152x144xf32>
    %c0_2 = arith.constant 0 : index
    %c0_3 = arith.constant 0 : index
    %2 = vector.load %arg2[%c0_2, %c0_3] : memref<144x8xf32, #tpu.memory_space<vmem>>, vector<144x8xf32>
    %cst = arith.constant dense<0.000000e+00> : vector<1152x8xf32>
    %3 = tpu.matmul %1, %2, %cst {dimension_numbers = #tpu.dot_dimension_numbers<[1], [0], [0], [1], [0, 0, 1, 1], [], []>} : vector<1152x144xf32>, vector<144x8xf32>, vector<1152x8xf32> -> vector<1152x8xf32>
    %4 = vector.shape_cast %3 : vector<1152x8xf32> to vector<9x128x8xf32>
    %cst_4 = arith.constant dense<0xFF800000> : vector<128x8xf32>
    %5 = vector.multi_reduction <maximumf>, %4, %cst_4 [0] : vector<9x128x8xf32> to vector<128x8xf32>
    %c0_5 = arith.constant 0 : index
    %c0_6 = arith.constant 0 : index
    %6 = vector.load %arg3[%c0_5, %c0_6] : memref<1x8xf32, #tpu.memory_space<vmem>>, vector<1x8xf32>
    %7 = vector.broadcast %6 : vector<1x8xf32> to vector<128x8xf32>
    %8 = arith.addf %5, %7 : vector<128x8xf32>
    %cst_7 = arith.constant 0.000000e+00 : f32
    %9 = vector.broadcast %cst_7 : f32 to vector<128x8xf32>
    %10 = arith.maximumf %8, %9 : vector<128x8xf32>
    %c0_8 = arith.constant 0 : index
    %c0_9 = arith.constant 0 : index
    %11 = vector.load %arg4[%c0_8, %c0_9] : memref<8x8xf32, #tpu.memory_space<vmem>>, vector<8x8xf32>
    %cst_10 = arith.constant dense<0.000000e+00> : vector<128x8xf32>
    %12 = tpu.matmul %10, %11, %cst_10 {dimension_numbers = #tpu.dot_dimension_numbers<[1], [0], [0], [1], [0, 0, 1, 1], [], []>} : vector<128x8xf32>, vector<8x8xf32>, vector<128x8xf32> -> vector<128x8xf32>
    %c0_11 = arith.constant 0 : index
    %c0_12 = arith.constant 0 : index
    %13 = vector.load %arg5[%c0_11, %c0_12] : memref<1x8xf32, #tpu.memory_space<vmem>>, vector<1x8xf32>
    %14 = vector.broadcast %13 : vector<1x8xf32> to vector<128x8xf32>
    %15 = arith.addf %12, %14 : vector<128x8xf32>
    %16 = arith.negf %15 : vector<128x8xf32>
    %17 = math.exp %16 : vector<128x8xf32>
    %cst_13 = arith.constant 1.000000e+00 : f32
    %18 = vector.broadcast %cst_13 : f32 to vector<128x8xf32>
    %19 = arith.addf %18, %17 : vector<128x8xf32>
    %20 = arith.divf %18, %19 : vector<128x8xf32>
    %c0_14 = arith.constant 0 : index
    %c0_15 = arith.constant 0 : index
    %21 = vector.load %arg6[%c0_14, %c0_15] : memref<128x8xf32, #tpu.memory_space<vmem>>, vector<128x8xf32>
    tpu.vector_store %arg6[%c0_14, %c0_15], %20 {strides = array<i32>} : memref<128x8xf32, #tpu.memory_space<vmem>>, vector<128x8xf32>,
    return
  }
  func.func @transform_0(%arg0: i32) -> (i32, i32, i32) {
    %c0_i32 = arith.constant 0 : i32
    %c0_i32_0 = arith.constant 0 : i32
    %c0_i32_1 = arith.constant 0 : i32
    return %c0_i32, %arg0, %c0_i32_0 : i32, i32, i32
  }
  func.func @transform_1(%arg0: i32) -> (i32, i32) {
    %c0_i32 = arith.constant 0 : i32
    %c0_i32_0 = arith.constant 0 : i32
    %c0_i32_1 = arith.constant 0 : i32
    return %c0_i32, %c0_i32_0 : i32, i32
  }
  func.func @transform_2(%arg0: i32) -> (i32, i32) {
    %c0_i32 = arith.constant 0 : i32
    %c0_i32_0 = arith.constant 0 : i32
    %c0_i32_1 = arith.constant 0 : i32
    return %c0_i32, %c0_i32_0 : i32, i32
  }
  func.func @transform_3(%arg0: i32) -> (i32, i32) {
    %c0_i32 = arith.constant 0 : i32
    %c0_i32_0 = arith.constant 0 : i32
    %c0_i32_1 = arith.constant 0 : i32
    return %c0_i32, %c0_i32_0 : i32, i32
  }
  func.func @transform_4(%arg0: i32) -> (i32, i32) {
    %c0_i32 = arith.constant 0 : i32
    %c0_i32_0 = arith.constant 0 : i32
    %c0_i32_1 = arith.constant 0 : i32
    return %c0_i32, %c0_i32_0 : i32, i32
  }
  func.func @transform_5(%arg0: i32) -> (i32, i32) {
    %c0_i32 = arith.constant 0 : i32
    %c0_i32_0 = arith.constant 0 : i32
    return %arg0, %c0_i32 : i32, i32
  }
}

</mosaic_0001>

<llo_original>
// kernel: tpu_custom_call.1
$region0: #{tpu_custom_call.1}
  #allocation0 [shape = 'u32[]', space=smem, size = 0x4, offset = 0x4, fixed_abs, tag = 'smem constant byte address 0x4 - core index']
  #allocation1 [shape = 'u32[72,128]{1,0:T(1,128)}', space=vmem, size = 0x9000, scoped, tag = 'internal scratch']
  %s0 = inlined_call_operand.vmem [shape: f32[9,256,144], index: 0, kind: input, shape index: {}]
  %s1 = inlined_call_operand.vmem [shape: f32[144,8], index: 1, kind: input, shape index: {}]
  %s2 = inlined_call_operand.vmem [shape: f32[1,8], index: 2, kind: input, shape index: {}]
  %s3 = inlined_call_operand.vmem [shape: f32[8,8], index: 3, kind: input, shape index: {}]
  %s4 = inlined_call_operand.vmem [shape: f32[1,8], index: 4, kind: input, shape index: {}]
  %s5 = inlined_call_operand.vmem [shape: f32[256,8], index: 5, kind: output, shape index: {}]
  %s6 = sld [smem:[#allocation0]]
  $region76: #{tpu_custom_call.1} parent=0
    _
  %s8 = ssub.s32 1, %s6
  %s9 = scalar_select 0, %s8, %s6
  $region1: #{tpu_custom_call.1} parent=0
    #allocation2 [shape = 'u8[2359296]{0}', space=vmem, size = 0x240000, scoped, tag = 'input window, operand 0']
    loop: start=0, step=1, limit=4
    $region2: #{tpu_custom_call.1} parent=1 // loop_pre_header
      _
    $region3: #{tpu_custom_call.1} parent=1 // loop_header
      %s11 = sphi 0, %s15
      %p12 = scmp.ge.s32.totalorder %s11, 4
      %s21 = sphi 0, %s23
      %s24 = sphi 0, %s21
      %s25 = sphi 0, %s24
      %s41 = sphi 0, %s25
      %s45 = sphi 0, %s45
      %s47 = sphi 0, %s45
      %s48 = sphi 0, %s47
      %s62 = sphi 0, %s48
      %s66 = sphi 0, %s66
      %s68 = sphi 0, %s66
      %s69 = sphi 0, %s68
      %s83 = sphi 0, %s69
      %s87 = sphi 0, %s87
      %s89 = sphi 0, %s87
      %s90 = sphi 0, %s89
      %s104 = sphi 0, %s90
      %s108 = sphi 0, %s108
      %s110 = sphi 0, %s108
      %s111 = sphi 0, %s110
      %s125 = sphi 0, %s111
      %s131 = sphi 0, %s133
      %s134 = sphi 0, %s131
      %s135 = sphi 0, %s134
      %s151 = sphi 0, %s135
    $region4: #{tpu_custom_call.1} parent=1 // loop_header_branch
      %14 = sbr.rel (%p12) target = $region8
    $region5: #{tpu_custom_call.1} parent=1 // loop_body
      %s16 = ssub.s32 %s11, 1
      %s17 = ssub.s32 %s11, 2
      %s18 = sadd.s32 %s11, 1
      %s19 = ssub.s32 %s11, %s18
      %p20 = scmp.eq.s32.totalorder %s19, 0
      %s22 = sadd.s32 %s21, 1
      %s23 = scalar_select %p20, %s21, %s22
      %p26 = pneg %p20
      %p27 = scmp.eq.s32.totalorder %s11, 1
      %p28 = por %p26, %p27
      %p29 = scmp.ne.s32.totalorder %s21, %s24
      %p30 = scmp.eq.s32.totalorder %s11, 0
      %p31 = por %p29, %p30
      %p32 = scmp.ne.s32.totalorder %s21, %s24
      %p33 = scmp.eq.s32.totalorder %s16, 1
      %p34 = por %p32, %p33
      %p35 = scmp.ne.s32.totalorder %s24, %s25
      %p36 = scmp.eq.s32.totalorder %s16, 0
      %p37 = por %p35, %p36
      %p38 = scmp.ne.s32.totalorder %s24, %s25
      %p39 = scmp.eq.s32.totalorder %s17, 1
      %p40 = por %p38, %p39
      %p42 = scmp.ne.s32.totalorder %s25, %s41
      %p43 = scmp.eq.s32.totalorder %s17, 0
      %p44 = por %p42, %p43
      %s46 = sadd.s32 %s45, 1
      %p49 = scmp.eq.s32.totalorder %s11, 1
      %p50 = scmp.ne.s32.totalorder %s45, %s47
      %p51 = scmp.eq.s32.totalorder %s11, 0
      %p52 = por %p50, %p51
      %p53 = scmp.ne.s32.totalorder %s45, %s47
      %p54 = scmp.eq.s32.totalorder %s16, 1
      %p55 = por %p53, %p54
      %p56 = scmp.ne.s32.totalorder %s47, %s48
      %p57 = scmp.eq.s32.totalorder %s16, 0
      %p58 = por %p56, %p57
      %p59 = scmp.ne.s32.totalorder %s47, %s48
      %p60 = scmp.eq.s32.totalorder %s17, 1
      %p61 = por %p59, %p60
      %p63 = scmp.ne.s32.totalorder %s48, %s62
      %p64 = scmp.eq.s32.totalorder %s17, 0
      %p65 = por %p63, %p64
      %s67 = sadd.s32 %s66, 1
      %p70 = scmp.eq.s32.totalorder %s11, 1
      %p71 = scmp.ne.s32.totalorder %s66, %s68
      %p72 = scmp.eq.s32.totalorder %s11, 0
      %p73 = por %p71, %p72
      %p74 = scmp.ne.s32.totalorder %s66, %s68
      %p75 = scmp.eq.s32.totalorder %s16, 1
      %p76 = por %p74, %p75
      %p77 = scmp.ne.s32.totalorder %s68, %s69
      %p78 = scmp.eq.s32.totalorder %s16, 0
      %p79 = por %p77, %p78
      %p80 = scmp.ne.s32.totalorder %s68, %s69
      %p81 = scmp.eq.s32.totalorder %s17, 1
      %p82 = por %p80, %p81
      %p84 = scmp.ne.s32.totalorder %s69, %s83
      %p85 = scmp.eq.s32.totalorder %s17, 0
      %p86 = por %p84, %p85
      %s88 = sadd.s32 %s87, 1
      %p91 = scmp.eq.s32.totalorder %s11, 1
      %p92 = scmp.ne.s32.totalorder %s87, %s89
      %p93 = scmp.eq.s32.totalorder %s11, 0
      %p94 = por %p92, %p93
      %p95 = scmp.ne.s32.totalorder %s87, %s89
      %p96 = scmp.eq.s32.totalorder %s16, 1
      %p97 = por %p95, %p96
      %p98 = scmp.ne.s32.totalorder %s89, %s90
      %p99 = scmp.eq.s32.totalorder %s16, 0
      %p100 = por %p98, %p99
      %p101 = scmp.ne.s32.totalorder %s89, %s90
      %p102 = scmp.eq.s32.totalorder %s17, 1
      %p103 = por %p101, %p102
      %p105 = scmp.ne.s32.totalorder %s90, %s104
      %p106 = scmp.eq.s32.totalorder %s17, 0
      %p107 = por %p105, %p106
      %s109 = sadd.s32 %s108, 1
      %p112 = scmp.eq.s32.totalorder %s11, 1
      %p113 = scmp.ne.s32.totalorder %s108, %s110
      %p114 = scmp.eq.s32.totalorder %s11, 0
      %p115 = por %p113, %p114
      %p116 = scmp.ne.s32.totalorder %s108, %s110
      %p117 = scmp.eq.s32.totalorder %s16, 1
      %p118 = por %p116, %p117
      %p119 = scmp.ne.s32.totalorder %s110, %s111
      %p120 = scmp.eq.s32.totalorder %s16, 0
      %p121 = por %p119, %p120
      %p122 = scmp.ne.s32.totalorder %s110, %s111
      %p123 = scmp.eq.s32.totalorder %s17, 1
      %p124 = por %p122, %p123
      %p126 = scmp.ne.s32.totalorder %s111, %s125
      %p127 = scmp.eq.s32.totalorder %s17, 0
      %p128 = por %p126, %p127
      %s129 = ssub.s32 %s11, %s18
      %p130 = scmp.eq.s32.totalorder %s129, 0
      %s132 = sadd.s32 %s131, 1
      %s133 = scalar_select %p130, %s131, %s132
      %p136 = pneg %p130
      %p137 = scmp.eq.s32.totalorder %s11, 1
      %p138 = por %p136, %p137
      %p139 = scmp.ne.s32.totalorder %s131, %s134
      %p140 = scmp.eq.s32.totalorder %s11, 0
      %p141 = por %p139, %p140
      %p142 = scmp.ne.s32.totalorder %s131, %s134
      %p143 = scmp.eq.s32.totalorder %s16, 1
      %p144 = por %p142, %p143
      %p145 = scmp.ne.s32.totalorder %s134, %s135
      %p146 = scmp.eq.s32.totalorder %s16, 0
      %p147 = por %p145, %p146
      %p148 = scmp.ne.s32.totalorder %s134, %s135
      %p149 = scmp.eq.s32.totalorder %s17, 1
      %p150 = por %p148, %p149
      %p152 = scmp.ne.s32.totalorder %s135, %s151
      %p153 = scmp.eq.s32.totalorder %s17, 0
      %p154 = por %p152, %p153
      %p155 = scmp.le.s32.totalorder 1, %s11
      %p156 = scmp.lt.s32.totalorder %s11, 3
      %p157 = pnand %p155, %p156
      %p158 = pneg %p157
      // Predicated region
      $region9: #{tpu_custom_call.1} parent=5 // pred_check
        _
      $region10: #{tpu_custom_call.1} parent=5 // pred_check_branch
        %160 = sbr.rel (%p157) target = $region12
      $region11: #{tpu_custom_call.1} parent=5 // pred_region
        %s161 = ssub.s32 %s11, 1
        // Predicated region
        $region13: #{tpu_custom_call.1} parent=11 // pred_check
          %p162 = pneg %p58
        $region14: #{tpu_custom_call.1} parent=11 // pred_check_branch
          %164 = sbr.rel (%p162) target = $region16
        $region15: #{tpu_custom_call.1} parent=11 // pred_region
          _
        $region16: #{tpu_custom_call.1} parent=11 // pred_fallthru
          _
        // Predicated region
        $region17: #{tpu_custom_call.1} parent=11 // pred_check
          %p165 = pneg %p79
        $region18: #{tpu_custom_call.1} parent=11 // pred_check_branch
          %167 = sbr.rel (%p165) target = $region20
        $region19: #{tpu_custom_call.1} parent=11 // pred_region
          _
        $region20: #{tpu_custom_call.1} parent=11 // pred_fallthru
          _
        // Predicated region
        $region21: #{tpu_custom_call.1} parent=11 // pred_check
          %p168 = pneg %p100
        $region22: #{tpu_custom_call.1} parent=11 // pred_check_branch
          %170 = sbr.rel (%p168) target = $region24
        $region23: #{tpu_custom_call.1} parent=11 // pred_region
          _
        $region24: #{tpu_custom_call.1} parent=11 // pred_fallthru
          _
        // Predicated region
        $region25: #{tpu_custom_call.1} parent=11 // pred_check
          %p171 = pneg %p121
        $region26: #{tpu_custom_call.1} parent=11 // pred_check_branch
          %173 = sbr.rel (%p171) target = $region28
        $region27: #{tpu_custom_call.1} parent=11 // pred_region
          _
        $region28: #{tpu_custom_call.1} parent=11 // pred_fallthru
          _
      $region12: #{tpu_custom_call.1} parent=5 // pred_fallthru
        _
      %p174 = scmp.lt.s32.totalorder %s11, 2
      // Predicated region
      $region29: #{tpu_custom_call.1} parent=5 // pred_check
        %p175 = pneg %p174
      $region30: #{tpu_custom_call.1} parent=5 // pred_check_branch
        %177 = sbr.rel (%p175) target = $region32
      $region31: #{tpu_custom_call.1} parent=5 // pred_region
        // Predicated region
        $region33: #{tpu_custom_call.1} parent=31 // pred_check
          %p178 = pneg %p31
        $region34: #{tpu_custom_call.1} parent=31 // pred_check_branch
          %180 = sbr.rel (%p178) target = $region36
        $region35: #{tpu_custom_call.1} parent=31 // pred_region
          %s181 = sand.u32 %s21, 1
          %s182 = sand.u32 %s21, 1
          %s183 = smul.addr %s182, 2304
          %s184 = scalar_lea.vmem [#allocation2], %s183
          %s185 = smul.u32 16, %s11
          %s186 = smul.addr %s185, 2
          %s187 = smul.addr %s186, 8
          %s188 = scalar_lea.vmem %s0, %s187
          // Predicated region
          $region37: #{tpu_custom_call.1} parent=35 // pred_check
            _
          $region38: #{tpu_custom_call.1} parent=35 // pred_check_branch
            %190 = sbr.rel (0) target = $region40
          $region39: #{tpu_custom_call.1} parent=35 // pred_region
            // Predicated region
            $region41: #{tpu_custom_call.1} parent=39 // pred_check
              _
            $region42: #{tpu_custom_call.1} parent=39 // pred_check_branch
              %192 = sbr.rel (0) target = $region44
            $region43: #{tpu_custom_call.1} parent=39 // pred_region
              loop: start=0, step=1, limit=1
              $region45: #{tpu_custom_call.1} parent=43 // loop_pre_header
                _
              $region46: #{tpu_custom_call.1} parent=43 // loop_header
                %s194 = sphi 0, %s198
                %p195 = scmp.ge.s32.totalorder %s194, 1
                %s199 = sphi %s188, %s188
                %s200 = sphi %s184, %s184
              $region47: #{tpu_custom_call.1} parent=43 // loop_header_branch
                %197 = sbr.rel (%p195) target = $region51
              $region48: #{tpu_custom_call.1} parent=43 // loop_body
                %v201 = vld [vmem:[%s199] sm:$0xff]
                %202 = vst [vmem:[%s200] sm:$0xff] %v201
                %v203 = vld [vmem:[%s199 + $0x8] sm:$0xff]
                %204 = vst [vmem:[%s200 + $0x8] sm:$0xff] %v203
                %v205 = vld [vmem:[%s199 + $0x10] sm:$0xff]
                %206 = vst [vmem:[%s200 + $0x10] sm:$0xff] %v205
                %v207 = vld [vmem:[%s199 + $0x18] sm:$0xff]
                %208 = vst [vmem:[%s200 + $0x18] sm:$0xff] %v207
                %v209 = vld [vmem:[%s199 + $0x20] sm:$0xff]
                %210 = vst [vmem:[%s200 + $0x20] sm:$0xff] %v209
                %v211 = vld [vmem:[%s199 + $0x28] sm:$0xff]
                %212 = vst [vmem:[%s200 + $0x28] sm:$0xff] %v211
                %v213 = vld [vmem:[%s199 + $0x30] sm:$0xff]
                %214 = vst [vmem:[%s200 + $0x30] sm:$0xff] %v213
                %v215 = vld [vmem:[%s199 + $0x38] sm:$0xff]
                %216 = vst [vmem:[%s200 + $0x38] sm:$0xff] %v215
                %v217 = vld [vmem:[%s199 + $0x40] sm:$0xff]
                %218 = vst [vmem:[%s200 + $0x40] sm:$0xff] %v217
                %v219 = vld [vmem:[%s199 + $0x48] sm:$0xff]
                %220 = vst [vmem:[%s200 + $0x48] sm:$0xff] %v219
                %v221 = vld [vmem:[%s199 + $0x50] sm:$0xff]
                %222 = vst [vmem:[%s200 + $0x50] sm:$0xff] %v221
                %v223 = vld [vmem:[%s199 + $0x58] sm:$0xff]
                %224 = vst [vmem:[%s200 + $0x58] sm:$0xff] %v223
                %v225 = vld [vmem:[%s199 + $0x60] sm:$0xff]
                %226 = vst [vmem:[%s200 + $0x60] sm:$0xff] %v225
                %v227 = vld [vmem:[%s199 + $0x68] sm:$0xff]
                %228 = vst [vmem:[%s200 + $0x68] sm:$0xff] %v227
                %v229 = vld [vmem:[%s199 + $0x70] sm:$0xff]
                %230 = vst [vmem:[%s200 + $0x70] sm:$0xff] %v229
                %v231 = vld [vmem:[%s199 + $0x78] sm:$0xff]
                %232 = vst [vmem:[%s200 + $0x78] sm:$0xff] %v231
                %v233 = vld [vmem:[%s199 + $0x80] sm:$0xff]
                %234 = vst [vmem:[%s200 + $0x80] sm:$0xff] %v233
                %v235 = vld [vmem:[%s199 + $0x88] sm:$0xff]
                %236 = vst [vmem:[%s200 + $0x88] sm:$0xff] %v235
                %v237 = vld [vmem:[%s199 + $0x90] sm:$0xff]
                %238 = vst [vmem:[%s200 + $0x90] sm:$0xff] %v237
                %v239 = vld [vmem:[%s199 + $0x98] sm:$0xff]
                %240 = vst [vmem:[%s200 + $0x98] sm:$0xff] %v239
                %v241 = vld [vmem:[%s199 + $0xa0] sm:$0xff]
                %242 = vst [vmem:[%s200 + $0xa0] sm:$0xff] %v241
                %v243 = vld [vmem:[%s199 + $0xa8] sm:$0xff]
                %244 = vst [vmem:[%s200 + $0xa8] sm:$0xff] %v243
                %v245 = vld [vmem:[%s199 + $0xb0] sm:$0xff]
                %246 = vst [vmem:[%s200 + $0xb0] sm:$0xff] %v245
                %v247 = vld [vmem:[%s199 + $0xb8] sm:$0xff]
                %248 = vst [vmem:[%s200 + $0xb8] sm:$0xff] %v247
                %v249 = vld [vmem:[%s199 + $0xc0] sm:$0xff]
                %250 = vst [vmem:[%s200 + $0xc0] sm:$0xff] %v249
                %v251 = vld [vmem:[%s199 + $0xc8] sm:$0xff]
                %252 = vst [vmem:[%s200 + $0xc8] sm:$0xff] %v251
                %v253 = vld [vmem:[%s199 + $0xd0] sm:$0xff]
                %254 = vst [vmem:[%s200 + $0xd0] sm:$0xff] %v253
                %v255 = vld [vmem:[%s199 + $0xd8] sm:$0xff]
                %256 = vst [vmem:[%s200 + $0xd8] sm:$0xff] %v255
                %v257 = vld [vmem:[%s199 + $0xe0] sm:$0xff]
                %258 = vst [vmem:[%s200 + $0xe0] sm:$0xff] %v257
                %v259 = vld [vmem:[%s199 + $0xe8] sm:$0xff]
                %260 = vst [vmem:[%s200 + $0xe8] sm:$0xff] %v259
                %v261 = vld [vmem:[%s199 + $0xf0] sm:$0xff]
                %262 = vst [vmem:[%s200 + $0xf0] sm:$0xff] %v261
                %v263 = vld [vmem:[%s199 + $0xf8] sm:$0xff]
                %264 = vst [vmem:[%s200 + $0xf8] sm:$0xff] %v263
                %v265 = vld [vmem:[%s199 + $0x200] sm:$0xff]
                %266 = vst [vmem:[%s200 + $0x100] sm:$0xff] %v265
                %v267 = vld [vmem:[%s199 + $0x208] sm:$0xff]
                %268 = vst [vmem:[%s200 + $0x108] sm:$0xff] %v267
                %v269 = vld [vmem:[%s199 + $0x210] sm:$0xff]
                %270 = vst [vmem:[%s200 + $0x110] sm:$0xff] %v269
                %v271 = vld [vmem:[%s199 + $0x218] sm:$0xff]
                %272 = vst [vmem:[%s200 + $0x118] sm:$0xff] %v271
                %v273 = vld [vmem:[%s199 + $0x220] sm:$0xff]
                %274 = vst [vmem:[%s200 + $0x120] sm:$0xff] %v273
                %v275 = vld [vmem:[%s199 + $0x228] sm:$0xff]
                %276 = vst [vmem:[%s200 + $0x128] sm:$0xff] %v275
                %v277 = vld [vmem:[%s199 + $0x230] sm:$0xff]
                %278 = vst [vmem:[%s200 + $0x130] sm:$0xff] %v277
                %v279 = vld [vmem:[%s199 + $0x238] sm:$0xff]
                %280 = vst [vmem:[%s200 + $0x138] sm:$0xff] %v279
                %v281 = vld [vmem:[%s199 + $0x240] sm:$0xff]
                %282 = vst [vmem:[%s200 + $0x140] sm:$0xff] %v281
                %v283 = vld [vmem:[%s199 + $0x248] sm:$0xff]
                %284 = vst [vmem:[%s200 + $0x148] sm:$0xff] %v283
                %v285 = vld [vmem:[%s199 + $0x250] sm:$0xff]
                %286 = vst [vmem:[%s200 + $0x150] sm:$0xff] %v285
                %v287 = vld [vmem:[%s199 + $0x258] sm:$0xff]
                %288 = vst [vmem:[%s200 + $0x158] sm:$0xff] %v287
                %v289 = vld [vmem:[%s199 + $0x260] sm:$0xff]
                %290 = vst [vmem:[%s200 + $0x160] sm:$0xff] %v289
                %v291 = vld [vmem:[%s199 + $0x268] sm:$0xff]
                %292 = vst [vmem:[%s200 + $0x168] sm:$0xff] %v291
                %v293 = vld [vmem:[%s199 + $0x270] sm:$0xff]
                %294 = vst [vmem:[%s200 + $0x170] sm:$0xff] %v293
                %v295 = vld [vmem:[%s199 + $0x278] sm:$0xff]
                %296 = vst [vmem:[%s200 + $0x178] sm:$0xff] %v295
                %v297 = vld [vmem:[%s199 + $0x280] sm:$0xff]
                %298 = vst [vmem:[%s200 + $0x180] sm:$0xff] %v297
                %v299 = vld [vmem:[%s199 + $0x288] sm:$0xff]
                %300 = vst [vmem:[%s200 + $0x188] sm:$0xff] %v299
                %v301 = vld [vmem:[%s199 + $0x290] sm:$0xff]
                %302 = vst [vmem:[%s200 + $0x190] sm:$0xff] %v301
                %v303 = vld [vmem:[%s199 + $0x298] sm:$0xff]
                %304 = vst [vmem:[%s200 + $0x198] sm:$0xff] %v303
                %v305 = vld [vmem:[%s199 + $0x2a0] sm:$0xff]
                %306 = vst [vmem:[%s200 + $0x1a0] sm:$0xff] %v305
                %v307 = vld [vmem:[%s199 + $0x2a8] sm:$0xff]
                %308 = vst [vmem:[%s200 + $0x1a8] sm:$0xff] %v307
                %v309 = vld [vmem:[%s199 + $0x2b0] sm:$0xff]
                %310 = vst [vmem:[%s200 + $0x1b0] sm:$0xff] %v309
                %v311 = vld [vmem:[%s199 + $0x2b8] sm:$0xff]
                %312 = vst [vmem:[%s200 + $0x1b8] sm:$0xff] %v311
                %v313 = vld [vmem:[%s199 + $0x2c0] sm:$0xff]
                %314 = vst [vmem:[%s200 + $0x1c0] sm:$0xff] %v313
                %v315 = vld [vmem:[%s199 + $0x2c8] sm:$0xff]
                %316 = vst [vmem:[%s200 + $0x1c8] sm:$0xff] %v315
                %v317 = vld [vmem:[%s199 + $0x2d0] sm:$0xff]
                %318 = vst [vmem:[%s200 + $0x1d0] sm:$0xff] %v317
                %v319 = vld [vmem:[%s199 + $0x2d8] sm:$0xff]
                %320 = vst [vmem:[%s200 + $0x1d8] sm:$0xff] %v319
                %v321 = vld [vmem:[%s199 + $0x2e0] sm:$0xff]
                %322 = vst [vmem:[%s200 + $0x1e0] sm:$0xff] %v321
                %v323 = vld [vmem:[%s199 + $0x2e8] sm:$0xff]
                %324 = vst [vmem:[%s200 + $0x1e8] sm:$0xff] %v323
                %v325 = vld [vmem:[%s199 + $0x2f0] sm:$0xff]
                %326 = vst [vmem:[%s200 + $0x1f0] sm:$0xff] %v325
                %v327 = vld [vmem:[%s199 + $0x2f8] sm:$0xff]
                %328 = vst [vmem:[%s200 + $0x1f8] sm:$0xff] %v327
                %v329 = vld [vmem:[%s199 + $0x400] sm:$0xff]
                %330 = vst [vmem:[%s200 + $0x200] sm:$0xff] %v329
                %v331 = vld [vmem:[%s199 + $0x408] sm:$0xff]
                %332 = vst [vmem:[%s200 + $0x208] sm:$0xff] %v331
                %v333 = vld [vmem:[%s199 + $0x410] sm:$0xff]
                %334 = vst [vmem:[%s200 + $0x210] sm:$0xff] %v333
                %v335 = vld [vmem:[%s199 + $0x418] sm:$0xff]
                %336 = vst [vmem:[%s200 + $0x218] sm:$0xff] %v335
                %v337 = vld [vmem:[%s199 + $0x420] sm:$0xff]
                %338 = vst [vmem:[%s200 + $0x220] sm:$0xff] %v337
                %v339 = vld [vmem:[%s199 + $0x428] sm:$0xff]
                %340 = vst [vmem:[%s200 + $0x228] sm:$0xff] %v339
                %v341 = vld [vmem:[%s199 + $0x430] sm:$0xff]
                %342 = vst [vmem:[%s200 + $0x230] sm:$0xff] %v341
                %v343 = vld [vmem:[%s199 + $0x438] sm:$0xff]
                %344 = vst [vmem:[%s200 + $0x238] sm:$0xff] %v343
                %v345 = vld [vmem:[%s199 + $0x440] sm:$0xff]
                %346 = vst [vmem:[%s200 + $0x240] sm:$0xff] %v345
                %v347 = vld [vmem:[%s199 + $0x448] sm:$0xff]
                %348 = vst [vmem:[%s200 + $0x248] sm:$0xff] %v347
                %v349 = vld [vmem:[%s199 + $0x450] sm:$0xff]
                %350 = vst [vmem:[%s200 + $0x250] sm:$0xff] %v349
                %v351 = vld [vmem:[%s199 + $0x458] sm:$0xff]
                %352 = vst [vmem:[%s200 + $0x258] sm:$0xff] %v351
                %v353 = vld [vmem:[%s199 + $0x460] sm:$0xff]
                %354 = vst [vmem:[%s200 + $0x260] sm:$0xff] %v353
                %v355 = vld [vmem:[%s199 + $0x468] sm:$0xff]
                %356 = vst [vmem:[%s200 + $0x268] sm:$0xff] %v355
                %v357 = vld [vmem:[%s199 + $0x470] sm:$0xff]
                %358 = vst [vmem:[%s200 + $0x270] sm:$0xff] %v357
                %v359 = vld [vmem:[%s199 + $0x478] sm:$0xff]
                %360 = vst [vmem:[%s200 + $0x278] sm:$0xff] %v359
                %v361 = vld [vmem:[%s199 + $0x480] sm:$0xff]
                %362 = vst [vmem:[%s200 + $0x280] sm:$0xff] %v361
                %v363 = vld [vmem:[%s199 + $0x488] sm:$0xff]
                %364 = vst [vmem:[%s200 + $0x288] sm:$0xff] %v363
                %v365 = vld [vmem:[%s199 + $0x490] sm:$0xff]
                %366 = vst [vmem:[%s200 + $0x290] sm:$0xff] %v365
                %v367 = vld [vmem:[%s199 + $0x498] sm:$0xff]
                %368 = vst [vmem:[%s200 + $0x298] sm:$0xff] %v367
                %v369 = vld [vmem:[%s199 + $0x4a0] sm:$0xff]
                %370 = vst [vmem:[%s200 + $0x2a0] sm:$0xff] %v369
                %v371 = vld [vmem:[%s199 + $0x4a8] sm:$0xff]
                %372 = vst [vmem:[%s200 + $0x2a8] sm:$0xff] %v371
                %v373 = vld [vmem:[%s199 + $0x4b0] sm:$0xff]
                %374 = vst [vmem:[%s200 + $0x2b0] sm:$0xff] %v373
                %v375 = vld [vmem:[%s199 + $0x4b8] sm:$0xff]
                %376 = vst [vmem:[%s200 + $0x2b8] sm:$0xff] %v375
                %v377 = vld [vmem:[%s199 + $0x4c0] sm:$0xff]
                %378 = vst [vmem:[%s200 + $0x2c0] sm:$0xff] %v377
                %v379 = vld [vmem:[%s199 + $0x4c8] sm:$0xff]
                %380 = vst [vmem:[%s200 + $0x2c8] sm:$0xff] %v379
                %v381 = vld [vmem:[%s199 + $0x4d0] sm:$0xff]
                %382 = vst [vmem:[%s200 + $0x2d0] sm:$0xff] %v381
                %v383 = vld [vmem:[%s199 + $0x4d8] sm:$0xff]
                %384 = vst [vmem:[%s200 + $0x2d8] sm:$0xff] %v383
                %v385 = vld [vmem:[%s199 + $0x4e0] sm:$0xff]
                %386 = vst [vmem:[%s200 + $0x2e0] sm:$0xff] %v385
                %v387 = vld [vmem:[%s199 + $0x4e8] sm:$0xff]
                %388 = vst [vmem:[%s200 + $0x2e8] sm:$0xff] %v387
                %v389 = vld [vmem:[%s199 + $0x4f0] sm:$0xff]
                %390 = vst [vmem:[%s200 + $0x2f0] sm:$0xff] %v389
                %v391 = vld [vmem:[%s199 + $0x4f8] sm:$0xff]
                %392 = vst [vmem:[%s200 + $0x2f8] sm:$0xff] %v391
                %v393 = vld [vmem:[%s199 + $0x600] sm:$0xff]
                %394 = vst [vmem:[%s200 + $0x300] sm:$0xff] %v393
                %v395 = vld [vmem:[%s199 + $0x608] sm:$0xff]
                %396 = vst [vmem:[%s200 + $0x308] sm:$0xff] %v395
                %v397 = vld [vmem:[%s199 + $0x610] sm:$0xff]
                %398 = vst [vmem:[%s200 + $0x310] sm:$0xff] %v397
                %v399 = vld [vmem:[%s199 + $0x618] sm:$0xff]
                %400 = vst [vmem:[%s200 + $0x318] sm:$0xff] %v399
                %v401 = vld [vmem:[%s199 + $0x620] sm:$0xff]
                %402 = vst [vmem:[%s200 + $0x320] sm:$0xff] %v401
                %v403 = vld [vmem:[%s199 + $0x628] sm:$0xff]
                %404 = vst [vmem:[%s200 + $0x328] sm:$0xff] %v403
                %v405 = vld [vmem:[%s199 + $0x630] sm:$0xff]
                %406 = vst [vmem:[%s200 + $0x330] sm:$0xff] %v405
                %v407 = vld [vmem:[%s199 + $0x638] sm:$0xff]
                %408 = vst [vmem:[%s200 + $0x338] sm:$0xff] %v407
                %v409 = vld [vmem:[%s199 + $0x640] sm:$0xff]
                %410 = vst [vmem:[%s200 + $0x340] sm:$0xff] %v409
                %v411 = vld [vmem:[%s199 + $0x648] sm:$0xff]
                %412 = vst [vmem:[%s200 + $0x348] sm:$0xff] %v411
                %v413 = vld [vmem:[%s199 + $0x650] sm:$0xff]
                %414 = vst [vmem:[%s200 + $0x350] sm:$0xff] %v413
                %v415 = vld [vmem:[%s199 + $0x658] sm:$0xff]
                %416 = vst [vmem:[%s200 + $0x358] sm:$0xff] %v415
                %v417 = vld [vmem:[%s199 + $0x660] sm:$0xff]
                %418 = vst [vmem:[%s200 + $0x360] sm:$0xff] %v417
                %v419 = vld [vmem:[%s199 + $0x668] sm:$0xff]
                %420 = vst [vmem:[%s200 + $0x368] sm:$0xff] %v419
                %v421 = vld [vmem:[%s199 + $0x670] sm:$0xff]
                %422 = vst [vmem:[%s200 + $0x370] sm:$0xff] %v421
                %v423 = vld [vmem:[%s199 + $0x678] sm:$0xff]
                %424 = vst [vmem:[%s200 + $0x378] sm:$0xff] %v423
                %v425 = vld [vmem:[%s199 + $0x680] sm:$0xff]
                %426 = vst [vmem:[%s200 + $0x380] sm:$0xff] %v425
                %v427 = vld [vmem:[%s199 + $0x688] sm:$0xff]
                %428 = vst [vmem:[%s200 + $0x388] sm:$0xff] %v427
                %v429 = vld [vmem:[%s199 + $0x690] sm:$0xff]
                %430 = vst [vmem:[%s200 + $0x390] sm:$0xff] %v429
                %v431 = vld [vmem:[%s199 + $0x698] sm:$0xff]
                %432 = vst [vmem:[%s200 + $0x398] sm:$0xff] %v431
                %v433 = vld [vmem:[%s199 + $0x6a0] sm:$0xff]
                %434 = vst [vmem:[%s200 + $0x3a0] sm:$0xff] %v433
                %v435 = vld [vmem:[%s199 + $0x6a8] sm:$0xff]
                %436 = vst [vmem:[%s200 + $0x3a8] sm:$0xff] %v435
                %v437 = vld [vmem:[%s199 + $0x6b0] sm:$0xff]
                %438 = vst [vmem:[%s200 + $0x3b0] sm:$0xff] %v437
                %v439 = vld [vmem:[%s199 + $0x6b8] sm:$0xff]
                %440 = vst [vmem:[%s200 + $0x3b8] sm:$0xff] %v439
                %v441 = vld [vmem:[%s199 + $0x6c0] sm:$0xff]
                %442 = vst [vmem:[%s200 + $0x3c0] sm:$0xff] %v441
                %v443 = vld [vmem:[%s199 + $0x6c8] sm:$0xff]
                %444 = vst [vmem:[%s200 + $0x3c8] sm:$0xff] %v443
                %v445 = vld [vmem:[%s199 + $0x6d0] sm:$0xff]
                %446 = vst [vmem:[%s200 + $0x3d0] sm:$0xff] %v445
                %v447 = vld [vmem:[%s199 + $0x6d8] sm:$0xff]
                %448 = vst [vmem:[%s200 + $0x3d8] sm:$0xff] %v447
                %v449 = vld [vmem:[%s199 + $0x6e0] sm:$0xff]
                %450 = vst [vmem:[%s200 + $0x3e0] sm:$0xff] %v449
                %v451 = vld [vmem:[%s199 + $0x6e8] sm:$0xff]
                %452 = vst [vmem:[%s200 + $0x3e8] sm:$0xff] %v451
                %v453 = vld [vmem:[%s199 + $0x6f0] sm:$0xff]
                %454 = vst [vmem:[%s200 + $0x3f0] sm:$0xff] %v453
                %v455 = vld [vmem:[%s199 + $0x6f8] sm:$0xff]
                %456 = vst [vmem:[%s200 + $0x3f8] sm:$0xff] %v455
                %v457 = vld [vmem:[%s199 + $0x800] sm:$0xff]
                %458 = vst [vmem:[%s200 + $0x400] sm:$0xff] %v457
                %v459 = vld [vmem:[%s199 + $0x808] sm:$0xff]
                %460 = vst [vmem:[%s200 + $0x408] sm:$0xff] %v459
                %v461 = vld [vmem:[%s199 + $0x810] sm:$0xff]
                %462 = vst [vmem:[%s200 + $0x410] sm:$0xff] %v461
                %v463 = vld [vmem:[%s199 + $0x818] sm:$0xff]
                %464 = vst [vmem:[%s200 + $0x418] sm:$0xff] %v463
                %v465 = vld [vmem:[%s199 + $0x820] sm:$0xff]
                %466 = vst [vmem:[%s200 + $0x420] sm:$0xff] %v465
                %v467 = vld [vmem:[%s199 + $0x828] sm:$0xff]
                %468 = vst [vmem:[%s200 + $0x428] sm:$0xff] %v467
                %v469 = vld [vmem:[%s199 + $0x830] sm:$0xff]
                %470 = vst [vmem:[%s200 + $0x430] sm:$0xff] %v469
                %v471 = vld [vmem:[%s199 + $0x838] sm:$0xff]
                %472 = vst [vmem:[%s200 + $0x438] sm:$0xff] %v471
                %v473 = vld [vmem:[%s199 + $0x840] sm:$0xff]
                %474 = vst [vmem:[%s200 + $0x440] sm:$0xff] %v473
                %v475 = vld [vmem:[%s199 + $0x848] sm:$0xff]
                %476 = vst [vmem:[%s200 + $0x448] sm:$0xff] %v475
                %v477 = vld [vmem:[%s199 + $0x850] sm:$0xff]
                %478 = vst [vmem:[%s200 + $0x450] sm:$0xff] %v477
                %v479 = vld [vmem:[%s199 + $0x858] sm:$0xff]
                %480 = vst [vmem:[%s200 + $0x458] sm:$0xff] %v479
                %v481 = vld [vmem:[%s199 + $0x860] sm:$0xff]
                %482 = vst [vmem:[%s200 + $0x460] sm:$0xff] %v481
                %v483 = vld [vmem:[%s199 + $0x868] sm:$0xff]
                %484 = vst [vmem:[%s200 + $0x468] sm:$0xff] %v483
                %v485 = vld [vmem:[%s199 + $0x870] sm:$0xff]
                %486 = vst [vmem:[%s200 + $0x470] sm:$0xff] %v485
                %v487 = vld [vmem:[%s199 + $0x878] sm:$0xff]
                %488 = vst [vmem:[%s200 + $0x478] sm:$0xff] %v487
                %v489 = vld [vmem:[%s199 + $0x880] sm:$0xff]
                %490 = vst [vmem:[%s200 + $0x480] sm:$0xff] %v489
                %v491 = vld [vmem:[%s199 + $0x888] sm:$0xff]
                %492 = vst [vmem:[%s200 + $0x488] sm:$0xff] %v491
                %v493 = vld [vmem:[%s199 + $0x890] sm:$0xff]
                %494 = vst [vmem:[%s200 + $0x490] sm:$0xff] %v493
                %v495 = vld [vmem:[%s199 + $0x898] sm:$0xff]
                %496 = vst [vmem:[%s200 + $0x498] sm:$0xff] %v495
                %v497 = vld [vmem:[%s199 + $0x8a0] sm:$0xff]
                %498 = vst [vmem:[%s200 + $0x4a0] sm:$0xff] %v497
                %v499 = vld [vmem:[%s199 + $0x8a8] sm:$0xff]
                %500 = vst [vmem:[%s200 + $0x4a8] sm:$0xff] %v499
                %v501 = vld [vmem:[%s199 + $0x8b0] sm:$0xff]
                %502 = vst [vmem:[%s200 + $0x4b0] sm:$0xff] %v501
                %v503 = vld [vmem:[%s199 + $0x8b8] sm:$0xff]
                %504 = vst [vmem:[%s200 + $0x4b8] sm:$0xff] %v503
                %v505 = vld [vmem:[%s199 + $0x8c0] sm:$0xff]
                %506 = vst [vmem:[%s200 + $0x4c0] sm:$0xff] %v505
                %v507 = vld [vmem:[%s199 + $0x8c8] sm:$0xff]
                %508 = vst [vmem:[%s200 + $0x4c8] sm:$0xff] %v507
                %v509 = vld [vmem:[%s199 + $0x8d0] sm:$0xff]
                %510 = vst [vmem:[%s200 + $0x4d0] sm:$0xff] %v509
                %v511 = vld [vmem:[%s199 + $0x8d8] sm:$0xff]
                %512 = vst [vmem:[%s200 + $0x4d8] sm:$0xff] %v511
                %v513 = vld [vmem:[%s199 + $0x8e0] sm:$0xff]
                %514 = vst [vmem:[%s200 + $0x4e0] sm:$0xff] %v513
                %v515 = vld [vmem:[%s199 + $0x8e8] sm:$0xff]
                %516 = vst [vmem:[%s200 + $0x4e8] sm:$0xff] %v515
                %v517 = vld [vmem:[%s199 + $0x8f0] sm:$0xff]
                %518 = vst [vmem:[%s200 + $0x4f0] sm:$0xff] %v517
                %v519 = vld [vmem:[%s199 + $0x8f8] sm:$0xff]
                %520 = vst [vmem:[%s200 + $0x4f8] sm:$0xff] %v519
                %v521 = vld [vmem:[%s199 + $0xa00] sm:$0xff]
                %522 = vst [vmem:[%s200 + $0x500] sm:$0xff] %v521
                %v523 = vld [vmem:[%s199 + $0xa08] sm:$0xff]
                %524 = vst [vmem:[%s200 + $0x508] sm:$0xff] %v523
                %v525 = vld [vmem:[%s199 + $0xa10] sm:$0xff]
                %526 = vst [vmem:[%s200 + $0x510] sm:$0xff] %v525
                %v527 = vld [vmem:[%s199 + $0xa18] sm:$0xff]
                %528 = vst [vmem:[%s200 + $0x518] sm:$0xff] %v527
                %v529 = vld [vmem:[%s199 + $0xa20] sm:$0xff]
                %530 = vst [vmem:[%s200 + $0x520] sm:$0xff] %v529
                %v531 = vld [vmem:[%s199 + $0xa28] sm:$0xff]
                %532 = vst [vmem:[%s200 + $0x528] sm:$0xff] %v531
                %v533 = vld [vmem:[%s199 + $0xa30] sm:$0xff]
                %534 = vst [vmem:[%s200 + $0x530] sm:$0xff] %v533
                %v535 = vld [vmem:[%s199 + $0xa38] sm:$0xff]
                %536 = vst [vmem:[%s200 + $0x538] sm:$0xff] %v535
                %v537 = vld [vmem:[%s199 + $0xa40] sm:$0xff]
                %538 = vst [vmem:[%s200 + $0x540] sm:$0xff] %v537
                %v539 = vld [vmem:[%s199 + $0xa48] sm:$0xff]
                %540 = vst [vmem:[%s200 + $0x548] sm:$0xff] %v539
                %v541 = vld [vmem:[%s199 + $0xa50] sm:$0xff]
                %542 = vst [vmem:[%s200 + $0x550] sm:$0xff] %v541
                %v543 = vld [vmem:[%s199 + $0xa58] sm:$0xff]
                %544 = vst [vmem:[%s200 + $0x558] sm:$0xff] %v543
                %v545 = vld [vmem:[%s199 + $0xa60] sm:$0xff]
                %546 = vst [vmem:[%s200 + $0x560] sm:$0xff] %v545
                %v547 = vld [vmem:[%s199 + $0xa68] sm:$0xff]
                %548 = vst [vmem:[%s200 + $0x568] sm:$0xff] %v547
                %v549 = vld [vmem:[%s199 + $0xa70] sm:$0xff]
                %550 = vst [vmem:[%s200 + $0x570] sm:$0xff] %v549
                %v551 = vld [vmem:[%s199 + $0xa78] sm:$0xff]
                %552 = vst [vmem:[%s200 + $0x578] sm:$0xff] %v551
                %v553 = vld [vmem:[%s199 + $0xa80] sm:$0xff]
                %554 = vst [vmem:[%s200 + $0x580] sm:$0xff] %v553
                %v555 = vld [vmem:[%s199 + $0xa88] sm:$0xff]
                %556 = vst [vmem:[%s200 + $0x588] sm:$0xff] %v555
                %v557 = vld [vmem:[%s199 + $0xa90] sm:$0xff]
                %558 = vst [vmem:[%s200 + $0x590] sm:$0xff] %v557
                %v559 = vld [vmem:[%s199 + $0xa98] sm:$0xff]
                %560 = vst [vmem:[%s200 + $0x598] sm:$0xff] %v559
                %v561 = vld [vmem:[%s199 + $0xaa0] sm:$0xff]
                %562 = vst [vmem:[%s200 + $0x5a0] sm:$0xff] %v561
                %v563 = vld [vmem:[%s199 + $0xaa8] sm:$0xff]
                %564 = vst [vmem:[%s200 + $0x5a8] sm:$0xff] %v563
                %v565 = vld [vmem:[%s199 + $0xab0] sm:$0xff]
                %566 = vst [vmem:[%s200 + $0x5b0] sm:$0xff] %v565
                %v567 = vld [vmem:[%s199 + $0xab8] sm:$0xff]
                %568 = vst [vmem:[%s200 + $0x5b8] sm:$0xff] %v567
                %v569 = vld [vmem:[%s199 + $0xac0] sm:$0xff]
                %570 = vst [vmem:[%s200 + $0x5c0] sm:$0xff] %v569
                %v571 = vld [vmem:[%s199 + $0xac8] sm:$0xff]
                %572 = vst [vmem:[%s200 + $0x5c8] sm:$0xff] %v571
                %v573 = vld [vmem:[%s199 + $0xad0] sm:$0xff]
                %574 = vst [vmem:[%s200 + $0x5d0] sm:$0xff] %v573
                %v575 = vld [vmem:[%s199 + $0xad8] sm:$0xff]
                %576 = vst [vmem:[%s200 + $0x5d8] sm:$0xff] %v575
                %v577 = vld [vmem:[%s199 + $0xae0] sm:$0xff]
                %578 = vst [vmem:[%s200 + $0x5e0] sm:$0xff] %v577
                %v579 = vld [vmem:[%s199 + $0xae8] sm:$0xff]
                %580 = vst [vmem:[%s200 + $0x5e8] sm:$0xff] %v579
                %v581 = vld [vmem:[%s199 + $0xaf0] sm:$0xff]
                %582 = vst [vmem:[%s200 + $0x5f0] sm:$0xff] %v581
                %v583 = vld [vmem:[%s199 + $0xaf8] sm:$0xff]
                %584 = vst [vmem:[%s200 + $0x5f8] sm:$0xff] %v583
                %v585 = vld [vmem:[%s199 + $0xc00] sm:$0xff]
                %586 = vst [vmem:[%s200 + $0x600] sm:$0xff] %v585
                %v587 = vld [vmem:[%s199 + $0xc08] sm:$0xff]
                %588 = vst [vmem:[%s200 + $0x608] sm:$0xff] %v587
                %v589 = vld [vmem:[%s199 + $0xc10] sm:$0xff]
                %590 = vst [vmem:[%s200 + $0x610] sm:$0xff] %v589
                %v591 = vld [vmem:[%s199 + $0xc18] sm:$0xff]
                %592 = vst [vmem:[%s200 + $0x618] sm:$0xff] %v591
                %v593 = vld [vmem:[%s199 + $0xc20] sm:$0xff]
                %594 = vst [vmem:[%s200 + $0x620] sm:$0xff] %v593
                %v595 = vld [vmem:[%s199 + $0xc28] sm:$0xff]
                %596 = vst [vmem:[%s200 + $0x628] sm:$0xff] %v595
                %v597 = vld [vmem:[%s199 + $0xc30] sm:$0xff]
                %598 = vst [vmem:[%s200 + $0x630] sm:$0xff] %v597
                %v599 = vld [vmem:[%s199 + $0xc38] sm:$0xff]
                %600 = vst [vmem:[%s200 + $0x638] sm:$0xff] %v599
                %v601 = vld [vmem:[%s199 + $0xc40] sm:$0xff]
                %602 = vst [vmem:[%s200 + $0x640] sm:$0xff] %v601
                %v603 = vld [vmem:[%s199 + $0xc48] sm:$0xff]
                %604 = vst [vmem:[%s200 + $0x648] sm:$0xff] %v603
                %v605 = vld [vmem:[%s199 + $0xc50] sm:$0xff]
                %606 = vst [vmem:[%s200 + $0x650] sm:$0xff] %v605
                %v607 = vld [vmem:[%s199 + $0xc58] sm:$0xff]
                %608 = vst [vmem:[%s200 + $0x658] sm:$0xff] %v607
                %v609 = vld [vmem:[%s199 + $0xc60] sm:$0xff]
                %610 = vst [vmem:[%s200 + $0x660] sm:$0xff] %v609
                %v611 = vld [vmem:[%s199 + $0xc68] sm:$0xff]
                %612 = vst [vmem:[%s200 + $0x668] sm:$0xff] %v611
                %v613 = vld [vmem:[%s199 + $0xc70] sm:$0xff]
                %614 = vst [vmem:[%s200 + $0x670] sm:$0xff] %v613
                %v615 = vld [vmem:[%s199 + $0xc78] sm:$0xff]
                %616 = vst [vmem:[%s200 + $0x678] sm:$0xff] %v615
                %v617 = vld [vmem:[%s199 + $0xc80] sm:$0xff]
                %618 = vst [vmem:[%s200 + $0x680] sm:$0xff] %v617
                %v619 = vld [vmem:[%s199 + $0xc88] sm:$0xff]
                %620 = vst [vmem:[%s200 + $0x688] sm:$0xff] %v619
                %v621 = vld [vmem:[%s199 + $0xc90] sm:$0xff]
                %622 = vst [vmem:[%s200 + $0x690] sm:$0xff] %v621
                %v623 = vld [vmem:[%s199 + $0xc98] sm:$0xff]
                %624 = vst [vmem:[%s200 + $0x698] sm:$0xff] %v623
                %v625 = vld [vmem:[%s199 + $0xca0] sm:$0xff]
                %626 = vst [vmem:[%s200 + $0x6a0] sm:$0xff] %v625
                %v627 = vld [vmem:[%s199 + $0xca8] sm:$0xff]
                %628 = vst [vmem:[%s200 + $0x6a8] sm:$0xff] %v627
                %v629 = vld [vmem:[%s199 + $0xcb0] sm:$0xff]
                %630 = vst [vmem:[%s200 + $0x6b0] sm:$0xff] %v629
                %v631 = vld [vmem:[%s199 + $0xcb8] sm:$0xff]
                %632 = vst [vmem:[%s200 + $0x6b8] sm:$0xff] %v631
                %v633 = vld [vmem:[%s199 + $0xcc0] sm:$0xff]
                %634 = vst [vmem:[%s200 + $0x6c0] sm:$0xff] %v633
                %v635 = vld [vmem:[%s199 + $0xcc8] sm:$0xff]
                %636 = vst [vmem:[%s200 + $0x6c8] sm:$0xff] %v635
                %v637 = vld [vmem:[%s199 + $0xcd0] sm:$0xff]
                %638 = vst [vmem:[%s200 + $0x6d0] sm:$0xff] %v637
                %v639 = vld [vmem:[%s199 + $0xcd8] sm:$0xff]
                %640 = vst [vmem:[%s200 + $0x6d8] sm:$0xff] %v639
                %v641 = vld [vmem:[%s199 + $0xce0] sm:$0xff]
                %642 = vst [vmem:[%s200 + $0x6e0] sm:$0xff] %v641
                %v643 = vld [vmem:[%s199 + $0xce8] sm:$0xff]
                %644 = vst [vmem:[%s200 + $0x6e8] sm:$0xff] %v643
                %v645 = vld [vmem:[%s199 + $0xcf0] sm:$0xff]
                %646 = vst [vmem:[%s200 + $0x6f0] sm:$0xff] %v645
                %v647 = vld [vmem:[%s199 + $0xcf8] sm:$0xff]
                %648 = vst [vmem:[%s200 + $0x6f8] sm:$0xff] %v647
                %v649 = vld [vmem:[%s199 + $0xe00] sm:$0xff]
                %650 = vst [vmem:[%s200 + $0x700] sm:$0xff] %v649
                %v651 = vld [vmem:[%s199 + $0xe08] sm:$0xff]
                %652 = vst [vmem:[%s200 + $0x708] sm:$0xff] %v651
                %v653 = vld [vmem:[%s199 + $0xe10] sm:$0xff]
                %654 = vst [vmem:[%s200 + $0x710] sm:$0xff] %v653
                %v655 = vld [vmem:[%s199 + $0xe18] sm:$0xff]
                %656 = vst [vmem:[%s200 + $0x718] sm:$0xff] %v655
                %v657 = vld [vmem:[%s199 + $0xe20] sm:$0xff]
                %658 = vst [vmem:[%s200 + $0x720] sm:$0xff] %v657
                %v659 = vld [vmem:[%s199 + $0xe28] sm:$0xff]
                %660 = vst [vmem:[%s200 + $0x728] sm:$0xff] %v659
                %v661 = vld [vmem:[%s199 + $0xe30] sm:$0xff]
                %662 = vst [vmem:[%s200 + $0x730] sm:$0xff] %v661
                %v663 = vld [vmem:[%s199 + $0xe38] sm:$0xff]
                %664 = vst [vmem:[%s200 + $0x738] sm:$0xff] %v663
                %v665 = vld [vmem:[%s199 + $0xe40] sm:$0xff]
                %666 = vst [vmem:[%s200 + $0x740] sm:$0xff] %v665
                %v667 = vld [vmem:[%s199 + $0xe48] sm:$0xff]
                %668 = vst [vmem:[%s200 + $0x748] sm:$0xff] %v667
                %v669 = vld [vmem:[%s199 + $0xe50] sm:$0xff]
                %670 = vst [vmem:[%s200 + $0x750] sm:$0xff] %v669
                %v671 = vld [vmem:[%s199 + $0xe58] sm:$0xff]
                %672 = vst [vmem:[%s200 + $0x758] sm:$0xff] %v671
                %v673 = vld [vmem:[%s199 + $0xe60] sm:$0xff]
                %674 = vst [vmem:[%s200 + $0x760] sm:$0xff] %v673
                %v675 = vld [vmem:[%s199 + $0xe68] sm:$0xff]
                %676 = vst [vmem:[%s200 + $0x768] sm:$0xff] %v675
                %v677 = vld [vmem:[%s199 + $0xe70] sm:$0xff]
                %678 = vst [vmem:[%s200 + $0x770] sm:$0xff] %v677
                %v679 = vld [vmem:[%s199 + $0xe78] sm:$0xff]
                %680 = vst [vmem:[%s200 + $0x778] sm:$0xff] %v679
                %v681 = vld [vmem:[%s199 + $0xe80] sm:$0xff]
                %682 = vst [vmem:[%s200 + $0x780] sm:$0xff] %v681
                %v683 = vld [vmem:[%s199 + $0xe88] sm:$0xff]
                %684 = vst [vmem:[%s200 + $0x788] sm:$0xff] %v683
                %v685 = vld [vmem:[%s199 + $0xe90] sm:$0xff]
                %686 = vst [vmem:[%s200 + $0x790] sm:$0xff] %v685
                %v687 = vld [vmem:[%s199 + $0xe98] sm:$0xff]
                %688 = vst [vmem:[%s200 + $0x798] sm:$0xff] %v687
                %v689 = vld [vmem:[%s199 + $0xea0] sm:$0xff]
                %690 = vst [vmem:[%s200 + $0x7a0] sm:$0xff] %v689
                %v691 = vld [vmem:[%s199 + $0xea8] sm:$0xff]
                %692 = vst [vmem:[%s200 + $0x7a8] sm:$0xff] %v691
                %v693 = vld [vmem:[%s199 + $0xeb0] sm:$0xff]
                %694 = vst [vmem:[%s200 + $0x7b0] sm:$0xff] %v693
                %v695 = vld [vmem:[%s199 + $0xeb8] sm:$0xff]
                %696 = vst [vmem:[%s200 + $0x7b8] sm:$0xff] %v695
                %v697 = vld [vmem:[%s199 + $0xec0] sm:$0xff]
                %698 = vst [vmem:[%s200 + $0x7c0] sm:$0xff] %v697
                %v699 = vld [vmem:[%s199 + $0xec8] sm:$0xff]
                %700 = vst [vmem:[%s200 + $0x7c8] sm:$0xff] %v699
                %v701 = vld [vmem:[%s199 + $0xed0] sm:$0xff]
                %702 = vst [vmem:[%s200 + $0x7d0] sm:$0xff] %v701
                %v703 = vld [vmem:[%s199 + $0xed8] sm:$0xff]
                %704 = vst [vmem:[%s200 + $0x7d8] sm:$0xff] %v703
                %v705 = vld [vmem:[%s199 + $0xee0] sm:$0xff]
                %706 = vst [vmem:[%s200 + $0x7e0] sm:$0xff] %v705
                %v707 = vld [vmem:[%s199 + $0xee8] sm:$0xff]
                %708 = vst [vmem:[%s200 + $0x7e8] sm:$0xff] %v707
                %v709 = vld [vmem:[%s199 + $0xef0] sm:$0xff]
                %710 = vst [vmem:[%s200 + $0x7f0] sm:$0xff] %v709
                %v711 = vld [vmem:[%s199 + $0xef8] sm:$0xff]
                %712 = vst [vmem:[%s200 + $0x7f8] sm:$0xff] %v711
                %v713 = vld [vmem:[%s199 + $0x1000] sm:$0xff]
                %714 = vst [vmem:[%s200 + $0x800] sm:$0xff] %v713
                %v715 = vld [vmem:[%s199 + $0x1008] sm:$0xff]
                %716 = vst [vmem:[%s200 + $0x808] sm:$0xff] %v715
                %v717 = vld [vmem:[%s199 + $0x1010] sm:$0xff]
                %718 = vst [vmem:[%s200 + $0x810] sm:$0xff] %v717
                %v719 = vld [vmem:[%s199 + $0x1018] sm:$0xff]
                %720 = vst [vmem:[%s200 + $0x818] sm:$0xff] %v719
                %v721 = vld [vmem:[%s199 + $0x1020] sm:$0xff]
                %722 = vst [vmem:[%s200 + $0x820] sm:$0xff] %v721
                %v723 = vld [vmem:[%s199 + $0x1028] sm:$0xff]
                %724 = vst [vmem:[%s200 + $0x828] sm:$0xff] %v723
                %v725 = vld [vmem:[%s199 + $0x1030] sm:$0xff]
                %726 = vst [vmem:[%s200 + $0x830] sm:$0xff] %v725
                %v727 = vld [vmem:[%s199 + $0x1038] sm:$0xff]
                %728 = vst [vmem:[%s200 + $0x838] sm:$0xff] %v727
                %v729 = vld [vmem:[%s199 + $0x1040] sm:$0xff]
                %730 = vst [vmem:[%s200 + $0x840] sm:$0xff] %v729
                %v731 = vld [vmem:[%s199 + $0x1048] sm:$0xff]
                %732 = vst [vmem:[%s200 + $0x848] sm:$0xff] %v731
                %v733 = vld [vmem:[%s199 + $0x1050] sm:$0xff]
                %734 = vst [vmem:[%s200 + $0x850] sm:$0xff] %v733
                %v735 = vld [vmem:[%s199 + $0x1058] sm:$0xff]
                %736 = vst [vmem:[%s200 + $0x858] sm:$0xff] %v735
                %v737 = vld [vmem:[%s199 + $0x1060] sm:$0xff]
                %738 = vst [vmem:[%s200 + $0x860] sm:$0xff] %v737
                %v739 = vld [vmem:[%s199 + $0x1068] sm:$0xff]
                %740 = vst [vmem:[%s200 + $0x868] sm:$0xff] %v739
                %v741 = vld [vmem:[%s199 + $0x1070] sm:$0xff]
                %742 = vst [vmem:[%s200 + $0x870] sm:$0xff] %v741
                %v743 = vld [vmem:[%s199 + $0x1078] sm:$0xff]
                %744 = vst [vmem:[%s200 + $0x878] sm:$0xff] %v743
                %v745 = vld [vmem:[%s199 + $0x1080] sm:$0xff]
                %746 = vst [vmem:[%s200 + $0x880] sm:$0xff] %v745
                %v747 = vld [vmem:[%s199 + $0x1088] sm:$0xff]
                %748 = vst [vmem:[%s200 + $0x888] sm:$0xff] %v747
                %v749 = vld [vmem:[%s199 + $0x1090] sm:$0xff]
                %750 = vst [vmem:[%s200 + $0x890] sm:$0xff] %v749
                %v751 = vld [vmem:[%s199 + $0x1098] sm:$0xff]
                %752 = vst [vmem:[%s200 + $0x898] sm:$0xff] %v751
                %v753 = vld [vmem:[%s199 + $0x10a0] sm:$0xff]
                %754 = vst [vmem:[%s200 + $0x8a0] sm:$0xff] %v753
                %v755 = vld [vmem:[%s199 + $0x10a8] sm:$0xff]
                %756 = vst [vmem:[%s200 + $0x8a8] sm:$0xff] %v755
                %v757 = vld [vmem:[%s199 + $0x10b0] sm:$0xff]
                %758 = vst [vmem:[%s200 + $0x8b0] sm:$0xff] %v757
                %v759 = vld [vmem:[%s199 + $0x10b8] sm:$0xff]
                %760 = vst [vmem:[%s200 + $0x8b8] sm:$0xff] %v759
                %v761 = vld [vmem:[%s199 + $0x10c0] sm:$0xff]
                %762 = vst [vmem:[%s200 + $0x8c0] sm:$0xff] %v761
                %v763 = vld [vmem:[%s199 + $0x10c8] sm:$0xff]
                %764 = vst [vmem:[%s200 + $0x8c8] sm:$0xff] %v763
                %v765 = vld [vmem:[%s199 + $0x10d0] sm:$0xff]
                %766 = vst [vmem:[%s200 + $0x8d0] sm:$0xff] %v765
                %v767 = vld [vmem:[%s199 + $0x10d8] sm:$0xff]
                %768 = vst [vmem:[%s200 + $0x8d8] sm:$0xff] %v767
                %v769 = vld [vmem:[%s199 + $0x10e0] sm:$0xff]
                %770 = vst [vmem:[%s200 + $0x8e0] sm:$0xff] %v769
                %v771 = vld [vmem:[%s199 + $0x10e8] sm:$0xff]
                %772 = vst [vmem:[%s200 + $0x8e8] sm:$0xff] %v771
                %v773 = vld [vmem:[%s199 + $0x10f0] sm:$0xff]
                %774 = vst [vmem:[%s200 + $0x8f0] sm:$0xff] %v773
                %v775 = vld [vmem:[%s199 + $0x10f8] sm:$0xff]
                %776 = vst [vmem:[%s200 + $0x8f8] sm:$0xff] %v775
              $region49: #{tpu_custom_call.1} parent=43 // loop_footer
                %s198 = sadd.s32 1, %s194
              $region50: #{tpu_custom_call.1} parent=43 // loop_footer_branch
                %193 = sbr.rel target = $region46
              $region51: #{tpu_custom_call.1} parent=43 // loop_exit
                _
            $region44: #{tpu_custom_call.1} parent=39 // pred_fallthru
              _
            // Predicated region
            $region52: #{tpu_custom_call.1} parent=39 // pred_check
              _
            $region53: #{tpu_custom_call.1} parent=39 // pred_check_branch
              %778 = sbr.rel target = $region55
            $region54: #{tpu_custom_call.1} parent=39 // pred_region
              _
            $region55: #{tpu_custom_call.1} parent=39 // pred_fallthru
              _
          $region40: #{tpu_custom_call.1} parent=35 // pred_fallthru
            _
          %779 = vnop
        $region36: #{tpu_custom_call.1} parent=31 // pred_fallthru
          _
      $region32: #{tpu_custom_call.1} parent=5 // pred_fallthru
        _
      %p780 = scmp.le.s32.totalorder 1, %s11
      %p781 = scmp.lt.s32.totalorder %s11, 3
      %p782 = pnand %p780, %p781
      %p783 = pneg %p782
      // Predicated region
      $region56: #{tpu_custom_call.1} parent=5 // pred_check
        _
      $region57: #{tpu_custom_call.1} parent=5 // pred_check_branch
        %785 = sbr.rel (%p782) target = $region59
      $region58: #{tpu_custom_call.1} parent=5 // pred_region
        %s786 = ssub.s32 %s11, 1
        %s787 = sand.u32 %s24, 1
        %s788 = sand.u32 %s24, 1
        %s789 = smul.addr %s788, 2304
        %s790 = scalar_lea.vmem [#allocation2], %s789
        // Predicated region
        $region60: #{tpu_custom_call.1} parent=58 // pred_check
          %p791 = pneg %p37
        $region61: #{tpu_custom_call.1} parent=58 // pred_check_branch
          %793 = sbr.rel (%p791) target = $region63
        $region62: #{tpu_custom_call.1} parent=58 // pred_region
          _
        $region63: #{tpu_custom_call.1} parent=58 // pred_fallthru
          _
        %s794 = sand.u32 %s24, 1
        %s795 = sand.u32 %s24, 1
        %s796 = smul.addr %s795, 2304
        %s797 = scalar_lea.vmem [#allocation2], %s796
        %p798 = pneg %p37
        %p799 = pneg %p34
        %p800 = pneg %p58
        %p801 = pneg %p55
        %p802 = pneg %p79
        %p803 = pneg %p76
        %p804 = pneg %p100
        %p805 = pneg %p97
        %p806 = pneg %p121
        %p807 = pneg %p118
        %p808 = pneg %p147
        %p809 = pneg %p144
        %s810 = smul.u32 16, %s16
        %p811 = scmp.lt.s32.totalorder %s810, 31
        %s812 = scalar_select %p811, %s810, 31
        %s813 = smul.addr %s812, 8
        %s814 = scalar_lea.vmem %s5, %s813
        %s815 = smul.u32 16, %s16
        %s816 = smul.u32 16, %s16
        %p817 = scmp.lt.s32.totalorder %s816, 31
        %s818 = scalar_select %p817, %s816, 31
        %s819 = smul.addr %s818, 8
        %s820 = scalar_lea.vmem %s5, %s819
        %s821 = smul.u32 16, %s16
        %v822 = vld [vmem:[%s790] sm:$0xff]
        %v823 = vld [vmem:[%s790 + $0x8] sm:$0xff]
        %v824 = vld [vmem:[%s790 + $0x10] sm:$0xff]
        %v825 = vld [vmem:[%s790 + $0x18] sm:$0xff]
        %v826 = vld [vmem:[%s790 + $0x20] sm:$0xff]
        %v827 = vld [vmem:[%s790 + $0x28] sm:$0xff]
        %v828 = vld [vmem:[%s790 + $0x30] sm:$0xff]
        %v829 = vld [vmem:[%s790 + $0x38] sm:$0xff]
        %v830 = vld [vmem:[%s790 + $0x40] sm:$0xff]
        %v831 = vld [vmem:[%s790 + $0x48] sm:$0xff]
        %v832 = vld [vmem:[%s790 + $0x50] sm:$0xff]
        %v833 = vld [vmem:[%s790 + $0x58] sm:$0xff]
        %v834 = vld [vmem:[%s790 + $0x60] sm:$0xff]
        %v835 = vld [vmem:[%s790 + $0x68] sm:$0xff]
        %v836 = vld [vmem:[%s790 + $0x70] sm:$0xff]
        %v837 = vld [vmem:[%s790 + $0x78] sm:$0xff]
        %v838 = vld [vmem:[%s790 + $0x80] sm:$0xff]
        %v839 = vld [vmem:[%s790 + $0x88] sm:$0xff]
        %v840 = vld [vmem:[%s790 + $0x90] sm:$0xff]
        %v841 = vld [vmem:[%s790 + $0x98] sm:$0xff]
        %v842 = vld [vmem:[%s790 + $0xa0] sm:$0xff]
        %v843 = vld [vmem:[%s790 + $0xa8] sm:$0xff]
        %v844 = vld [vmem:[%s790 + $0xb0] sm:$0xff]
        %v845 = vld [vmem:[%s790 + $0xb8] sm:$0xff]
        %v846 = vld [vmem:[%s790 + $0xc0] sm:$0xff]
        %v847 = vld [vmem:[%s790 + $0xc8] sm:$0xff]
        %v848 = vld [vmem:[%s790 + $0xd0] sm:$0xff]
        %v849 = vld [vmem:[%s790 + $0xd8] sm:$0xff]
        %v850 = vld [vmem:[%s790 + $0xe0] sm:$0xff]
        %v851 = vld [vmem:[%s790 + $0xe8] sm:$0xff]
        %v852 = vld [vmem:[%s790 + $0xf0] sm:$0xff]
        %v853 = vld [vmem:[%s790 + $0xf8] sm:$0xff]
        %v854 = vld [vmem:[%s790 + $0x100] sm:$0xff]
        %v855 = vld [vmem:[%s790 + $0x108] sm:$0xff]
        %v856 = vld [vmem:[%s790 + $0x110] sm:$0xff]
        %v857 = vld [vmem:[%s790 + $0x118] sm:$0xff]
        %v858 = vld [vmem:[%s790 + $0x120] sm:$0xff]
        %v859 = vld [vmem:[%s790 + $0x128] sm:$0xff]
        %v860 = vld [vmem:[%s790 + $0x130] sm:$0xff]
        %v861 = vld [vmem:[%s790 + $0x138] sm:$0xff]
        %v862 = vld [vmem:[%s790 + $0x140] sm:$0xff]
        %v863 = vld [vmem:[%s790 + $0x148] sm:$0xff]
        %v864 = vld [vmem:[%s790 + $0x150] sm:$0xff]
        %v865 = vld [vmem:[%s790 + $0x158] sm:$0xff]
        %v866 = vld [vmem:[%s790 + $0x160] sm:$0xff]
        %v867 = vld [vmem:[%s790 + $0x168] sm:$0xff]
        %v868 = vld [vmem:[%s790 + $0x170] sm:$0xff]
        %v869 = vld [vmem:[%s790 + $0x178] sm:$0xff]
        %v870 = vld [vmem:[%s790 + $0x180] sm:$0xff]
        %v871 = vld [vmem:[%s790 + $0x188] sm:$0xff]
        %v872 = vld [vmem:[%s790 + $0x190] sm:$0xff]
        %v873 = vld [vmem:[%s790 + $0x198] sm:$0xff]
        %v874 = vld [vmem:[%s790 + $0x1a0] sm:$0xff]
        %v875 = vld [vmem:[%s790 + $0x1a8] sm:$0xff]
        %v876 = vld [vmem:[%s790 + $0x1b0] sm:$0xff]
        %v877 = vld [vmem:[%s790 + $0x1b8] sm:$0xff]
        %v878 = vld [vmem:[%s790 + $0x1c0] sm:$0xff]
        %v879 = vld [vmem:[%s790 + $0x1c8] sm:$0xff]
        %v880 = vld [vmem:[%s790 + $0x1d0] sm:$0xff]
        %v881 = vld [vmem:[%s790 + $0x1d8] sm:$0xff]
        %v882 = vld [vmem:[%s790 + $0x1e0] sm:$0xff]
        %v883 = vld [vmem:[%s790 + $0x1e8] sm:$0xff]
        %v884 = vld [vmem:[%s790 + $0x1f0] sm:$0xff]
        %v885 = vld [vmem:[%s790 + $0x1f8] sm:$0xff]
        %v886 = vld [vmem:[%s790 + $0x200] sm:$0xff]
        %v887 = vld [vmem:[%s790 + $0x208] sm:$0xff]
        %v888 = vld [vmem:[%s790 + $0x210] sm:$0xff]
        %v889 = vld [vmem:[%s790 + $0x218] sm:$0xff]
        %v890 = vld [vmem:[%s790 + $0x220] sm:$0xff]
        %v891 = vld [vmem:[%s790 + $0x228] sm:$0xff]
        %v892 = vld [vmem:[%s790 + $0x230] sm:$0xff]
        %v893 = vld [vmem:[%s790 + $0x238] sm:$0xff]
        %v894 = vld [vmem:[%s790 + $0x240] sm:$0xff]
        %v895 = vld [vmem:[%s790 + $0x248] sm:$0xff]
        %v896 = vld [vmem:[%s790 + $0x250] sm:$0xff]
        %v897 = vld [vmem:[%s790 + $0x258] sm:$0xff]
        %v898 = vld [vmem:[%s790 + $0x260] sm:$0xff]
        %v899 = vld [vmem:[%s790 + $0x268] sm:$0xff]
        %v900 = vld [vmem:[%s790 + $0x270] sm:$0xff]
        %v901 = vld [vmem:[%s790 + $0x278] sm:$0xff]
        %v902 = vld [vmem:[%s790 + $0x280] sm:$0xff]
        %v903 = vld [vmem:[%s790 + $0x288] sm:$0xff]
        %v904 = vld [vmem:[%s790 + $0x290] sm:$0xff]
        %v905 = vld [vmem:[%s790 + $0x298] sm:$0xff]
        %v906 = vld [vmem:[%s790 + $0x2a0] sm:$0xff]
        %v907 = vld [vmem:[%s790 + $0x2a8] sm:$0xff]
        %v908 = vld [vmem:[%s790 + $0x2b0] sm:$0xff]
        %v909 = vld [vmem:[%s790 + $0x2b8] sm:$0xff]
        %v910 = vld [vmem:[%s790 + $0x2c0] sm:$0xff]
        %v911 = vld [vmem:[%s790 + $0x2c8] sm:$0xff]
        %v912 = vld [vmem:[%s790 + $0x2d0] sm:$0xff]
        %v913 = vld [vmem:[%s790 + $0x2d8] sm:$0xff]
        %v914 = vld [vmem:[%s790 + $0x2e0] sm:$0xff]
        %v915 = vld [vmem:[%s790 + $0x2e8] sm:$0xff]
        %v916 = vld [vmem:[%s790 + $0x2f0] sm:$0xff]
        %v917 = vld [vmem:[%s790 + $0x2f8] sm:$0xff]
        %v918 = vld [vmem:[%s790 + $0x300] sm:$0xff]
        %v919 = vld [vmem:[%s790 + $0x308] sm:$0xff]
        %v920 = vld [vmem:[%s790 + $0x310] sm:$0xff]
        %v921 = vld [vmem:[%s790 + $0x318] sm:$0xff]
        %v922 = vld [vmem:[%s790 + $0x320] sm:$0xff]
        %v923 = vld [vmem:[%s790 + $0x328] sm:$0xff]
        %v924 = vld [vmem:[%s790 + $0x330] sm:$0xff]
        %v925 = vld [vmem:[%s790 + $0x338] sm:$0xff]
        %v926 = vld [vmem:[%s790 + $0x340] sm:$0xff]
        %v927 = vld [vmem:[%s790 + $0x348] sm:$0xff]
        %v928 = vld [vmem:[%s790 + $0x350] sm:$0xff]
        %v929 = vld [vmem:[%s790 + $0x358] sm:$0xff]
        %v930 = vld [vmem:[%s790 + $0x360] sm:$0xff]
        %v931 = vld [vmem:[%s790 + $0x368] sm:$0xff]
        %v932 = vld [vmem:[%s790 + $0x370] sm:$0xff]
        %v933 = vld [vmem:[%s790 + $0x378] sm:$0xff]
        %v934 = vld [vmem:[%s790 + $0x380] sm:$0xff]
        %v935 = vld [vmem:[%s790 + $0x388] sm:$0xff]
        %v936 = vld [vmem:[%s790 + $0x390] sm:$0xff]
        %v937 = vld [vmem:[%s790 + $0x398] sm:$0xff]
        %v938 = vld [vmem:[%s790 + $0x3a0] sm:$0xff]
        %v939 = vld [vmem:[%s790 + $0x3a8] sm:$0xff]
        %v940 = vld [vmem:[%s790 + $0x3b0] sm:$0xff]
        %v941 = vld [vmem:[%s790 + $0x3b8] sm:$0xff]
        %v942 = vld [vmem:[%s790 + $0x3c0] sm:$0xff]
        %v943 = vld [vmem:[%s790 + $0x3c8] sm:$0xff]
        %v944 = vld [vmem:[%s790 + $0x3d0] sm:$0xff]
        %v945 = vld [vmem:[%s790 + $0x3d8] sm:$0xff]
        %v946 = vld [vmem:[%s790 + $0x3e0] sm:$0xff]
        %v947 = vld [vmem:[%s790 + $0x3e8] sm:$0xff]
        %v948 = vld [vmem:[%s790 + $0x3f0] sm:$0xff]
        %v949 = vld [vmem:[%s790 + $0x3f8] sm:$0xff]
        %v950 = vld [vmem:[%s790 + $0x400] sm:$0xff]
        %v951 = vld [vmem:[%s790 + $0x408] sm:$0xff]
        %v952 = vld [vmem:[%s790 + $0x410] sm:$0xff]
        %v953 = vld [vmem:[%s790 + $0x418] sm:$0xff]
        %v954 = vld [vmem:[%s790 + $0x420] sm:$0xff]
        %v955 = vld [vmem:[%s790 + $0x428] sm:$0xff]
        %v956 = vld [vmem:[%s790 + $0x430] sm:$0xff]
        %v957 = vld [vmem:[%s790 + $0x438] sm:$0xff]
        %v958 = vld [vmem:[%s790 + $0x440] sm:$0xff]
        %v959 = vld [vmem:[%s790 + $0x448] sm:$0xff]
        %v960 = vld [vmem:[%s790 + $0x450] sm:$0xff]
        %v961 = vld [vmem:[%s790 + $0x458] sm:$0xff]
        %v962 = vld [vmem:[%s790 + $0x460] sm:$0xff]
        %v963 = vld [vmem:[%s790 + $0x468] sm:$0xff]
        %v964 = vld [vmem:[%s790 + $0x470] sm:$0xff]
        %v965 = vld [vmem:[%s790 + $0x478] sm:$0xff]
        %v966 = vld [vmem:[%s790 + $0x480] sm:$0xff]
        %v967 = vld [vmem:[%s790 + $0x488] sm:$0xff]
        %v968 = vld [vmem:[%s790 + $0x490] sm:$0xff]
        %v969 = vld [vmem:[%s790 + $0x498] sm:$0xff]
        %v970 = vld [vmem:[%s790 + $0x4a0] sm:$0xff]
        %v971 = vld [vmem:[%s790 + $0x4a8] sm:$0xff]
        %v972 = vld [vmem:[%s790 + $0x4b0] sm:$0xff]
        %v973 = vld [vmem:[%s790 + $0x4b8] sm:$0xff]
        %v974 = vld [vmem:[%s790 + $0x4c0] sm:$0xff]
        %v975 = vld [vmem:[%s790 + $0x4c8] sm:$0xff]
        %v976 = vld [vmem:[%s790 + $0x4d0] sm:$0xff]
        %v977 = vld [vmem:[%s790 + $0x4d8] sm:$0xff]
        %v978 = vld [vmem:[%s790 + $0x4e0] sm:$0xff]
        %v979 = vld [vmem:[%s790 + $0x4e8] sm:$0xff]
        %v980 = vld [vmem:[%s790 + $0x4f0] sm:$0xff]
        %v981 = vld [vmem:[%s790 + $0x4f8] sm:$0xff]
        %v982 = vld [vmem:[%s790 + $0x500] sm:$0xff]
        %v983 = vld [vmem:[%s790 + $0x508] sm:$0xff]
        %v984 = vld [vmem:[%s790 + $0x510] sm:$0xff]
        %v985 = vld [vmem:[%s790 + $0x518] sm:$0xff]
        %v986 = vld [vmem:[%s790 + $0x520] sm:$0xff]
        %v987 = vld [vmem:[%s790 + $0x528] sm:$0xff]
        %v988 = vld [vmem:[%s790 + $0x530] sm:$0xff]
        %v989 = vld [vmem:[%s790 + $0x538] sm:$0xff]
        %v990 = vld [vmem:[%s790 + $0x540] sm:$0xff]
        %v991 = vld [vmem:[%s790 + $0x548] sm:$0xff]
        %v992 = vld [vmem:[%s790 + $0x550] sm:$0xff]
        %v993 = vld [vmem:[%s790 + $0x558] sm:$0xff]
        %v994 = vld [vmem:[%s790 + $0x560] sm:$0xff]
        %v995 = vld [vmem:[%s790 + $0x568] sm:$0xff]
        %v996 = vld [vmem:[%s790 + $0x570] sm:$0xff]
        %v997 = vld [vmem:[%s790 + $0x578] sm:$0xff]
        %v998 = vld [vmem:[%s790 + $0x580] sm:$0xff]
        %v999 = vld [vmem:[%s790 + $0x588] sm:$0xff]
        %v1000 = vld [vmem:[%s790 + $0x590] sm:$0xff]
        %v1001 = vld [vmem:[%s790 + $0x598] sm:$0xff]
        %v1002 = vld [vmem:[%s790 + $0x5a0] sm:$0xff]
        %v1003 = vld [vmem:[%s790 + $0x5a8] sm:$0xff]
        %v1004 = vld [vmem:[%s790 + $0x5b0] sm:$0xff]
        %v1005 = vld [vmem:[%s790 + $0x5b8] sm:$0xff]
        %v1006 = vld [vmem:[%s790 + $0x5c0] sm:$0xff]
        %v1007 = vld [vmem:[%s790 + $0x5c8] sm:$0xff]
        %v1008 = vld [vmem:[%s790 + $0x5d0] sm:$0xff]
        %v1009 = vld [vmem:[%s790 + $0x5d8] sm:$0xff]
        %v1010 = vld [vmem:[%s790 + $0x5e0] sm:$0xff]
        %v1011 = vld [vmem:[%s790 + $0x5e8] sm:$0xff]
        %v1012 = vld [vmem:[%s790 + $0x5f0] sm:$0xff]
        %v1013 = vld [vmem:[%s790 + $0x5f8] sm:$0xff]
        %v1014 = vld [vmem:[%s790 + $0x600] sm:$0xff]
        %v1015 = vld [vmem:[%s790 + $0x608] sm:$0xff]
        %v1016 = vld [vmem:[%s790 + $0x610] sm:$0xff]
        %v1017 = vld [vmem:[%s790 + $0x618] sm:$0xff]
        %v1018 = vld [vmem:[%s790 + $0x620] sm:$0xff]
        %v1019 = vld [vmem:[%s790 + $0x628] sm:$0xff]
        %v1020 = vld [vmem:[%s790 + $0x630] sm:$0xff]
        %v1021 = vld [vmem:[%s790 + $0x638] sm:$0xff]
        %v1022 = vld [vmem:[%s790 + $0x640] sm:$0xff]
        %v1023 = vld [vmem:[%s790 + $0x648] sm:$0xff]
        %v1024 = vld [vmem:[%s790 + $0x650] sm:$0xff]
        %v1025 = vld [vmem:[%s790 + $0x658] sm:$0xff]
        %v1026 = vld [vmem:[%s790 + $0x660] sm:$0xff]
        %v1027 = vld [vmem:[%s790 + $0x668] sm:$0xff]
        %v1028 = vld [vmem:[%s790 + $0x670] sm:$0xff]
        %v1029 = vld [vmem:[%s790 + $0x678] sm:$0xff]
        %v1030 = vld [vmem:[%s790 + $0x680] sm:$0xff]
        %v1031 = vld [vmem:[%s790 + $0x688] sm:$0xff]
        %v1032 = vld [vmem:[%s790 + $0x690] sm:$0xff]
        %v1033 = vld [vmem:[%s790 + $0x698] sm:$0xff]
        %v1034 = vld [vmem:[%s790 + $0x6a0] sm:$0xff]
        %v1035 = vld [vmem:[%s790 + $0x6a8] sm:$0xff]
        %v1036 = vld [vmem:[%s790 + $0x6b0] sm:$0xff]
        %v1037 = vld [vmem:[%s790 + $0x6b8] sm:$0xff]
        %v1038 = vld [vmem:[%s790 + $0x6c0] sm:$0xff]
        %v1039 = vld [vmem:[%s790 + $0x6c8] sm:$0xff]
        %v1040 = vld [vmem:[%s790 + $0x6d0] sm:$0xff]
        %v1041 = vld [vmem:[%s790 + $0x6d8] sm:$0xff]
        %v1042 = vld [vmem:[%s790 + $0x6e0] sm:$0xff]
        %v1043 = vld [vmem:[%s790 + $0x6e8] sm:$0xff]
        %v1044 = vld [vmem:[%s790 + $0x6f0] sm:$0xff]
        %v1045 = vld [vmem:[%s790 + $0x6f8] sm:$0xff]
        %v1046 = vld [vmem:[%s790 + $0x700] sm:$0xff]
        %v1047 = vld [vmem:[%s790 + $0x708] sm:$0xff]
        %v1048 = vld [vmem:[%s790 + $0x710] sm:$0xff]
        %v1049 = vld [vmem:[%s790 + $0x718] sm:$0xff]
        %v1050 = vld [vmem:[%s790 + $0x720] sm:$0xff]
        %v1051 = vld [vmem:[%s790 + $0x728] sm:$0xff]
        %v1052 = vld [vmem:[%s790 + $0x730] sm:$0xff]
        %v1053 = vld [vmem:[%s790 + $0x738] sm:$0xff]
        %v1054 = vld [vmem:[%s790 + $0x740] sm:$0xff]
        %v1055 = vld [vmem:[%s790 + $0x748] sm:$0xff]
        %v1056 = vld [vmem:[%s790 + $0x750] sm:$0xff]
        %v1057 = vld [vmem:[%s790 + $0x758] sm:$0xff]
        %v1058 = vld [vmem:[%s790 + $0x760] sm:$0xff]
        %v1059 = vld [vmem:[%s790 + $0x768] sm:$0xff]
        %v1060 = vld [vmem:[%s790 + $0x770] sm:$0xff]
        %v1061 = vld [vmem:[%s790 + $0x778] sm:$0xff]
        %v1062 = vld [vmem:[%s790 + $0x780] sm:$0xff]
        %v1063 = vld [vmem:[%s790 + $0x788] sm:$0xff]
        %v1064 = vld [vmem:[%s790 + $0x790] sm:$0xff]
        %v1065 = vld [vmem:[%s790 + $0x798] sm:$0xff]
        %v1066 = vld [vmem:[%s790 + $0x7a0] sm:$0xff]
        %v1067 = vld [vmem:[%s790 + $0x7a8] sm:$0xff]
        %v1068 = vld [vmem:[%s790 + $0x7b0] sm:$0xff]
        %v1069 = vld [vmem:[%s790 + $0x7b8] sm:$0xff]
        %v1070 = vld [vmem:[%s790 + $0x7c0] sm:$0xff]
        %v1071 = vld [vmem:[%s790 + $0x7c8] sm:$0xff]
        %v1072 = vld [vmem:[%s790 + $0x7d0] sm:$0xff]
        %v1073 = vld [vmem:[%s790 + $0x7d8] sm:$0xff]
        %v1074 = vld [vmem:[%s790 + $0x7e0] sm:$0xff]
        %v1075 = vld [vmem:[%s790 + $0x7e8] sm:$0xff]
        %v1076 = vld [vmem:[%s790 + $0x7f0] sm:$0xff]
        %v1077 = vld [vmem:[%s790 + $0x7f8] sm:$0xff]
        %v1078 = vld [vmem:[%s790 + $0x800] sm:$0xff]
        %v1079 = vld [vmem:[%s790 + $0x808] sm:$0xff]
        %v1080 = vld [vmem:[%s790 + $0x810] sm:$0xff]
        %v1081 = vld [vmem:[%s790 + $0x818] sm:$0xff]
        %v1082 = vld [vmem:[%s790 + $0x820] sm:$0xff]
        %v1083 = vld [vmem:[%s790 + $0x828] sm:$0xff]
        %v1084 = vld [vmem:[%s790 + $0x830] sm:$0xff]
        %v1085 = vld [vmem:[%s790 + $0x838] sm:$0xff]
        %v1086 = vld [vmem:[%s790 + $0x840] sm:$0xff]
        %v1087 = vld [vmem:[%s790 + $0x848] sm:$0xff]
        %v1088 = vld [vmem:[%s790 + $0x850] sm:$0xff]
        %v1089 = vld [vmem:[%s790 + $0x858] sm:$0xff]
        %v1090 = vld [vmem:[%s790 + $0x860] sm:$0xff]
        %v1091 = vld [vmem:[%s790 + $0x868] sm:$0xff]
        %v1092 = vld [vmem:[%s790 + $0x870] sm:$0xff]
        %v1093 = vld [vmem:[%s790 + $0x878] sm:$0xff]
        %v1094 = vld [vmem:[%s790 + $0x880] sm:$0xff]
        %v1095 = vld [vmem:[%s790 + $0x888] sm:$0xff]
        %v1096 = vld [vmem:[%s790 + $0x890] sm:$0xff]
        %v1097 = vld [vmem:[%s790 + $0x898] sm:$0xff]
        %v1098 = vld [vmem:[%s790 + $0x8a0] sm:$0xff]
        %v1099 = vld [vmem:[%s790 + $0x8a8] sm:$0xff]
        %v1100 = vld [vmem:[%s790 + $0x8b0] sm:$0xff]
        %v1101 = vld [vmem:[%s790 + $0x8b8] sm:$0xff]
        %v1102 = vld [vmem:[%s790 + $0x8c0] sm:$0xff]
        %v1103 = vld [vmem:[%s790 + $0x8c8] sm:$0xff]
        %v1104 = vld [vmem:[%s790 + $0x8d0] sm:$0xff]
        %v1105 = vld [vmem:[%s790 + $0x8d8] sm:$0xff]
        %v1106 = vld [vmem:[%s790 + $0x8e0] sm:$0xff]
        %v1107 = vld [vmem:[%s790 + $0x8e8] sm:$0xff]
        %v1108 = vld [vmem:[%s790 + $0x8f0] sm:$0xff]
        %v1109 = vld [vmem:[%s790 + $0x8f8] sm:$0xff]
        %v1110 = vld [vmem:[%s1] sm:$0xff]
        %v1111 = vld [vmem:[%s1 + $0x8] sm:$0xff]
        %v1112 = vld [vmem:[%s1 + $0x10] sm:$0xff]
        %v1113 = vld [vmem:[%s1 + $0x18] sm:$0xff]
        %v1114 = vld [vmem:[%s1 + $0x20] sm:$0xff]
        %v1115 = vld [vmem:[%s1 + $0x28] sm:$0xff]
        %v1116 = vld [vmem:[%s1 + $0x30] sm:$0xff]
        %v1117 = vld [vmem:[%s1 + $0x38] sm:$0xff]
        %v1118 = vld [vmem:[%s1 + $0x40] sm:$0xff]
        %v1119 = vld [vmem:[%s1 + $0x48] sm:$0xff]
        %v1120 = vld [vmem:[%s1 + $0x50] sm:$0xff]
        %v1121 = vld [vmem:[%s1 + $0x58] sm:$0xff]
        %v1122 = vld [vmem:[%s1 + $0x60] sm:$0xff]
        %v1123 = vld [vmem:[%s1 + $0x68] sm:$0xff]
        %v1124 = vld [vmem:[%s1 + $0x70] sm:$0xff]
        %v1125 = vld [vmem:[%s1 + $0x78] sm:$0xff]
        %v1126 = vld [vmem:[%s1 + $0x80] sm:$0xff]
        %v1127 = vld [vmem:[%s1 + $0x88] sm:$0xff]
        %vm1128 = vcmask 130048
        %v1130 = vsel %vm1128, %v823, 0
        %v1133 = vsel %vm1128, %v825, 0
        %v1136 = vsel %vm1128, %v827, 0
        %v1139 = vsel %vm1128, %v829, 0
        %v1142 = vsel %vm1128, %v831, 0
        %v1145 = vsel %vm1128, %v833, 0
        %v1148 = vsel %vm1128, %v835, 0
        %v1151 = vsel %vm1128, %v837, 0
        %v1154 = vsel %vm1128, %v839, 0
        %v1157 = vsel %vm1128, %v841, 0
        %v1160 = vsel %vm1128, %v843, 0
        %v1163 = vsel %vm1128, %v845, 0
        %v1166 = vsel %vm1128, %v847, 0
        %v1169 = vsel %vm1128, %v849, 0
        %v1172 = vsel %vm1128, %v851, 0
        %v1175 = vsel %vm1128, %v853, 0
        %v1178 = vsel %vm1128, %v855, 0
        %v1181 = vsel %vm1128, %v857, 0
        %v1184 = vsel %vm1128, %v859, 0
        %v1187 = vsel %vm1128, %v861, 0
        %v1190 = vsel %vm1128, %v863, 0
        %v1193 = vsel %vm1128, %v865, 0
        %v1196 = vsel %vm1128, %v867, 0
        %v1199 = vsel %vm1128, %v869, 0
        %v1202 = vsel %vm1128, %v871, 0
        %v1205 = vsel %vm1128, %v873, 0
        %v1208 = vsel %vm1128, %v875, 0
        %v1211 = vsel %vm1128, %v877, 0
        %v1214 = vsel %vm1128, %v879, 0
        %v1217 = vsel %vm1128, %v881, 0
        %v1220 = vsel %vm1128, %v883, 0
        %v1223 = vsel %vm1128, %v885, 0
        %v1226 = vsel %vm1128, %v887, 0
        %v1229 = vsel %vm1128, %v889, 0
        %v1232 = vsel %vm1128, %v891, 0
        %v1235 = vsel %vm1128, %v893, 0
        %v1238 = vsel %vm1128, %v895, 0
        %v1241 = vsel %vm1128, %v897, 0
        %v1244 = vsel %vm1128, %v899, 0
        %v1247 = vsel %vm1128, %v901, 0
        %v1250 = vsel %vm1128, %v903, 0
        %v1253 = vsel %vm1128, %v905, 0
        %v1256 = vsel %vm1128, %v907, 0
        %v1259 = vsel %vm1128, %v909, 0
        %v1262 = vsel %vm1128, %v911, 0
        %v1265 = vsel %vm1128, %v913, 0
        %v1268 = vsel %vm1128, %v915, 0
        %v1271 = vsel %vm1128, %v917, 0
        %v1274 = vsel %vm1128, %v919, 0
        %v1277 = vsel %vm1128, %v921, 0
        %v1280 = vsel %vm1128, %v923, 0
        %v1283 = vsel %vm1128, %v925, 0
        %v1286 = vsel %vm1128, %v927, 0
        %v1289 = vsel %vm1128, %v929, 0
        %v1292 = vsel %vm1128, %v931, 0
        %v1295 = vsel %vm1128, %v933, 0
        %v1298 = vsel %vm1128, %v935, 0
        %v1301 = vsel %vm1128, %v937, 0
        %v1304 = vsel %vm1128, %v939, 0
        %v1307 = vsel %vm1128, %v941, 0
        %v1310 = vsel %vm1128, %v943, 0
        %v1313 = vsel %vm1128, %v945, 0
        %v1316 = vsel %vm1128, %v947, 0
        %v1319 = vsel %vm1128, %v949, 0
        %v1322 = vsel %vm1128, %v951, 0
        %v1325 = vsel %vm1128, %v953, 0
        %v1328 = vsel %vm1128, %v955, 0
        %v1331 = vsel %vm1128, %v957, 0
        %v1334 = vsel %vm1128, %v959, 0
        %v1337 = vsel %vm1128, %v961, 0
        %v1340 = vsel %vm1128, %v963, 0
        %v1343 = vsel %vm1128, %v965, 0
        %v1346 = vsel %vm1128, %v967, 0
        %v1349 = vsel %vm1128, %v969, 0
        %v1352 = vsel %vm1128, %v971, 0
        %v1355 = vsel %vm1128, %v973, 0
        %v1358 = vsel %vm1128, %v975, 0
        %v1361 = vsel %vm1128, %v977, 0
        %v1364 = vsel %vm1128, %v979, 0
        %v1367 = vsel %vm1128, %v981, 0
        %v1370 = vsel %vm1128, %v983, 0
        %v1373 = vsel %vm1128, %v985, 0
        %v1376 = vsel %vm1128, %v987, 0
        %v1379 = vsel %vm1128, %v989, 0
        %v1382 = vsel %vm1128, %v991, 0
        %v1385 = vsel %vm1128, %v993, 0
        %v1388 = vsel %vm1128, %v995, 0
        %v1391 = vsel %vm1128, %v997, 0
        %v1394 = vsel %vm1128, %v999, 0
        %v1397 = vsel %vm1128, %v1001, 0
        %v1400 = vsel %vm1128, %v1003, 0
        %v1403 = vsel %vm1128, %v1005, 0
        %v1406 = vsel %vm1128, %v1007, 0
        %v1409 = vsel %vm1128, %v1009, 0
        %v1412 = vsel %vm1128, %v1011, 0
        %v1415 = vsel %vm1128, %v1013, 0
        %v1418 = vsel %vm1128, %v1015, 0
        %v1421 = vsel %vm1128, %v1017, 0
        %v1424 = vsel %vm1128, %v1019, 0
        %v1427 = vsel %vm1128, %v1021, 0
        %v1430 = vsel %vm1128, %v1023, 0
        %v1433 = vsel %vm1128, %v1025, 0
        %v1436 = vsel %vm1128, %v1027, 0
        %v1439 = vsel %vm1128, %v1029, 0
        %v1442 = vsel %vm1128, %v1031, 0
        %v1445 = vsel %vm1128, %v1033, 0
        %v1448 = vsel %vm1128, %v1035, 0
        %v1451 = vsel %vm1128, %v1037, 0
        %v1454 = vsel %vm1128, %v1039, 0
        %v1457 = vsel %vm1128, %v1041, 0
        %v1460 = vsel %vm1128, %v1043, 0
        %v1463 = vsel %vm1128, %v1045, 0
        %v1466 = vsel %vm1128, %v1047, 0
        %v1469 = vsel %vm1128, %v1049, 0
        %v1472 = vsel %vm1128, %v1051, 0
        %v1475 = vsel %vm1128, %v1053, 0
        %v1478 = vsel %vm1128, %v1055, 0
        %v1481 = vsel %vm1128, %v1057, 0
        %v1484 = vsel %vm1128, %v1059, 0
        %v1487 = vsel %vm1128, %v1061, 0
        %v1490 = vsel %vm1128, %v1063, 0
        %v1493 = vsel %vm1128, %v1065, 0
        %v1496 = vsel %vm1128, %v1067, 0
        %v1499 = vsel %vm1128, %v1069, 0
        %v1502 = vsel %vm1128, %v1071, 0
        %v1505 = vsel %vm1128, %v1073, 0
        %v1508 = vsel %vm1128, %v1075, 0
        %v1511 = vsel %vm1128, %v1077, 0
        %v1514 = vsel %vm1128, %v1079, 0
        %v1517 = vsel %vm1128, %v1081, 0
        %v1520 = vsel %vm1128, %v1083, 0
        %v1523 = vsel %vm1128, %v1085, 0
        %v1526 = vsel %vm1128, %v1087, 0
        %v1529 = vsel %vm1128, %v1089, 0
        %v1532 = vsel %vm1128, %v1091, 0
        %v1535 = vsel %vm1128, %v1093, 0
        %v1538 = vsel %vm1128, %v1095, 0
        %v1541 = vsel %vm1128, %v1097, 0
        %v1544 = vsel %vm1128, %v1099, 0
        %v1547 = vsel %vm1128, %v1101, 0
        %v1550 = vsel %vm1128, %v1103, 0
        %v1553 = vsel %vm1128, %v1105, 0
        %v1556 = vsel %vm1128, %v1107, 0
        %v1559 = vsel %vm1128, %v1109, 0
        %1561 = vmatpush.msra.mxu0 %v1125
        %1562 = vmatpush.msra.mxu0 %v1124
        %1563 = vmatpush.msra.mxu0 %v1123
        %1564 = vmatpush.msra.mxu0 %v1122
        %1565 = vmatpush.msra.mxu0 %v1121
        %1566 = vmatpush.msra.mxu0 %v1120
        %1567 = vmatpush.msra.mxu0 %v1119
        %1568 = vmatpush.msra.mxu0 %v1118
        %1569 = vmatpush.msra.mxu0 %v1117
        %1570 = vmatpush.msra.mxu0 %v1116
        %1571 = vmatpush.msra.mxu0 %v1115
        %1572 = vmatpush.msra.mxu0 %v1114
        %1573 = vmatpush.msra.mxu0 %v1113
        %1574 = vmatpush.msra.mxu0 %v1112
        %1575 = vmatpush.msra.mxu0 %v1111
        %1576 = vmatpush.msra.mxu0 %v1110
        %1577 = vmatmul.f32.gmra.mxu0 %v822
        %v1578 = vpop.f32.mrf.mxu0
        %v1579 = vadd.f32 0.0, %v1578
        %1580 = vmatmul.f32.gmra.mxu0 %v824
        %v1581 = vpop.f32.mrf.mxu0
        %v1582 = vadd.f32 0.0, %v1581
        %1583 = vmatmul.f32.gmra.mxu0 %v826
        %v1584 = vpop.f32.mrf.mxu0
        %v1585 = vadd.f32 0.0, %v1584
        %1586 = vmatmul.f32.gmra.mxu0 %v828
        %v1587 = vpop.f32.mrf.mxu0
        %v1588 = vadd.f32 0.0, %v1587
        %1589 = vmatmul.f32.gmra.mxu0 %v830
        %v1590 = vpop.f32.mrf.mxu0
        %v1591 = vadd.f32 0.0, %v1590
        %1592 = vmatmul.f32.gmra.mxu0 %v832
        %v1593 = vpop.f32.mrf.mxu0
        %v1594 = vadd.f32 0.0, %v1593
        %1595 = vmatmul.f32.gmra.mxu0 %v834
        %v1596 = vpop.f32.mrf.mxu0
        %v1597 = vadd.f32 0.0, %v1596
        %1598 = vmatmul.f32.gmra.mxu0 %v836
        %v1599 = vpop.f32.mrf.mxu0
        %v1600 = vadd.f32 0.0, %v1599
        %1601 = vmatmul.f32.gmra.mxu0 %v838
        %v1602 = vpop.f32.mrf.mxu0
        %v1603 = vadd.f32 0.0, %v1602
        %1604 = vmatmul.f32.gmra.mxu0 %v840
        %v1605 = vpop.f32.mrf.mxu0
        %v1606 = vadd.f32 0.0, %v1605
        %1607 = vmatmul.f32.gmra.mxu0 %v842
        %v1608 = vpop.f32.mrf.mxu0
        %v1609 = vadd.f32 0.0, %v1608
        %1610 = vmatmul.f32.gmra.mxu0 %v844
        %v1611 = vpop.f32.mrf.mxu0
        %v1612 = vadd.f32 0.0, %v1611
        %1613 = vmatmul.f32.gmra.mxu0 %v846
        %v1614 = vpop.f32.mrf.mxu0
        %v1615 = vadd.f32 0.0, %v1614
        %1616 = vmatmul.f32.gmra.mxu0 %v848
        %v1617 = vpop.f32.mrf.mxu0
        %v1618 = vadd.f32 0.0, %v1617
        %1619 = vmatmul.f32.gmra.mxu0 %v850
        %v1620 = vpop.f32.mrf.mxu0
        %v1621 = vadd.f32 0.0, %v1620
        %1622 = vmatmul.f32.gmra.mxu0 %v852
        %v1623 = vpop.f32.mrf.mxu0
        %v1624 = vadd.f32 0.0, %v1623
        %1625 = vmatmul.f32.gmra.mxu0 %v854
        %v1626 = vpop.f32.mrf.mxu0
        %v1627 = vadd.f32 0.0, %v1626
        %1628 = vmatmul.f32.gmra.mxu0 %v856
        %v1629 = vpop.f32.mrf.mxu0
        %v1630 = vadd.f32 0.0, %v1629
        %1631 = vmatmul.f32.gmra.mxu0 %v858
        %v1632 = vpop.f32.mrf.mxu0
        %v1633 = vadd.f32 0.0, %v1632
        %1634 = vmatmul.f32.gmra.mxu0 %v860
        %v1635 = vpop.f32.mrf.mxu0
        %v1636 = vadd.f32 0.0, %v1635
        %1637 = vmatmul.f32.gmra.mxu0 %v862
        %v1638 = vpop.f32.mrf.mxu0
        %v1639 = vadd.f32 0.0, %v1638
        %1640 = vmatmul.f32.gmra.mxu0 %v864
        %v1641 = vpop.f32.mrf.mxu0
        %v1642 = vadd.f32 0.0, %v1641
        %1643 = vmatmul.f32.gmra.mxu0 %v866
        %v1644 = vpop.f32.mrf.mxu0
        %v1645 = vadd.f32 0.0, %v1644
        %1646 = vmatmul.f32.gmra.mxu0 %v868
        %v1647 = vpop.f32.mrf.mxu0
        %v1648 = vadd.f32 0.0, %v1647
        %1649 = vmatmul.f32.gmra.mxu0 %v870
        %v1650 = vpop.f32.mrf.mxu0
        %v1651 = vadd.f32 0.0, %v1650
        %1652 = vmatmul.f32.gmra.mxu0 %v872
        %v1653 = vpop.f32.mrf.mxu0
        %v1654 = vadd.f32 0.0, %v1653
        %1655 = vmatmul.f32.gmra.mxu0 %v874
        %v1656 = vpop.f32.mrf.mxu0
        %v1657 = vadd.f32 0.0, %v1656
        %1658 = vmatmul.f32.gmra.mxu0 %v876
        %v1659 = vpop.f32.mrf.mxu0
        %v1660 = vadd.f32 0.0, %v1659
        %1661 = vmatmul.f32.gmra.mxu0 %v878
        %v1662 = vpop.f32.mrf.mxu0
        %v1663 = vadd.f32 0.0, %v1662
        %1664 = vmatmul.f32.gmra.mxu0 %v880
        %v1665 = vpop.f32.mrf.mxu0
        %v1666 = vadd.f32 0.0, %v1665
        %1667 = vmatmul.f32.gmra.mxu0 %v882
        %v1668 = vpop.f32.mrf.mxu0
        %v1669 = vadd.f32 0.0, %v1668
        %1670 = vmatmul.f32.gmra.mxu0 %v884
        %v1671 = vpop.f32.mrf.mxu0
        %v1672 = vadd.f32 0.0, %v1671
        %1673 = vmatmul.f32.gmra.mxu0 %v886
        %v1674 = vpop.f32.mrf.mxu0
        %v1675 = vadd.f32 0.0, %v1674
        %1676 = vmatmul.f32.gmra.mxu0 %v888
        %v1677 = vpop.f32.mrf.mxu0
        %v1678 = vadd.f32 0.0, %v1677
        %1679 = vmatmul.f32.gmra.mxu0 %v890
        %v1680 = vpop.f32.mrf.mxu0
        %v1681 = vadd.f32 0.0, %v1680
        %1682 = vmatmul.f32.gmra.mxu0 %v892
        %v1683 = vpop.f32.mrf.mxu0
        %v1684 = vadd.f32 0.0, %v1683
        %1685 = vmatmul.f32.gmra.mxu0 %v894
        %v1686 = vpop.f32.mrf.mxu0
        %v1687 = vadd.f32 0.0, %v1686
        %1688 = vmatmul.f32.gmra.mxu0 %v896
        %v1689 = vpop.f32.mrf.mxu0
        %v1690 = vadd.f32 0.0, %v1689
        %1691 = vmatmul.f32.gmra.mxu0 %v898
        %v1692 = vpop.f32.mrf.mxu0
        %v1693 = vadd.f32 0.0, %v1692
        %1694 = vmatmul.f32.gmra.mxu0 %v900
        %v1695 = vpop.f32.mrf.mxu0
        %v1696 = vadd.f32 0.0, %v1695
        %1697 = vmatmul.f32.gmra.mxu0 %v902
        %v1698 = vpop.f32.mrf.mxu0
        %v1699 = vadd.f32 0.0, %v1698
        %1700 = vmatmul.f32.gmra.mxu0 %v904
        %v1701 = vpop.f32.mrf.mxu0
        %v1702 = vadd.f32 0.0, %v1701
        %1703 = vmatmul.f32.gmra.mxu0 %v906
        %v1704 = vpop.f32.mrf.mxu0
        %v1705 = vadd.f32 0.0, %v1704
        %1706 = vmatmul.f32.gmra.mxu0 %v908
        %v1707 = vpop.f32.mrf.mxu0
        %v1708 = vadd.f32 0.0, %v1707
        %1709 = vmatmul.f32.gmra.mxu0 %v910
        %v1710 = vpop.f32.mrf.mxu0
        %v1711 = vadd.f32 0.0, %v1710
        %1712 = vmatmul.f32.gmra.mxu0 %v912
        %v1713 = vpop.f32.mrf.mxu0
        %v1714 = vadd.f32 0.0, %v1713
        %1715 = vmatmul.f32.gmra.mxu0 %v914
        %v1716 = vpop.f32.mrf.mxu0
        %v1717 = vadd.f32 0.0, %v1716
        %1718 = vmatmul.f32.gmra.mxu0 %v916
        %v1719 = vpop.f32.mrf.mxu0
        %v1720 = vadd.f32 0.0, %v1719
        %1721 = vmatmul.f32.gmra.mxu0 %v918
        %v1722 = vpop.f32.mrf.mxu0
        %v1723 = vadd.f32 0.0, %v1722
        %1724 = vmatmul.f32.gmra.mxu0 %v920
        %v1725 = vpop.f32.mrf.mxu0
        %v1726 = vadd.f32 0.0, %v1725
        %1727 = vmatmul.f32.gmra.mxu0 %v922
        %v1728 = vpop.f32.mrf.mxu0
        %v1729 = vadd.f32 0.0, %v1728
        %1730 = vmatmul.f32.gmra.mxu0 %v924
        %v1731 = vpop.f32.mrf.mxu0
        %v1732 = vadd.f32 0.0, %v1731
        %1733 = vmatmul.f32.gmra.mxu0 %v926
        %v1734 = vpop.f32.mrf.mxu0
        %v1735 = vadd.f32 0.0, %v1734
        %1736 = vmatmul.f32.gmra.mxu0 %v928
        %v1737 = vpop.f32.mrf.mxu0
        %v1738 = vadd.f32 0.0, %v1737
        %1739 = vmatmul.f32.gmra.mxu0 %v930
        %v1740 = vpop.f32.mrf.mxu0
        %v1741 = vadd.f32 0.0, %v1740
        %1742 = vmatmul.f32.gmra.mxu0 %v932
        %v1743 = vpop.f32.mrf.mxu0
        %v1744 = vadd.f32 0.0, %v1743
        %1745 = vmatmul.f32.gmra.mxu0 %v934
        %v1746 = vpop.f32.mrf.mxu0
        %v1747 = vadd.f32 0.0, %v1746
        %1748 = vmatmul.f32.gmra.mxu0 %v936
        %v1749 = vpop.f32.mrf.mxu0
        %v1750 = vadd.f32 0.0, %v1749
        %1751 = vmatmul.f32.gmra.mxu0 %v938
        %v1752 = vpop.f32.mrf.mxu0
        %v1753 = vadd.f32 0.0, %v1752
        %1754 = vmatmul.f32.gmra.mxu0 %v940
        %v1755 = vpop.f32.mrf.mxu0
        %v1756 = vadd.f32 0.0, %v1755
        %1757 = vmatmul.f32.gmra.mxu0 %v942
        %v1758 = vpop.f32.mrf.mxu0
        %v1759 = vadd.f32 0.0, %v1758
        %1760 = vmatmul.f32.gmra.mxu0 %v944
        %v1761 = vpop.f32.mrf.mxu0
        %v1762 = vadd.f32 0.0, %v1761
        %1763 = vmatmul.f32.gmra.mxu0 %v946
        %v1764 = vpop.f32.mrf.mxu0
        %v1765 = vadd.f32 0.0, %v1764
        %1766 = vmatmul.f32.gmra.mxu0 %v948
        %v1767 = vpop.f32.mrf.mxu0
        %v1768 = vadd.f32 0.0, %v1767
        %1769 = vmatmul.f32.gmra.mxu0 %v950
        %v1770 = vpop.f32.mrf.mxu0
        %v1771 = vadd.f32 0.0, %v1770
        %1772 = vmatmul.f32.gmra.mxu0 %v952
        %v1773 = vpop.f32.mrf.mxu0
        %v1774 = vadd.f32 0.0, %v1773
        %1775 = vmatmul.f32.gmra.mxu0 %v954
        %v1776 = vpop.f32.mrf.mxu0
        %v1777 = vadd.f32 0.0, %v1776
        %1778 = vmatmul.f32.gmra.mxu0 %v956
        %v1779 = vpop.f32.mrf.mxu0
        %v1780 = vadd.f32 0.0, %v1779
        %1781 = vmatmul.f32.gmra.mxu0 %v958
        %v1782 = vpop.f32.mrf.mxu0
        %v1783 = vadd.f32 0.0, %v1782
        %1784 = vmatmul.f32.gmra.mxu0 %v960
        %v1785 = vpop.f32.mrf.mxu0
        %v1786 = vadd.f32 0.0, %v1785
        %1787 = vmatmul.f32.gmra.mxu0 %v962
        %v1788 = vpop.f32.mrf.mxu0
        %v1789 = vadd.f32 0.0, %v1788
        %1790 = vmatmul.f32.gmra.mxu0 %v964
        %v1791 = vpop.f32.mrf.mxu0
        %v1792 = vadd.f32 0.0, %v1791
        %1793 = vmatmul.f32.gmra.mxu0 %v966
        %v1794 = vpop.f32.mrf.mxu0
        %v1795 = vadd.f32 0.0, %v1794
        %1796 = vmatmul.f32.gmra.mxu0 %v968
        %v1797 = vpop.f32.mrf.mxu0
        %v1798 = vadd.f32 0.0, %v1797
        %1799 = vmatmul.f32.gmra.mxu0 %v970
        %v1800 = vpop.f32.mrf.mxu0
        %v1801 = vadd.f32 0.0, %v1800
        %1802 = vmatmul.f32.gmra.mxu0 %v972
        %v1803 = vpop.f32.mrf.mxu0
        %v1804 = vadd.f32 0.0, %v1803
        %1805 = vmatmul.f32.gmra.mxu0 %v974
        %v1806 = vpop.f32.mrf.mxu0
        %v1807 = vadd.f32 0.0, %v1806
        %1808 = vmatmul.f32.gmra.mxu0 %v976
        %v1809 = vpop.f32.mrf.mxu0
        %v1810 = vadd.f32 0.0, %v1809
        %1811 = vmatmul.f32.gmra.mxu0 %v978
        %v1812 = vpop.f32.mrf.mxu0
        %v1813 = vadd.f32 0.0, %v1812
        %1814 = vmatmul.f32.gmra.mxu0 %v980
        %v1815 = vpop.f32.mrf.mxu0
        %v1816 = vadd.f32 0.0, %v1815
        %1817 = vmatmul.f32.gmra.mxu0 %v982
        %v1818 = vpop.f32.mrf.mxu0
        %v1819 = vadd.f32 0.0, %v1818
        %1820 = vmatmul.f32.gmra.mxu0 %v984
        %v1821 = vpop.f32.mrf.mxu0
        %v1822 = vadd.f32 0.0, %v1821
        %1823 = vmatmul.f32.gmra.mxu0 %v986
        %v1824 = vpop.f32.mrf.mxu0
        %v1825 = vadd.f32 0.0, %v1824
        %1826 = vmatmul.f32.gmra.mxu0 %v988
        %v1827 = vpop.f32.mrf.mxu0
        %v1828 = vadd.f32 0.0, %v1827
        %1829 = vmatmul.f32.gmra.mxu0 %v990
        %v1830 = vpop.f32.mrf.mxu0
        %v1831 = vadd.f32 0.0, %v1830
        %1832 = vmatmul.f32.gmra.mxu0 %v992
        %v1833 = vpop.f32.mrf.mxu0
        %v1834 = vadd.f32 0.0, %v1833
        %1835 = vmatmul.f32.gmra.mxu0 %v994
        %v1836 = vpop.f32.mrf.mxu0
        %v1837 = vadd.f32 0.0, %v1836
        %1838 = vmatmul.f32.gmra.mxu0 %v996
        %v1839 = vpop.f32.mrf.mxu0
        %v1840 = vadd.f32 0.0, %v1839
        %1841 = vmatmul.f32.gmra.mxu0 %v998
        %v1842 = vpop.f32.mrf.mxu0
        %v1843 = vadd.f32 0.0, %v1842
        %1844 = vmatmul.f32.gmra.mxu0 %v1000
        %v1845 = vpop.f32.mrf.mxu0
        %v1846 = vadd.f32 0.0, %v1845
        %1847 = vmatmul.f32.gmra.mxu0 %v1002
        %v1848 = vpop.f32.mrf.mxu0
        %v1849 = vadd.f32 0.0, %v1848
        %1850 = vmatmul.f32.gmra.mxu0 %v1004
        %v1851 = vpop.f32.mrf.mxu0
        %v1852 = vadd.f32 0.0, %v1851
        %1853 = vmatmul.f32.gmra.mxu0 %v1006
        %v1854 = vpop.f32.mrf.mxu0
        %v1855 = vadd.f32 0.0, %v1854
        %1856 = vmatmul.f32.gmra.mxu0 %v1008
        %v1857 = vpop.f32.mrf.mxu0
        %v1858 = vadd.f32 0.0, %v1857
        %1859 = vmatmul.f32.gmra.mxu0 %v1010
        %v1860 = vpop.f32.mrf.mxu0
        %v1861 = vadd.f32 0.0, %v1860
        %1862 = vmatmul.f32.gmra.mxu0 %v1012
        %v1863 = vpop.f32.mrf.mxu0
        %v1864 = vadd.f32 0.0, %v1863
        %1865 = vmatmul.f32.gmra.mxu0 %v1014
        %v1866 = vpop.f32.mrf.mxu0
        %v1867 = vadd.f32 0.0, %v1866
        %1868 = vmatmul.f32.gmra.mxu0 %v1016
        %v1869 = vpop.f32.mrf.mxu0
        %v1870 = vadd.f32 0.0, %v1869
        %1871 = vmatmul.f32.gmra.mxu0 %v1018
        %v1872 = vpop.f32.mrf.mxu0
        %v1873 = vadd.f32 0.0, %v1872
        %1874 = vmatmul.f32.gmra.mxu0 %v1020
        %v1875 = vpop.f32.mrf.mxu0
        %v1876 = vadd.f32 0.0, %v1875
        %1877 = vmatmul.f32.gmra.mxu0 %v1022
        %v1878 = vpop.f32.mrf.mxu0
        %v1879 = vadd.f32 0.0, %v1878
        %1880 = vmatmul.f32.gmra.mxu0 %v1024
        %v1881 = vpop.f32.mrf.mxu0
        %v1882 = vadd.f32 0.0, %v1881
        %1883 = vmatmul.f32.gmra.mxu0 %v1026
        %v1884 = vpop.f32.mrf.mxu0
        %v1885 = vadd.f32 0.0, %v1884
        %1886 = vmatmul.f32.gmra.mxu0 %v1028
        %v1887 = vpop.f32.mrf.mxu0
        %v1888 = vadd.f32 0.0, %v1887
        %1889 = vmatmul.f32.gmra.mxu0 %v1030
        %v1890 = vpop.f32.mrf.mxu0
        %v1891 = vadd.f32 0.0, %v1890
        %1892 = vmatmul.f32.gmra.mxu0 %v1032
        %v1893 = vpop.f32.mrf.mxu0
        %v1894 = vadd.f32 0.0, %v1893
        %1895 = vmatmul.f32.gmra.mxu0 %v1034
        %v1896 = vpop.f32.mrf.mxu0
        %v1897 = vadd.f32 0.0, %v1896
        %1898 = vmatmul.f32.gmra.mxu0 %v1036
        %v1899 = vpop.f32.mrf.mxu0
        %v1900 = vadd.f32 0.0, %v1899
        %1901 = vmatmul.f32.gmra.mxu0 %v1038
        %v1902 = vpop.f32.mrf.mxu0
        %v1903 = vadd.f32 0.0, %v1902
        %1904 = vmatmul.f32.gmra.mxu0 %v1040
        %v1905 = vpop.f32.mrf.mxu0
        %v1906 = vadd.f32 0.0, %v1905
        %1907 = vmatmul.f32.gmra.mxu0 %v1042
        %v1908 = vpop.f32.mrf.mxu0
        %v1909 = vadd.f32 0.0, %v1908
        %1910 = vmatmul.f32.gmra.mxu0 %v1044
        %v1911 = vpop.f32.mrf.mxu0
        %v1912 = vadd.f32 0.0, %v1911
        %1913 = vmatmul.f32.gmra.mxu0 %v1046
        %v1914 = vpop.f32.mrf.mxu0
        %v1915 = vadd.f32 0.0, %v1914
        %1916 = vmatmul.f32.gmra.mxu0 %v1048
        %v1917 = vpop.f32.mrf.mxu0
        %v1918 = vadd.f32 0.0, %v1917
        %1919 = vmatmul.f32.gmra.mxu0 %v1050
        %v1920 = vpop.f32.mrf.mxu0
        %v1921 = vadd.f32 0.0, %v1920
        %1922 = vmatmul.f32.gmra.mxu0 %v1052
        %v1923 = vpop.f32.mrf.mxu0
        %v1924 = vadd.f32 0.0, %v1923
        %1925 = vmatmul.f32.gmra.mxu0 %v1054
        %v1926 = vpop.f32.mrf.mxu0
        %v1927 = vadd.f32 0.0, %v1926
        %1928 = vmatmul.f32.gmra.mxu0 %v1056
        %v1929 = vpop.f32.mrf.mxu0
        %v1930 = vadd.f32 0.0, %v1929
        %1931 = vmatmul.f32.gmra.mxu0 %v1058
        %v1932 = vpop.f32.mrf.mxu0
        %v1933 = vadd.f32 0.0, %v1932
        %1934 = vmatmul.f32.gmra.mxu0 %v1060
        %v1935 = vpop.f32.mrf.mxu0
        %v1936 = vadd.f32 0.0, %v1935
        %1937 = vmatmul.f32.gmra.mxu0 %v1062
        %v1938 = vpop.f32.mrf.mxu0
        %v1939 = vadd.f32 0.0, %v1938
        %1940 = vmatmul.f32.gmra.mxu0 %v1064
        %v1941 = vpop.f32.mrf.mxu0
        %v1942 = vadd.f32 0.0, %v1941
        %1943 = vmatmul.f32.gmra.mxu0 %v1066
        %v1944 = vpop.f32.mrf.mxu0
        %v1945 = vadd.f32 0.0, %v1944
        %1946 = vmatmul.f32.gmra.mxu0 %v1068
        %v1947 = vpop.f32.mrf.mxu0
        %v1948 = vadd.f32 0.0, %v1947
        %1949 = vmatmul.f32.gmra.mxu0 %v1070
        %v1950 = vpop.f32.mrf.mxu0
        %v1951 = vadd.f32 0.0, %v1950
        %1952 = vmatmul.f32.gmra.mxu0 %v1072
        %v1953 = vpop.f32.mrf.mxu0
        %v1954 = vadd.f32 0.0, %v1953
        %1955 = vmatmul.f32.gmra.mxu0 %v1074
        %v1956 = vpop.f32.mrf.mxu0
        %v1957 = vadd.f32 0.0, %v1956
        %1958 = vmatmul.f32.gmra.mxu0 %v1076
        %v1959 = vpop.f32.mrf.mxu0
        %v1960 = vadd.f32 0.0, %v1959
        %1961 = vmatmul.f32.gmra.mxu0 %v1078
        %v1962 = vpop.f32.mrf.mxu0
        %v1963 = vadd.f32 0.0, %v1962
        %1964 = vmatmul.f32.gmra.mxu0 %v1080
        %v1965 = vpop.f32.mrf.mxu0
        %v1966 = vadd.f32 0.0, %v1965
        %1967 = vmatmul.f32.gmra.mxu0 %v1082
        %v1968 = vpop.f32.mrf.mxu0
        %v1969 = vadd.f32 0.0, %v1968
        %1970 = vmatmul.f32.gmra.mxu0 %v1084
        %v1971 = vpop.f32.mrf.mxu0
        %v1972 = vadd.f32 0.0, %v1971
        %1973 = vmatmul.f32.gmra.mxu0 %v1086
        %v1974 = vpop.f32.mrf.mxu0
        %v1975 = vadd.f32 0.0, %v1974
        %1976 = vmatmul.f32.gmra.mxu0 %v1088
        %v1977 = vpop.f32.mrf.mxu0
        %v1978 = vadd.f32 0.0, %v1977
        %1979 = vmatmul.f32.gmra.mxu0 %v1090
        %v1980 = vpop.f32.mrf.mxu0
        %v1981 = vadd.f32 0.0, %v1980
        %1982 = vmatmul.f32.gmra.mxu0 %v1092
        %v1983 = vpop.f32.mrf.mxu0
        %v1984 = vadd.f32 0.0, %v1983
        %1985 = vmatmul.f32.gmra.mxu0 %v1094
        %v1986 = vpop.f32.mrf.mxu0
        %v1987 = vadd.f32 0.0, %v1986
        %1988 = vmatmul.f32.gmra.mxu0 %v1096
        %v1989 = vpop.f32.mrf.mxu0
        %v1990 = vadd.f32 0.0, %v1989
        %1991 = vmatmul.f32.gmra.mxu0 %v1098
        %v1992 = vpop.f32.mrf.mxu0
        %v1993 = vadd.f32 0.0, %v1992
        %1994 = vmatmul.f32.gmra.mxu0 %v1100
        %v1995 = vpop.f32.mrf.mxu0
        %v1996 = vadd.f32 0.0, %v1995
        %1997 = vmatmul.f32.gmra.mxu0 %v1102
        %v1998 = vpop.f32.mrf.mxu0
        %v1999 = vadd.f32 0.0, %v1998
        %2000 = vmatmul.f32.gmra.mxu0 %v1104
        %v2001 = vpop.f32.mrf.mxu0
        %v2002 = vadd.f32 0.0, %v2001
        %2003 = vmatmul.f32.gmra.mxu0 %v1106
        %v2004 = vpop.f32.mrf.mxu0
        %v2005 = vadd.f32 0.0, %v2004
        %2006 = vmatmul.f32.gmra.mxu0 %v1108
        %v2007 = vpop.f32.mrf.mxu0
        %v2008 = vadd.f32 0.0, %v2007
        %2009 = vdwg.mxu0
        %2010 = vmatpush.msra.mxu0 0.0
        %2011 = vmatpush.msra.mxu0 0.0
        %2012 = vmatpush.msra.mxu0 0.0
        %2013 = vmatpush.msra.mxu0 0.0
        %2014 = vmatpush.msra.mxu0 0.0
        %2015 = vmatpush.msra.mxu0 0.0
        %2016 = vmatpush.msra.mxu0 0.0
        %2017 = vmatpush.msra.mxu0 0.0
        %2018 = vmatpush.msra.mxu0 0.0
        %2019 = vmatpush.msra.mxu0 0.0
        %2020 = vmatpush.msra.mxu0 0.0
        %2021 = vmatpush.msra.mxu0 0.0
        %2022 = vmatpush.msra.mxu0 0.0
        %2023 = vmatpush.msra.mxu0 0.0
        %2024 = vmatpush.msra.mxu0 %v1127
        %2025 = vmatpush.msra.mxu0 %v1126
        %2026 = vmatmul.f32.gmra.mxu0 %v1130
        %v2027 = vpop.f32.mrf.mxu0
        %v2028 = vadd.f32 %v1579, %v2027
        %2029 = vmatmul.f32.gmra.mxu0 %v1133
        %v2030 = vpop.f32.mrf.mxu0
        %v2031 = vadd.f32 %v1582, %v2030
        %2032 = vmatmul.f32.gmra.mxu0 %v1136
        %v2033 = vpop.f32.mrf.mxu0
        %v2034 = vadd.f32 %v1585, %v2033
        %2035 = vmatmul.f32.gmra.mxu0 %v1139
        %v2036 = vpop.f32.mrf.mxu0
        %v2037 = vadd.f32 %v1588, %v2036
        %2038 = vmatmul.f32.gmra.mxu0 %v1142
        %v2039 = vpop.f32.mrf.mxu0
        %v2040 = vadd.f32 %v1591, %v2039
        %2041 = vmatmul.f32.gmra.mxu0 %v1145
        %v2042 = vpop.f32.mrf.mxu0
        %v2043 = vadd.f32 %v1594, %v2042
        %2044 = vmatmul.f32.gmra.mxu0 %v1148
        %v2045 = vpop.f32.mrf.mxu0
        %v2046 = vadd.f32 %v1597, %v2045
        %2047 = vmatmul.f32.gmra.mxu0 %v1151
        %v2048 = vpop.f32.mrf.mxu0
        %v2049 = vadd.f32 %v1600, %v2048
        %2050 = vmatmul.f32.gmra.mxu0 %v1154
        %v2051 = vpop.f32.mrf.mxu0
        %v2052 = vadd.f32 %v1603, %v2051
        %2053 = vmatmul.f32.gmra.mxu0 %v1157
        %v2054 = vpop.f32.mrf.mxu0
        %v2055 = vadd.f32 %v1606, %v2054
        %2056 = vmatmul.f32.gmra.mxu0 %v1160
        %v2057 = vpop.f32.mrf.mxu0
        %v2058 = vadd.f32 %v1609, %v2057
        %2059 = vmatmul.f32.gmra.mxu0 %v1163
        %v2060 = vpop.f32.mrf.mxu0
        %v2061 = vadd.f32 %v1612, %v2060
        %2062 = vmatmul.f32.gmra.mxu0 %v1166
        %v2063 = vpop.f32.mrf.mxu0
        %v2064 = vadd.f32 %v1615, %v2063
        %2065 = vmatmul.f32.gmra.mxu0 %v1169
        %v2066 = vpop.f32.mrf.mxu0
        %v2067 = vadd.f32 %v1618, %v2066
        %2068 = vmatmul.f32.gmra.mxu0 %v1172
        %v2069 = vpop.f32.mrf.mxu0
        %v2070 = vadd.f32 %v1621, %v2069
        %2071 = vmatmul.f32.gmra.mxu0 %v1175
        %v2072 = vpop.f32.mrf.mxu0
        %v2073 = vadd.f32 %v1624, %v2072
        %2074 = vmatmul.f32.gmra.mxu0 %v1178
        %v2075 = vpop.f32.mrf.mxu0
        %v2076 = vadd.f32 %v1627, %v2075
        %2077 = vmatmul.f32.gmra.mxu0 %v1181
        %v2078 = vpop.f32.mrf.mxu0
        %v2079 = vadd.f32 %v1630, %v2078
        %2080 = vmatmul.f32.gmra.mxu0 %v1184
        %v2081 = vpop.f32.mrf.mxu0
        %v2082 = vadd.f32 %v1633, %v2081
        %2083 = vmatmul.f32.gmra.mxu0 %v1187
        %v2084 = vpop.f32.mrf.mxu0
        %v2085 = vadd.f32 %v1636, %v2084
        %2086 = vmatmul.f32.gmra.mxu0 %v1190
        %v2087 = vpop.f32.mrf.mxu0
        %v2088 = vadd.f32 %v1639, %v2087
        %2089 = vmatmul.f32.gmra.mxu0 %v1193
        %v2090 = vpop.f32.mrf.mxu0
        %v2091 = vadd.f32 %v1642, %v2090
        %2092 = vmatmul.f32.gmra.mxu0 %v1196
        %v2093 = vpop.f32.mrf.mxu0
        %v2094 = vadd.f32 %v1645, %v2093
        %2095 = vmatmul.f32.gmra.mxu0 %v1199
        %v2096 = vpop.f32.mrf.mxu0
        %v2097 = vadd.f32 %v1648, %v2096
        %2098 = vmatmul.f32.gmra.mxu0 %v1202
        %v2099 = vpop.f32.mrf.mxu0
        %v2100 = vadd.f32 %v1651, %v2099
        %2101 = vmatmul.f32.gmra.mxu0 %v1205
        %v2102 = vpop.f32.mrf.mxu0
        %v2103 = vadd.f32 %v1654, %v2102
        %2104 = vmatmul.f32.gmra.mxu0 %v1208
        %v2105 = vpop.f32.mrf.mxu0
        %v2106 = vadd.f32 %v1657, %v2105
        %2107 = vmatmul.f32.gmra.mxu0 %v1211
        %v2108 = vpop.f32.mrf.mxu0
        %v2109 = vadd.f32 %v1660, %v2108
        %2110 = vmatmul.f32.gmra.mxu0 %v1214
        %v2111 = vpop.f32.mrf.mxu0
        %v2112 = vadd.f32 %v1663, %v2111
        %2113 = vmatmul.f32.gmra.mxu0 %v1217
        %v2114 = vpop.f32.mrf.mxu0
        %v2115 = vadd.f32 %v1666, %v2114
        %2116 = vmatmul.f32.gmra.mxu0 %v1220
        %v2117 = vpop.f32.mrf.mxu0
        %v2118 = vadd.f32 %v1669, %v2117
        %2119 = vmatmul.f32.gmra.mxu0 %v1223
        %v2120 = vpop.f32.mrf.mxu0
        %v2121 = vadd.f32 %v1672, %v2120
        %2122 = vmatmul.f32.gmra.mxu0 %v1226
        %v2123 = vpop.f32.mrf.mxu0
        %v2124 = vadd.f32 %v1675, %v2123
        %2125 = vmatmul.f32.gmra.mxu0 %v1229
        %v2126 = vpop.f32.mrf.mxu0
        %v2127 = vadd.f32 %v1678, %v2126
        %2128 = vmatmul.f32.gmra.mxu0 %v1232
        %v2129 = vpop.f32.mrf.mxu0
        %v2130 = vadd.f32 %v1681, %v2129
        %2131 = vmatmul.f32.gmra.mxu0 %v1235
        %v2132 = vpop.f32.mrf.mxu0
        %v2133 = vadd.f32 %v1684, %v2132
        %2134 = vmatmul.f32.gmra.mxu0 %v1238
        %v2135 = vpop.f32.mrf.mxu0
        %v2136 = vadd.f32 %v1687, %v2135
        %2137 = vmatmul.f32.gmra.mxu0 %v1241
        %v2138 = vpop.f32.mrf.mxu0
        %v2139 = vadd.f32 %v1690, %v2138
        %2140 = vmatmul.f32.gmra.mxu0 %v1244
        %v2141 = vpop.f32.mrf.mxu0
        %v2142 = vadd.f32 %v1693, %v2141
        %2143 = vmatmul.f32.gmra.mxu0 %v1247
        %v2144 = vpop.f32.mrf.mxu0
        %v2145 = vadd.f32 %v1696, %v2144
        %2146 = vmatmul.f32.gmra.mxu0 %v1250
        %v2147 = vpop.f32.mrf.mxu0
        %v2148 = vadd.f32 %v1699, %v2147
        %2149 = vmatmul.f32.gmra.mxu0 %v1253
        %v2150 = vpop.f32.mrf.mxu0
        %v2151 = vadd.f32 %v1702, %v2150
        %2152 = vmatmul.f32.gmra.mxu0 %v1256
        %v2153 = vpop.f32.mrf.mxu0
        %v2154 = vadd.f32 %v1705, %v2153
        %2155 = vmatmul.f32.gmra.mxu0 %v1259
        %v2156 = vpop.f32.mrf.mxu0
        %v2157 = vadd.f32 %v1708, %v2156
        %2158 = vmatmul.f32.gmra.mxu0 %v1262
        %v2159 = vpop.f32.mrf.mxu0
        %v2160 = vadd.f32 %v1711, %v2159
        %2161 = vmatmul.f32.gmra.mxu0 %v1265
        %v2162 = vpop.f32.mrf.mxu0
        %v2163 = vadd.f32 %v1714, %v2162
        %2164 = vmatmul.f32.gmra.mxu0 %v1268
        %v2165 = vpop.f32.mrf.mxu0
        %v2166 = vadd.f32 %v1717, %v2165
        %2167 = vmatmul.f32.gmra.mxu0 %v1271
        %v2168 = vpop.f32.mrf.mxu0
        %v2169 = vadd.f32 %v1720, %v2168
        %2170 = vmatmul.f32.gmra.mxu0 %v1274
        %v2171 = vpop.f32.mrf.mxu0
        %v2172 = vadd.f32 %v1723, %v2171
        %2173 = vmatmul.f32.gmra.mxu0 %v1277
        %v2174 = vpop.f32.mrf.mxu0
        %v2175 = vadd.f32 %v1726, %v2174
        %2176 = vmatmul.f32.gmra.mxu0 %v1280
        %v2177 = vpop.f32.mrf.mxu0
        %v2178 = vadd.f32 %v1729, %v2177
        %2179 = vmatmul.f32.gmra.mxu0 %v1283
        %v2180 = vpop.f32.mrf.mxu0
        %v2181 = vadd.f32 %v1732, %v2180
        %2182 = vmatmul.f32.gmra.mxu0 %v1286
        %v2183 = vpop.f32.mrf.mxu0
        %v2184 = vadd.f32 %v1735, %v2183
        %2185 = vmatmul.f32.gmra.mxu0 %v1289
        %v2186 = vpop.f32.mrf.mxu0
        %v2187 = vadd.f32 %v1738, %v2186
        %2188 = vmatmul.f32.gmra.mxu0 %v1292
        %v2189 = vpop.f32.mrf.mxu0
        %v2190 = vadd.f32 %v1741, %v2189
        %2191 = vmatmul.f32.gmra.mxu0 %v1295
        %v2192 = vpop.f32.mrf.mxu0
        %v2193 = vadd.f32 %v1744, %v2192
        %2194 = vmatmul.f32.gmra.mxu0 %v1298
        %v2195 = vpop.f32.mrf.mxu0
        %v2196 = vadd.f32 %v1747, %v2195
        %2197 = vmatmul.f32.gmra.mxu0 %v1301
        %v2198 = vpop.f32.mrf.mxu0
        %v2199 = vadd.f32 %v1750, %v2198
        %2200 = vmatmul.f32.gmra.mxu0 %v1304
        %v2201 = vpop.f32.mrf.mxu0
        %v2202 = vadd.f32 %v1753, %v2201
        %2203 = vmatmul.f32.gmra.mxu0 %v1307
        %v2204 = vpop.f32.mrf.mxu0
        %v2205 = vadd.f32 %v1756, %v2204
        %2206 = vmatmul.f32.gmra.mxu0 %v1310
        %v2207 = vpop.f32.mrf.mxu0
        %v2208 = vadd.f32 %v1759, %v2207
        %2209 = vmatmul.f32.gmra.mxu0 %v1313
        %v2210 = vpop.f32.mrf.mxu0
        %v2211 = vadd.f32 %v1762, %v2210
        %2212 = vmatmul.f32.gmra.mxu0 %v1316
        %v2213 = vpop.f32.mrf.mxu0
        %v2214 = vadd.f32 %v1765, %v2213
        %2215 = vmatmul.f32.gmra.mxu0 %v1319
        %v2216 = vpop.f32.mrf.mxu0
        %v2217 = vadd.f32 %v1768, %v2216
        %2218 = vmatmul.f32.gmra.mxu0 %v1322
        %v2219 = vpop.f32.mrf.mxu0
        %v2220 = vadd.f32 %v1771, %v2219
        %2221 = vmatmul.f32.gmra.mxu0 %v1325
        %v2222 = vpop.f32.mrf.mxu0
        %v2223 = vadd.f32 %v1774, %v2222
        %2224 = vmatmul.f32.gmra.mxu0 %v1328
        %v2225 = vpop.f32.mrf.mxu0
        %v2226 = vadd.f32 %v1777, %v2225
        %2227 = vmatmul.f32.gmra.mxu0 %v1331
        %v2228 = vpop.f32.mrf.mxu0
        %v2229 = vadd.f32 %v1780, %v2228
        %2230 = vmatmul.f32.gmra.mxu0 %v1334
        %v2231 = vpop.f32.mrf.mxu0
        %v2232 = vadd.f32 %v1783, %v2231
        %2233 = vmatmul.f32.gmra.mxu0 %v1337
        %v2234 = vpop.f32.mrf.mxu0
        %v2235 = vadd.f32 %v1786, %v2234
        %2236 = vmatmul.f32.gmra.mxu0 %v1340
        %v2237 = vpop.f32.mrf.mxu0
        %v2238 = vadd.f32 %v1789, %v2237
        %2239 = vmatmul.f32.gmra.mxu0 %v1343
        %v2240 = vpop.f32.mrf.mxu0
        %v2241 = vadd.f32 %v1792, %v2240
        %2242 = vmatmul.f32.gmra.mxu0 %v1346
        %v2243 = vpop.f32.mrf.mxu0
        %v2244 = vadd.f32 %v1795, %v2243
        %2245 = vmatmul.f32.gmra.mxu0 %v1349
        %v2246 = vpop.f32.mrf.mxu0
        %v2247 = vadd.f32 %v1798, %v2246
        %2248 = vmatmul.f32.gmra.mxu0 %v1352
        %v2249 = vpop.f32.mrf.mxu0
        %v2250 = vadd.f32 %v1801, %v2249
        %2251 = vmatmul.f32.gmra.mxu0 %v1355
        %v2252 = vpop.f32.mrf.mxu0
        %v2253 = vadd.f32 %v1804, %v2252
        %2254 = vmatmul.f32.gmra.mxu0 %v1358
        %v2255 = vpop.f32.mrf.mxu0
        %v2256 = vadd.f32 %v1807, %v2255
        %2257 = vmatmul.f32.gmra.mxu0 %v1361
        %v2258 = vpop.f32.mrf.mxu0
        %v2259 = vadd.f32 %v1810, %v2258
        %2260 = vmatmul.f32.gmra.mxu0 %v1364
        %v2261 = vpop.f32.mrf.mxu0
        %v2262 = vadd.f32 %v1813, %v2261
        %2263 = vmatmul.f32.gmra.mxu0 %v1367
        %v2264 = vpop.f32.mrf.mxu0
        %v2265 = vadd.f32 %v1816, %v2264
        %2266 = vmatmul.f32.gmra.mxu0 %v1370
        %v2267 = vpop.f32.mrf.mxu0
        %v2268 = vadd.f32 %v1819, %v2267
        %2269 = vmatmul.f32.gmra.mxu0 %v1373
        %v2270 = vpop.f32.mrf.mxu0
        %v2271 = vadd.f32 %v1822, %v2270
        %2272 = vmatmul.f32.gmra.mxu0 %v1376
        %v2273 = vpop.f32.mrf.mxu0
        %v2274 = vadd.f32 %v1825, %v2273
        %2275 = vmatmul.f32.gmra.mxu0 %v1379
        %v2276 = vpop.f32.mrf.mxu0
        %v2277 = vadd.f32 %v1828, %v2276
        %2278 = vmatmul.f32.gmra.mxu0 %v1382
        %v2279 = vpop.f32.mrf.mxu0
        %v2280 = vadd.f32 %v1831, %v2279
        %2281 = vmatmul.f32.gmra.mxu0 %v1385
        %v2282 = vpop.f32.mrf.mxu0
        %v2283 = vadd.f32 %v1834, %v2282
        %2284 = vmatmul.f32.gmra.mxu0 %v1388
        %v2285 = vpop.f32.mrf.mxu0
        %v2286 = vadd.f32 %v1837, %v2285
        %2287 = vmatmul.f32.gmra.mxu0 %v1391
        %v2288 = vpop.f32.mrf.mxu0
        %v2289 = vadd.f32 %v1840, %v2288
        %2290 = vmatmul.f32.gmra.mxu0 %v1394
        %v2291 = vpop.f32.mrf.mxu0
        %v2292 = vadd.f32 %v1843, %v2291
        %2293 = vmatmul.f32.gmra.mxu0 %v1397
        %v2294 = vpop.f32.mrf.mxu0
        %v2295 = vadd.f32 %v1846, %v2294
        %2296 = vmatmul.f32.gmra.mxu0 %v1400
        %v2297 = vpop.f32.mrf.mxu0
        %v2298 = vadd.f32 %v1849, %v2297
        %2299 = vmatmul.f32.gmra.mxu0 %v1403
        %v2300 = vpop.f32.mrf.mxu0
        %v2301 = vadd.f32 %v1852, %v2300
        %2302 = vmatmul.f32.gmra.mxu0 %v1406
        %v2303 = vpop.f32.mrf.mxu0
        %v2304 = vadd.f32 %v1855, %v2303
        %2305 = vmatmul.f32.gmra.mxu0 %v1409
        %v2306 = vpop.f32.mrf.mxu0
        %v2307 = vadd.f32 %v1858, %v2306
        %2308 = vmatmul.f32.gmra.mxu0 %v1412
        %v2309 = vpop.f32.mrf.mxu0
        %v2310 = vadd.f32 %v1861, %v2309
        %2311 = vmatmul.f32.gmra.mxu0 %v1415
        %v2312 = vpop.f32.mrf.mxu0
        %v2313 = vadd.f32 %v1864, %v2312
        %2314 = vmatmul.f32.gmra.mxu0 %v1418
        %v2315 = vpop.f32.mrf.mxu0
        %v2316 = vadd.f32 %v1867, %v2315
        %2317 = vmatmul.f32.gmra.mxu0 %v1421
        %v2318 = vpop.f32.mrf.mxu0
        %v2319 = vadd.f32 %v1870, %v2318
        %2320 = vmatmul.f32.gmra.mxu0 %v1424
        %v2321 = vpop.f32.mrf.mxu0
        %v2322 = vadd.f32 %v1873, %v2321
        %2323 = vmatmul.f32.gmra.mxu0 %v1427
        %v2324 = vpop.f32.mrf.mxu0
        %v2325 = vadd.f32 %v1876, %v2324
        %2326 = vmatmul.f32.gmra.mxu0 %v1430
        %v2327 = vpop.f32.mrf.mxu0
        %v2328 = vadd.f32 %v1879, %v2327
        %2329 = vmatmul.f32.gmra.mxu0 %v1433
        %v2330 = vpop.f32.mrf.mxu0
        %v2331 = vadd.f32 %v1882, %v2330
        %2332 = vmatmul.f32.gmra.mxu0 %v1436
        %v2333 = vpop.f32.mrf.mxu0
        %v2334 = vadd.f32 %v1885, %v2333
        %2335 = vmatmul.f32.gmra.mxu0 %v1439
        %v2336 = vpop.f32.mrf.mxu0
        %v2337 = vadd.f32 %v1888, %v2336
        %2338 = vmatmul.f32.gmra.mxu0 %v1442
        %v2339 = vpop.f32.mrf.mxu0
        %v2340 = vadd.f32 %v1891, %v2339
        %2341 = vmatmul.f32.gmra.mxu0 %v1445
        %v2342 = vpop.f32.mrf.mxu0
        %v2343 = vadd.f32 %v1894, %v2342
        %2344 = vmatmul.f32.gmra.mxu0 %v1448
        %v2345 = vpop.f32.mrf.mxu0
        %v2346 = vadd.f32 %v1897, %v2345
        %2347 = vmatmul.f32.gmra.mxu0 %v1451
        %v2348 = vpop.f32.mrf.mxu0
        %v2349 = vadd.f32 %v1900, %v2348
        %2350 = vmatmul.f32.gmra.mxu0 %v1454
        %v2351 = vpop.f32.mrf.mxu0
        %v2352 = vadd.f32 %v1903, %v2351
        %2353 = vmatmul.f32.gmra.mxu0 %v1457
        %v2354 = vpop.f32.mrf.mxu0
        %v2355 = vadd.f32 %v1906, %v2354
        %2356 = vmatmul.f32.gmra.mxu0 %v1460
        %v2357 = vpop.f32.mrf.mxu0
        %v2358 = vadd.f32 %v1909, %v2357
        %2359 = vmatmul.f32.gmra.mxu0 %v1463
        %v2360 = vpop.f32.mrf.mxu0
        %v2361 = vadd.f32 %v1912, %v2360
        %2362 = vmatmul.f32.gmra.mxu0 %v1466
        %v2363 = vpop.f32.mrf.mxu0
        %v2364 = vadd.f32 %v1915, %v2363
        %2365 = vmatmul.f32.gmra.mxu0 %v1469
        %v2366 = vpop.f32.mrf.mxu0
        %v2367 = vadd.f32 %v1918, %v2366
        %2368 = vmatmul.f32.gmra.mxu0 %v1472
        %v2369 = vpop.f32.mrf.mxu0
        %v2370 = vadd.f32 %v1921, %v2369
        %2371 = vmatmul.f32.gmra.mxu0 %v1475
        %v2372 = vpop.f32.mrf.mxu0
        %v2373 = vadd.f32 %v1924, %v2372
        %2374 = vmatmul.f32.gmra.mxu0 %v1478
        %v2375 = vpop.f32.mrf.mxu0
        %v2376 = vadd.f32 %v1927, %v2375
        %2377 = vmatmul.f32.gmra.mxu0 %v1481
        %v2378 = vpop.f32.mrf.mxu0
        %v2379 = vadd.f32 %v1930, %v2378
        %2380 = vmatmul.f32.gmra.mxu0 %v1484
        %v2381 = vpop.f32.mrf.mxu0
        %v2382 = vadd.f32 %v1933, %v2381
        %2383 = vmatmul.f32.gmra.mxu0 %v1487
        %v2384 = vpop.f32.mrf.mxu0
        %v2385 = vadd.f32 %v1936, %v2384
        %2386 = vmatmul.f32.gmra.mxu0 %v1490
        %v2387 = vpop.f32.mrf.mxu0
        %v2388 = vadd.f32 %v1939, %v2387
        %2389 = vmatmul.f32.gmra.mxu0 %v1493
        %v2390 = vpop.f32.mrf.mxu0
        %v2391 = vadd.f32 %v1942, %v2390
        %2392 = vmatmul.f32.gmra.mxu0 %v1496
        %v2393 = vpop.f32.mrf.mxu0
        %v2394 = vadd.f32 %v1945, %v2393
        %2395 = vmatmul.f32.gmra.mxu0 %v1499
        %v2396 = vpop.f32.mrf.mxu0
        %v2397 = vadd.f32 %v1948, %v2396
        %2398 = vmatmul.f32.gmra.mxu0 %v1502
        %v2399 = vpop.f32.mrf.mxu0
        %v2400 = vadd.f32 %v1951, %v2399
        %2401 = vmatmul.f32.gmra.mxu0 %v1505
        %v2402 = vpop.f32.mrf.mxu0
        %v2403 = vadd.f32 %v1954, %v2402
        %2404 = vmatmul.f32.gmra.mxu0 %v1508
        %v2405 = vpop.f32.mrf.mxu0
        %v2406 = vadd.f32 %v1957, %v2405
        %2407 = vmatmul.f32.gmra.mxu0 %v1511
        %v2408 = vpop.f32.mrf.mxu0
        %v2409 = vadd.f32 %v1960, %v2408
        %2410 = vmatmul.f32.gmra.mxu0 %v1514
        %v2411 = vpop.f32.mrf.mxu0
        %v2412 = vadd.f32 %v1963, %v2411
        %2413 = vmatmul.f32.gmra.mxu0 %v1517
        %v2414 = vpop.f32.mrf.mxu0
        %v2415 = vadd.f32 %v1966, %v2414
        %2416 = vmatmul.f32.gmra.mxu0 %v1520
        %v2417 = vpop.f32.mrf.mxu0
        %v2418 = vadd.f32 %v1969, %v2417
        %2419 = vmatmul.f32.gmra.mxu0 %v1523
        %v2420 = vpop.f32.mrf.mxu0
        %v2421 = vadd.f32 %v1972, %v2420
        %2422 = vmatmul.f32.gmra.mxu0 %v1526
        %v2423 = vpop.f32.mrf.mxu0
        %v2424 = vadd.f32 %v1975, %v2423
        %2425 = vmatmul.f32.gmra.mxu0 %v1529
        %v2426 = vpop.f32.mrf.mxu0
        %v2427 = vadd.f32 %v1978, %v2426
        %2428 = vmatmul.f32.gmra.mxu0 %v1532
        %v2429 = vpop.f32.mrf.mxu0
        %v2430 = vadd.f32 %v1981, %v2429
        %2431 = vmatmul.f32.gmra.mxu0 %v1535
        %v2432 = vpop.f32.mrf.mxu0
        %v2433 = vadd.f32 %v1984, %v2432
        %2434 = vmatmul.f32.gmra.mxu0 %v1538
        %v2435 = vpop.f32.mrf.mxu0
        %v2436 = vadd.f32 %v1987, %v2435
        %2437 = vmatmul.f32.gmra.mxu0 %v1541
        %v2438 = vpop.f32.mrf.mxu0
        %v2439 = vadd.f32 %v1990, %v2438
        %2440 = vmatmul.f32.gmra.mxu0 %v1544
        %v2441 = vpop.f32.mrf.mxu0
        %v2442 = vadd.f32 %v1993, %v2441
        %2443 = vmatmul.f32.gmra.mxu0 %v1547
        %v2444 = vpop.f32.mrf.mxu0
        %v2445 = vadd.f32 %v1996, %v2444
        %2446 = vmatmul.f32.gmra.mxu0 %v1550
        %v2447 = vpop.f32.mrf.mxu0
        %v2448 = vadd.f32 %v1999, %v2447
        %2449 = vmatmul.f32.gmra.mxu0 %v1553
        %v2450 = vpop.f32.mrf.mxu0
        %v2451 = vadd.f32 %v2002, %v2450
        %2452 = vmatmul.f32.gmra.mxu0 %v1556
        %v2453 = vpop.f32.mrf.mxu0
        %v2454 = vadd.f32 %v2005, %v2453
        %2455 = vmatmul.f32.gmra.mxu0 %v1559
        %v2456 = vpop.f32.mrf.mxu0
        %v2457 = vadd.f32 %v2008, %v2456
        %2458 = vdwg.mxu0
        %vm2459 = vcmask 64512
        %v2460 = vsel %vm2459, %v2028, -inf
        %v2461 = vsel %vm2459, %v2076, -inf
        %v2462 = vmax.f32 %v2460, %v2461
        %v2463 = vsel %vm2459, %v2124, -inf
        %v2464 = vmax.f32 %v2462, %v2463
        %v2465 = vsel %vm2459, %v2172, -inf
        %v2466 = vmax.f32 %v2464, %v2465
        %v2467 = vsel %vm2459, %v2220, -inf
        %v2468 = vmax.f32 %v2466, %v2467
        %v2469 = vsel %vm2459, %v2268, -inf
        %v2470 = vmax.f32 %v2468, %v2469
        %v2471 = vsel %vm2459, %v2316, -inf
        %v2472 = vmax.f32 %v2470, %v2471
        %v2473 = vsel %vm2459, %v2364, -inf
        %v2474 = vmax.f32 %v2472, %v2473
        %v2475 = vsel %vm2459, %v2412, -inf
        %v2476 = vmax.f32 %v2474, %v2475
        %v2477 = vsel %vm2459, %v2031, -inf
        %v2478 = vsel %vm2459, %v2079, -inf
        %v2479 = vmax.f32 %v2477, %v2478
        %v2480 = vsel %vm2459, %v2127, -inf
        %v2481 = vmax.f32 %v2479, %v2480
        %v2482 = vsel %vm2459, %v2175, -inf
        %v2483 = vmax.f32 %v2481, %v2482
        %v2484 = vsel %vm2459, %v2223, -inf
        %v2485 = vmax.f32 %v2483, %v2484
        %v2486 = vsel %vm2459, %v2271, -inf
        %v2487 = vmax.f32 %v2485, %v2486
        %v2488 = vsel %vm2459, %v2319, -inf
        %v2489 = vmax.f32 %v2487, %v2488
        %v2490 = vsel %vm2459, %v2367, -inf
        %v2491 = vmax.f32 %v2489, %v2490
        %v2492 = vsel %vm2459, %v2415, -inf
        %v2493 = vmax.f32 %v2491, %v2492
        %v2494 = vsel %vm2459, %v2034, -inf
        %v2495 = vsel %vm2459, %v2082, -inf
        %v2496 = vmax.f32 %v2494, %v2495
        %v2497 = vsel %vm2459, %v2130, -inf
        %v2498 = vmax.f32 %v2496, %v2497
        %v2499 = vsel %vm2459, %v2178, -inf
        %v2500 = vmax.f32 %v2498, %v2499
        %v2501 = vsel %vm2459, %v2226, -inf
        %v2502 = vmax.f32 %v2500, %v2501
        %v2503 = vsel %vm2459, %v2274, -inf
        %v2504 = vmax.f32 %v2502, %v2503
        %v2505 = vsel %vm2459, %v2322, -inf
        %v2506 = vmax.f32 %v2504, %v2505
        %v2507 = vsel %vm2459, %v2370, -inf
        %v2508 = vmax.f32 %v2506, %v2507
        %v2509 = vsel %vm2459, %v2418, -inf
        %v2510 = vmax.f32 %v2508, %v2509
        %v2511 = vsel %vm2459, %v2037, -inf
        %v2512 = vsel %vm2459, %v2085, -inf
        %v2513 = vmax.f32 %v2511, %v2512
        %v2514 = vsel %vm2459, %v2133, -inf
        %v2515 = vmax.f32 %v2513, %v2514
        %v2516 = vsel %vm2459, %v2181, -inf
        %v2517 = vmax.f32 %v2515, %v2516
        %v2518 = vsel %vm2459, %v2229, -inf
        %v2519 = vmax.f32 %v2517, %v2518
        %v2520 = vsel %vm2459, %v2277, -inf
        %v2521 = vmax.f32 %v2519, %v2520
        %v2522 = vsel %vm2459, %v2325, -inf
        %v2523 = vmax.f32 %v2521, %v2522
        %v2524 = vsel %vm2459, %v2373, -inf
        %v2525 = vmax.f32 %v2523, %v2524
        %v2526 = vsel %vm2459, %v2421, -inf
        %v2527 = vmax.f32 %v2525, %v2526
        %v2528 = vsel %vm2459, %v2040, -inf
        %v2529 = vsel %vm2459, %v2088, -inf
        %v2530 = vmax.f32 %v2528, %v2529
        %v2531 = vsel %vm2459, %v2136, -inf
        %v2532 = vmax.f32 %v2530, %v2531
        %v2533 = vsel %vm2459, %v2184, -inf
        %v2534 = vmax.f32 %v2532, %v2533
        %v2535 = vsel %vm2459, %v2232, -inf
        %v2536 = vmax.f32 %v2534, %v2535
        %v2537 = vsel %vm2459, %v2280, -inf
        %v2538 = vmax.f32 %v2536, %v2537
        %v2539 = vsel %vm2459, %v2328, -inf
        %v2540 = vmax.f32 %v2538, %v2539
        %v2541 = vsel %vm2459, %v2376, -inf
        %v2542 = vmax.f32 %v2540, %v2541
        %v2543 = vsel %vm2459, %v2424, -inf
        %v2544 = vmax.f32 %v2542, %v2543
        %v2545 = vsel %vm2459, %v2043, -inf
        %v2546 = vsel %vm2459, %v2091, -inf
        %v2547 = vmax.f32 %v2545, %v2546
        %v2548 = vsel %vm2459, %v2139, -inf
        %v2549 = vmax.f32 %v2547, %v2548
        %v2550 = vsel %vm2459, %v2187, -inf
        %v2551 = vmax.f32 %v2549, %v2550
        %v2552 = vsel %vm2459, %v2235, -inf
        %v2553 = vmax.f32 %v2551, %v2552
        %v2554 = vsel %vm2459, %v2283, -inf
        %v2555 = vmax.f32 %v2553, %v2554
        %v2556 = vsel %vm2459, %v2331, -inf
        %v2557 = vmax.f32 %v2555, %v2556
        %v2558 = vsel %vm2459, %v2379, -inf
        %v2559 = vmax.f32 %v2557, %v2558
        %v2560 = vsel %vm2459, %v2427, -inf
        %v2561 = vmax.f32 %v2559, %v2560
        %v2562 = vsel %vm2459, %v2046, -inf
        %v2563 = vsel %vm2459, %v2094, -inf
        %v2564 = vmax.f32 %v2562, %v2563
        %v2565 = vsel %vm2459, %v2142, -inf
        %v2566 = vmax.f32 %v2564, %v2565
        %v2567 = vsel %vm2459, %v2190, -inf
        %v2568 = vmax.f32 %v2566, %v2567
        %v2569 = vsel %vm2459, %v2238, -inf
        %v2570 = vmax.f32 %v2568, %v2569
        %v2571 = vsel %vm2459, %v2286, -inf
        %v2572 = vmax.f32 %v2570, %v2571
        %v2573 = vsel %vm2459, %v2334, -inf
        %v2574 = vmax.f32 %v2572, %v2573
        %v2575 = vsel %vm2459, %v2382, -inf
        %v2576 = vmax.f32 %v2574, %v2575
        %v2577 = vsel %vm2459, %v2430, -inf
        %v2578 = vmax.f32 %v2576, %v2577
        %v2579 = vsel %vm2459, %v2049, -inf
        %v2580 = vsel %vm2459, %v2097, -inf
        %v2581 = vmax.f32 %v2579, %v2580
        %v2582 = vsel %vm2459, %v2145, -inf
        %v2583 = vmax.f32 %v2581, %v2582
        %v2584 = vsel %vm2459, %v2193, -inf
        %v2585 = vmax.f32 %v2583, %v2584
        %v2586 = vsel %vm2459, %v2241, -inf
        %v2587 = vmax.f32 %v2585, %v2586
        %v2588 = vsel %vm2459, %v2289, -inf
        %v2589 = vmax.f32 %v2587, %v2588
        %v2590 = vsel %vm2459, %v2337, -inf
        %v2591 = vmax.f32 %v2589, %v2590
        %v2592 = vsel %vm2459, %v2385, -inf
        %v2593 = vmax.f32 %v2591, %v2592
        %v2594 = vsel %vm2459, %v2433, -inf
        %v2595 = vmax.f32 %v2593, %v2594
        %v2596 = vsel %vm2459, %v2052, -inf
        %v2597 = vsel %vm2459, %v2100, -inf
        %v2598 = vmax.f32 %v2596, %v2597
        %v2599 = vsel %vm2459, %v2148, -inf
        %v2600 = vmax.f32 %v2598, %v2599
        %v2601 = vsel %vm2459, %v2196, -inf
        %v2602 = vmax.f32 %v2600, %v2601
        %v2603 = vsel %vm2459, %v2244, -inf
        %v2604 = vmax.f32 %v2602, %v2603
        %v2605 = vsel %vm2459, %v2292, -inf
        %v2606 = vmax.f32 %v2604, %v2605
        %v2607 = vsel %vm2459, %v2340, -inf
        %v2608 = vmax.f32 %v2606, %v2607
        %v2609 = vsel %vm2459, %v2388, -inf
        %v2610 = vmax.f32 %v2608, %v2609
        %v2611 = vsel %vm2459, %v2436, -inf
        %v2612 = vmax.f32 %v2610, %v2611
        %v2613 = vsel %vm2459, %v2055, -inf
        %v2614 = vsel %vm2459, %v2103, -inf
        %v2615 = vmax.f32 %v2613, %v2614
        %v2616 = vsel %vm2459, %v2151, -inf
        %v2617 = vmax.f32 %v2615, %v2616
        %v2618 = vsel %vm2459, %v2199, -inf
        %v2619 = vmax.f32 %v2617, %v2618
        %v2620 = vsel %vm2459, %v2247, -inf
        %v2621 = vmax.f32 %v2619, %v2620
        %v2622 = vsel %vm2459, %v2295, -inf
        %v2623 = vmax.f32 %v2621, %v2622
        %v2624 = vsel %vm2459, %v2343, -inf
        %v2625 = vmax.f32 %v2623, %v2624
        %v2626 = vsel %vm2459, %v2391, -inf
        %v2627 = vmax.f32 %v2625, %v2626
        %v2628 = vsel %vm2459, %v2439, -inf
        %v2629 = vmax.f32 %v2627, %v2628
        %v2630 = vsel %vm2459, %v2058, -inf
        %v2631 = vsel %vm2459, %v2106, -inf
        %v2632 = vmax.f32 %v2630, %v2631
        %v2633 = vsel %vm2459, %v2154, -inf
        %v2634 = vmax.f32 %v2632, %v2633
        %v2635 = vsel %vm2459, %v2202, -inf
        %v2636 = vmax.f32 %v2634, %v2635
        %v2637 = vsel %vm2459, %v2250, -inf
        %v2638 = vmax.f32 %v2636, %v2637
        %v2639 = vsel %vm2459, %v2298, -inf
        %v2640 = vmax.f32 %v2638, %v2639
        %v2641 = vsel %vm2459, %v2346, -inf
        %v2642 = vmax.f32 %v2640, %v2641
        %v2643 = vsel %vm2459, %v2394, -inf
        %v2644 = vmax.f32 %v2642, %v2643
        %v2645 = vsel %vm2459, %v2442, -inf
        %v2646 = vmax.f32 %v2644, %v2645
        %v2647 = vsel %vm2459, %v2061, -inf
        %v2648 = vsel %vm2459, %v2109, -inf
        %v2649 = vmax.f32 %v2647, %v2648
        %v2650 = vsel %vm2459, %v2157, -inf
        %v2651 = vmax.f32 %v2649, %v2650
        %v2652 = vsel %vm2459, %v2205, -inf
        %v2653 = vmax.f32 %v2651, %v2652
        %v2654 = vsel %vm2459, %v2253, -inf
        %v2655 = vmax.f32 %v2653, %v2654
        %v2656 = vsel %vm2459, %v2301, -inf
        %v2657 = vmax.f32 %v2655, %v2656
        %v2658 = vsel %vm2459, %v2349, -inf
        %v2659 = vmax.f32 %v2657, %v2658
        %v2660 = vsel %vm2459, %v2397, -inf
        %v2661 = vmax.f32 %v2659, %v2660
        %v2662 = vsel %vm2459, %v2445, -inf
        %v2663 = vmax.f32 %v2661, %v2662
        %v2664 = vsel %vm2459, %v2064, -inf
        %v2665 = vsel %vm2459, %v2112, -inf
        %v2666 = vmax.f32 %v2664, %v2665
        %v2667 = vsel %vm2459, %v2160, -inf
        %v2668 = vmax.f32 %v2666, %v2667
        %v2669 = vsel %vm2459, %v2208, -inf
        %v2670 = vmax.f32 %v2668, %v2669
        %v2671 = vsel %vm2459, %v2256, -inf
        %v2672 = vmax.f32 %v2670, %v2671
        %v2673 = vsel %vm2459, %v2304, -inf
        %v2674 = vmax.f32 %v2672, %v2673
        %v2675 = vsel %vm2459, %v2352, -inf
        %v2676 = vmax.f32 %v2674, %v2675
        %v2677 = vsel %vm2459, %v2400, -inf
        %v2678 = vmax.f32 %v2676, %v2677
        %v2679 = vsel %vm2459, %v2448, -inf
        %v2680 = vmax.f32 %v2678, %v2679
        %v2681 = vsel %vm2459, %v2067, -inf
        %v2682 = vsel %vm2459, %v2115, -inf
        %v2683 = vmax.f32 %v2681, %v2682
        %v2684 = vsel %vm2459, %v2163, -inf
        %v2685 = vmax.f32 %v2683, %v2684
        %v2686 = vsel %vm2459, %v2211, -inf
        %v2687 = vmax.f32 %v2685, %v2686
        %v2688 = vsel %vm2459, %v2259, -inf
        %v2689 = vmax.f32 %v2687, %v2688
        %v2690 = vsel %vm2459, %v2307, -inf
        %v2691 = vmax.f32 %v2689, %v2690
        %v2692 = vsel %vm2459, %v2355, -inf
        %v2693 = vmax.f32 %v2691, %v2692
        %v2694 = vsel %vm2459, %v2403, -inf
        %v2695 = vmax.f32 %v2693, %v2694
        %v2696 = vsel %vm2459, %v2451, -inf
        %v2697 = vmax.f32 %v2695, %v2696
        %v2698 = vsel %vm2459, %v2070, -inf
        %v2699 = vsel %vm2459, %v2118, -inf
        %v2700 = vmax.f32 %v2698, %v2699
        %v2701 = vsel %vm2459, %v2166, -inf
        %v2702 = vmax.f32 %v2700, %v2701
        %v2703 = vsel %vm2459, %v2214, -inf
        %v2704 = vmax.f32 %v2702, %v2703
        %v2705 = vsel %vm2459, %v2262, -inf
        %v2706 = vmax.f32 %v2704, %v2705
        %v2707 = vsel %vm2459, %v2310, -inf
        %v2708 = vmax.f32 %v2706, %v2707
        %v2709 = vsel %vm2459, %v2358, -inf
        %v2710 = vmax.f32 %v2708, %v2709
        %v2711 = vsel %vm2459, %v2406, -inf
        %v2712 = vmax.f32 %v2710, %v2711
        %v2713 = vsel %vm2459, %v2454, -inf
        %v2714 = vmax.f32 %v2712, %v2713
        %v2715 = vsel %vm2459, %v2073, -inf
        %v2716 = vsel %vm2459, %v2121, -inf
        %v2717 = vmax.f32 %v2715, %v2716
        %v2718 = vsel %vm2459, %v2169, -inf
        %v2719 = vmax.f32 %v2717, %v2718
        %v2720 = vsel %vm2459, %v2217, -inf
        %v2721 = vmax.f32 %v2719, %v2720
        %v2722 = vsel %vm2459, %v2265, -inf
        %v2723 = vmax.f32 %v2721, %v2722
        %v2724 = vsel %vm2459, %v2313, -inf
        %v2725 = vmax.f32 %v2723, %v2724
        %v2726 = vsel %vm2459, %v2361, -inf
        %v2727 = vmax.f32 %v2725, %v2726
        %v2728 = vsel %vm2459, %v2409, -inf
        %v2729 = vmax.f32 %v2727, %v2728
        %v2730 = vsel %vm2459, %v2457, -inf
        %v2731 = vmax.f32 %v2729, %v2730
        %v2732 = vld [vmem:[%s2] sm:$0x1]
        %v2734 = vperm.slane %v2732, 0
        %v2736 = vadd.f32 %v2476, %v2734
        %v2737 = vadd.f32 %v2493, %v2734
        %v2738 = vadd.f32 %v2510, %v2734
        %v2739 = vadd.f32 %v2527, %v2734
        %v2740 = vadd.f32 %v2544, %v2734
        %v2741 = vadd.f32 %v2561, %v2734
        %v2742 = vadd.f32 %v2578, %v2734
        %v2743 = vadd.f32 %v2595, %v2734
        %v2744 = vadd.f32 %v2612, %v2734
        %v2745 = vadd.f32 %v2629, %v2734
        %v2746 = vadd.f32 %v2646, %v2734
        %v2747 = vadd.f32 %v2663, %v2734
        %v2748 = vadd.f32 %v2680, %v2734
        %v2749 = vadd.f32 %v2697, %v2734
        %v2750 = vadd.f32 %v2714, %v2734
        %v2751 = vadd.f32 %v2731, %v2734
        %v2752 = vmax.f32 %v2736, 0.0
        %v2753 = vmax.f32 %v2737, 0.0
        %v2754 = vmax.f32 %v2738, 0.0
        %v2755 = vmax.f32 %v2739, 0.0
        %v2756 = vmax.f32 %v2740, 0.0
        %v2757 = vmax.f32 %v2741, 0.0
        %v2758 = vmax.f32 %v2742, 0.0
        %v2759 = vmax.f32 %v2743, 0.0
        %v2760 = vmax.f32 %v2744, 0.0
        %v2761 = vmax.f32 %v2745, 0.0
        %v2762 = vmax.f32 %v2746, 0.0
        %v2763 = vmax.f32 %v2747, 0.0
        %v2764 = vmax.f32 %v2748, 0.0
        %v2765 = vmax.f32 %v2749, 0.0
        %v2766 = vmax.f32 %v2750, 0.0
        %v2767 = vmax.f32 %v2751, 0.0
        %v2768 = vld [vmem:[%s3] sm:$0xff]
        %v2769 = vld [vmem:[%s4] sm:$0x1]
        %v2771 = vperm.slane %v2769, 0
        %v2774 = vsel %vm2459, %v2752, 0
        %v2777 = vsel %vm2459, %v2753, 0
        %v2780 = vsel %vm2459, %v2754, 0
        %v2783 = vsel %vm2459, %v2755, 0
        %v2786 = vsel %vm2459, %v2756, 0
        %v2789 = vsel %vm2459, %v2757, 0
        %v2792 = vsel %vm2459, %v2758, 0
        %v2795 = vsel %vm2459, %v2759, 0
        %v2798 = vsel %vm2459, %v2760, 0
        %v2801 = vsel %vm2459, %v2761, 0
        %v2804 = vsel %vm2459, %v2762, 0
        %v2807 = vsel %vm2459, %v2763, 0
        %v2810 = vsel %vm2459, %v2764, 0
        %v2813 = vsel %vm2459, %v2765, 0
        %v2816 = vsel %vm2459, %v2766, 0
        %v2819 = vsel %vm2459, %v2767, 0
        %2821 = vmatpush.msra.mxu0 0.0
        %2822 = vmatpush.msra.mxu0 0.0
        %2823 = vmatpush.msra.mxu0 0.0
        %2824 = vmatpush.msra.mxu0 0.0
        %2825 = vmatpush.msra.mxu0 0.0
        %2826 = vmatpush.msra.mxu0 0.0
        %2827 = vmatpush.msra.mxu0 0.0
        %2828 = vmatpush.msra.mxu0 0.0
        %2829 = vmatpush.msra.mxu0 0.0
        %2830 = vmatpush.msra.mxu0 0.0
        %2831 = vmatpush.msra.mxu0 0.0
        %2832 = vmatpush.msra.mxu0 0.0
        %2833 = vmatpush.msra.mxu0 0.0
        %2834 = vmatpush.msra.mxu0 0.0
        %2835 = vmatpush.msra.mxu0 0.0
        %2836 = vmatpush.msra.mxu0 %v2768
        %2837 = vmatmul.f32.gmra.mxu0 %v2774
        %v2838 = vpop.f32.mrf.mxu0
        %v2839 = vadd.f32 %v2771, %v2838
        %2840 = vmatmul.f32.gmra.mxu0 %v2777
        %v2841 = vpop.f32.mrf.mxu0
        %v2842 = vadd.f32 %v2771, %v2841
        %2843 = vmatmul.f32.gmra.mxu0 %v2780
        %v2844 = vpop.f32.mrf.mxu0
        %v2845 = vadd.f32 %v2771, %v2844
        %2846 = vmatmul.f32.gmra.mxu0 %v2783
        %v2847 = vpop.f32.mrf.mxu0
        %v2848 = vadd.f32 %v2771, %v2847
        %2849 = vmatmul.f32.gmra.mxu0 %v2786
        %v2850 = vpop.f32.mrf.mxu0
        %v2851 = vadd.f32 %v2771, %v2850
        %2852 = vmatmul.f32.gmra.mxu0 %v2789
        %v2853 = vpop.f32.mrf.mxu0
        %v2854 = vadd.f32 %v2771, %v2853
        %2855 = vmatmul.f32.gmra.mxu0 %v2792
        %v2856 = vpop.f32.mrf.mxu0
        %v2857 = vadd.f32 %v2771, %v2856
        %2858 = vmatmul.f32.gmra.mxu0 %v2795
        %v2859 = vpop.f32.mrf.mxu0
        %v2860 = vadd.f32 %v2771, %v2859
        %2861 = vmatmul.f32.gmra.mxu0 %v2798
        %v2862 = vpop.f32.mrf.mxu0
        %v2863 = vadd.f32 %v2771, %v2862
        %2864 = vmatmul.f32.gmra.mxu0 %v2801
        %v2865 = vpop.f32.mrf.mxu0
        %v2866 = vadd.f32 %v2771, %v2865
        %2867 = vmatmul.f32.gmra.mxu0 %v2804
        %v2868 = vpop.f32.mrf.mxu0
        %v2869 = vadd.f32 %v2771, %v2868
        %2870 = vmatmul.f32.gmra.mxu0 %v2807
        %v2871 = vpop.f32.mrf.mxu0
        %v2872 = vadd.f32 %v2771, %v2871
        %2873 = vmatmul.f32.gmra.mxu0 %v2810
        %v2874 = vpop.f32.mrf.mxu0
        %v2875 = vadd.f32 %v2771, %v2874
        %2876 = vmatmul.f32.gmra.mxu0 %v2813
        %v2877 = vpop.f32.mrf.mxu0
        %v2878 = vadd.f32 %v2771, %v2877
        %2879 = vmatmul.f32.gmra.mxu0 %v2816
        %v2880 = vpop.f32.mrf.mxu0
        %v2881 = vadd.f32 %v2771, %v2880
        %2882 = vmatmul.f32.gmra.mxu0 %v2819
        %v2883 = vpop.f32.mrf.mxu0
        %v2884 = vadd.f32 %v2771, %v2883
        %2885 = vdwg.mxu0
        %v2886 = vxor.u32 %v2839, 2147483648
        %v2887 = vxor.u32 %v2842, 2147483648
        %v2888 = vxor.u32 %v2845, 2147483648
        %v2889 = vxor.u32 %v2848, 2147483648
        %v2890 = vxor.u32 %v2851, 2147483648
        %v2891 = vxor.u32 %v2854, 2147483648
        %v2892 = vxor.u32 %v2857, 2147483648
        %v2893 = vxor.u32 %v2860, 2147483648
        %v2894 = vxor.u32 %v2863, 2147483648
        %v2895 = vxor.u32 %v2866, 2147483648
        %v2896 = vxor.u32 %v2869, 2147483648
        %v2897 = vxor.u32 %v2872, 2147483648
        %v2898 = vxor.u32 %v2875, 2147483648
        %v2899 = vxor.u32 %v2878, 2147483648
        %v2900 = vxor.u32 %v2881, 2147483648
        %v2901 = vxor.u32 %v2884, 2147483648
        %v2902 = vmul.f32 %v2886, 1.442695
        %v2903 = vpow.pop %v2902
        %v2904 = vmul.f32 %v2887, 1.442695
        %v2905 = vpow.pop %v2904
        %v2906 = vmul.f32 %v2888, 1.442695
        %v2907 = vpow.pop %v2906
        %v2908 = vmul.f32 %v2889, 1.442695
        %v2909 = vpow.pop %v2908
        %v2910 = vmul.f32 %v2890, 1.442695
        %v2911 = vpow.pop %v2910
        %v2912 = vmul.f32 %v2891, 1.442695
        %v2913 = vpow.pop %v2912
        %v2914 = vmul.f32 %v2892, 1.442695
        %v2915 = vpow.pop %v2914
        %v2916 = vmul.f32 %v2893, 1.442695
        %v2917 = vpow.pop %v2916
        %v2918 = vmul.f32 %v2894, 1.442695
        %v2919 = vpow.pop %v2918
        %v2920 = vmul.f32 %v2895, 1.442695
        %v2921 = vpow.pop %v2920
        %v2922 = vmul.f32 %v2896, 1.442695
        %v2923 = vpow.pop %v2922
        %v2924 = vmul.f32 %v2897, 1.442695
        %v2925 = vpow.pop %v2924
        %v2926 = vmul.f32 %v2898, 1.442695
        %v2927 = vpow.pop %v2926
        %v2928 = vmul.f32 %v2899, 1.442695
        %v2929 = vpow.pop %v2928
        %v2930 = vmul.f32 %v2900, 1.442695
        %v2931 = vpow.pop %v2930
        %v2932 = vmul.f32 %v2901, 1.442695
        %v2933 = vpow.pop %v2932
        %v2934 = vadd.f32 %v2903, 1.0
        %v2935 = vadd.f32 %v2905, 1.0
        %v2936 = vadd.f32 %v2907, 1.0
        %v2937 = vadd.f32 %v2909, 1.0
        %v2938 = vadd.f32 %v2911, 1.0
        %v2939 = vadd.f32 %v2913, 1.0
        %v2940 = vadd.f32 %v2915, 1.0
        %v2941 = vadd.f32 %v2917, 1.0
        %v2942 = vadd.f32 %v2919, 1.0
        %v2943 = vadd.f32 %v2921, 1.0
        %v2944 = vadd.f32 %v2923, 1.0
        %v2945 = vadd.f32 %v2925, 1.0
        %v2946 = vadd.f32 %v2927, 1.0
        %v2947 = vadd.f32 %v2929, 1.0
        %v2948 = vadd.f32 %v2931, 1.0
        %v2949 = vadd.f32 %v2933, 1.0
        %v2950 = vrcp.pop %v2934
        %v2951 = vmul.f32 %v2934, %v2950
        %v2952 = vsub.f32 1.0, %v2951
        %v2953 = vmul.f32 %v2950, %v2952
        %v2954 = vadd.f32 %v2950, %v2953
        %vm2955 = vweird.f32 %v2934
        %vm2956 = vweird.f32 %v2950
        %vm2957 = vmor %vm2955, %vm2956
        %v2958 = vsel %vm2957, %v2950, %v2954
        %v2959 = vand.u32 2147483647, %v2934
        %vm2960 = vcmp.eq.f32.partialorder %v2959, 8.507059e+37
        %v2961 = vand.u32 %v2934, 2147483648
        %v2962 = vor.u32 1.1754944e-38, %v2961
        %v2963 = vsel %vm2960, %v2962, %v2958
        %v2964 = vmul.f32 1.0, %v2963
        %v2965 = vrcp.pop %v2935
        %v2966 = vmul.f32 %v2935, %v2965
        %v2967 = vsub.f32 1.0, %v2966
        %v2968 = vmul.f32 %v2965, %v2967
        %v2969 = vadd.f32 %v2965, %v2968
        %vm2970 = vweird.f32 %v2935
        %vm2971 = vweird.f32 %v2965
        %vm2972 = vmor %vm2970, %vm2971
        %v2973 = vsel %vm2972, %v2965, %v2969
        %v2974 = vand.u32 2147483647, %v2935
        %vm2975 = vcmp.eq.f32.partialorder %v2974, 8.507059e+37
        %v2976 = vand.u32 %v2935, 2147483648
        %v2977 = vor.u32 1.1754944e-38, %v2976
        %v2978 = vsel %vm2975, %v2977, %v2973
        %v2979 = vmul.f32 1.0, %v2978
        %v2980 = vrcp.pop %v2936
        %v2981 = vmul.f32 %v2936, %v2980
        %v2982 = vsub.f32 1.0, %v2981
        %v2983 = vmul.f32 %v2980, %v2982
        %v2984 = vadd.f32 %v2980, %v2983
        %vm2985 = vweird.f32 %v2936
        %vm2986 = vweird.f32 %v2980
        %vm2987 = vmor %vm2985, %vm2986
        %v2988 = vsel %vm2987, %v2980, %v2984
        %v2989 = vand.u32 2147483647, %v2936
        %vm2990 = vcmp.eq.f32.partialorder %v2989, 8.507059e+37
        %v2991 = vand.u32 %v2936, 2147483648
        %v2992 = vor.u32 1.1754944e-38, %v2991
        %v2993 = vsel %vm2990, %v2992, %v2988
        %v2994 = vmul.f32 1.0, %v2993
        %v2995 = vrcp.pop %v2937
        %v2996 = vmul.f32 %v2937, %v2995
        %v2997 = vsub.f32 1.0, %v2996
        %v2998 = vmul.f32 %v2995, %v2997
        %v2999 = vadd.f32 %v2995, %v2998
        %vm3000 = vweird.f32 %v2937
        %vm3001 = vweird.f32 %v2995
        %vm3002 = vmor %vm3000, %vm3001
        %v3003 = vsel %vm3002, %v2995, %v2999
        %v3004 = vand.u32 2147483647, %v2937
        %vm3005 = vcmp.eq.f32.partialorder %v3004, 8.507059e+37
        %v3006 = vand.u32 %v2937, 2147483648
        %v3007 = vor.u32 1.1754944e-38, %v3006
        %v3008 = vsel %vm3005, %v3007, %v3003
        %v3009 = vmul.f32 1.0, %v3008
        %v3010 = vrcp.pop %v2938
        %v3011 = vmul.f32 %v2938, %v3010
        %v3012 = vsub.f32 1.0, %v3011
        %v3013 = vmul.f32 %v3010, %v3012
        %v3014 = vadd.f32 %v3010, %v3013
        %vm3015 = vweird.f32 %v2938
        %vm3016 = vweird.f32 %v3010
        %vm3017 = vmor %vm3015, %vm3016
        %v3018 = vsel %vm3017, %v3010, %v3014
        %v3019 = vand.u32 2147483647, %v2938
        %vm3020 = vcmp.eq.f32.partialorder %v3019, 8.507059e+37
        %v3021 = vand.u32 %v2938, 2147483648
        %v3022 = vor.u32 1.1754944e-38, %v3021
        %v3023 = vsel %vm3020, %v3022, %v3018
        %v3024 = vmul.f32 1.0, %v3023
        %v3025 = vrcp.pop %v2939
        %v3026 = vmul.f32 %v2939, %v3025
        %v3027 = vsub.f32 1.0, %v3026
        %v3028 = vmul.f32 %v3025, %v3027
        %v3029 = vadd.f32 %v3025, %v3028
        %vm3030 = vweird.f32 %v2939
        %vm3031 = vweird.f32 %v3025
        %vm3032 = vmor %vm3030, %vm3031
        %v3033 = vsel %vm3032, %v3025, %v3029
        %v3034 = vand.u32 2147483647, %v2939
        %vm3035 = vcmp.eq.f32.partialorder %v3034, 8.507059e+37
        %v3036 = vand.u32 %v2939, 2147483648
        %v3037 = vor.u32 1.1754944e-38, %v3036
        %v3038 = vsel %vm3035, %v3037, %v3033
        %v3039 = vmul.f32 1.0, %v3038
        %v3040 = vrcp.pop %v2940
        %v3041 = vmul.f32 %v2940, %v3040
        %v3042 = vsub.f32 1.0, %v3041
        %v3043 = vmul.f32 %v3040, %v3042
        %v3044 = vadd.f32 %v3040, %v3043
        %vm3045 = vweird.f32 %v2940
        %vm3046 = vweird.f32 %v3040
        %vm3047 = vmor %vm3045, %vm3046
        %v3048 = vsel %vm3047, %v3040, %v3044
        %v3049 = vand.u32 2147483647, %v2940
        %vm3050 = vcmp.eq.f32.partialorder %v3049, 8.507059e+37
        %v3051 = vand.u32 %v2940, 2147483648
        %v3052 = vor.u32 1.1754944e-38, %v3051
        %v3053 = vsel %vm3050, %v3052, %v3048
        %v3054 = vmul.f32 1.0, %v3053
        %v3055 = vrcp.pop %v2941
        %v3056 = vmul.f32 %v2941, %v3055
        %v3057 = vsub.f32 1.0, %v3056
        %v3058 = vmul.f32 %v3055, %v3057
        %v3059 = vadd.f32 %v3055, %v3058
        %vm3060 = vweird.f32 %v2941
        %vm3061 = vweird.f32 %v3055
        %vm3062 = vmor %vm3060, %vm3061
        %v3063 = vsel %vm3062, %v3055, %v3059
        %v3064 = vand.u32 2147483647, %v2941
        %vm3065 = vcmp.eq.f32.partialorder %v3064, 8.507059e+37
        %v3066 = vand.u32 %v2941, 2147483648
        %v3067 = vor.u32 1.1754944e-38, %v3066
        %v3068 = vsel %vm3065, %v3067, %v3063
        %v3069 = vmul.f32 1.0, %v3068
        %v3070 = vrcp.pop %v2942
        %v3071 = vmul.f32 %v2942, %v3070
        %v3072 = vsub.f32 1.0, %v3071
        %v3073 = vmul.f32 %v3070, %v3072
        %v3074 = vadd.f32 %v3070, %v3073
        %vm3075 = vweird.f32 %v2942
        %vm3076 = vweird.f32 %v3070
        %vm3077 = vmor %vm3075, %vm3076
        %v3078 = vsel %vm3077, %v3070, %v3074
        %v3079 = vand.u32 2147483647, %v2942
        %vm3080 = vcmp.eq.f32.partialorder %v3079, 8.507059e+37
        %v3081 = vand.u32 %v2942, 2147483648
        %v3082 = vor.u32 1.1754944e-38, %v3081
        %v3083 = vsel %vm3080, %v3082, %v3078
        %v3084 = vmul.f32 1.0, %v3083
        %v3085 = vrcp.pop %v2943
        %v3086 = vmul.f32 %v2943, %v3085
        %v3087 = vsub.f32 1.0, %v3086
        %v3088 = vmul.f32 %v3085, %v3087
        %v3089 = vadd.f32 %v3085, %v3088
        %vm3090 = vweird.f32 %v2943
        %vm3091 = vweird.f32 %v3085
        %vm3092 = vmor %vm3090, %vm3091
        %v3093 = vsel %vm3092, %v3085, %v3089
        %v3094 = vand.u32 2147483647, %v2943
        %vm3095 = vcmp.eq.f32.partialorder %v3094, 8.507059e+37
        %v3096 = vand.u32 %v2943, 2147483648
        %v3097 = vor.u32 1.1754944e-38, %v3096
        %v3098 = vsel %vm3095, %v3097, %v3093
        %v3099 = vmul.f32 1.0, %v3098
        %v3100 = vrcp.pop %v2944
        %v3101 = vmul.f32 %v2944, %v3100
        %v3102 = vsub.f32 1.0, %v3101
        %v3103 = vmul.f32 %v3100, %v3102
        %v3104 = vadd.f32 %v3100, %v3103
        %vm3105 = vweird.f32 %v2944
        %vm3106 = vweird.f32 %v3100
        %vm3107 = vmor %vm3105, %vm3106
        %v3108 = vsel %vm3107, %v3100, %v3104
        %v3109 = vand.u32 2147483647, %v2944
        %vm3110 = vcmp.eq.f32.partialorder %v3109, 8.507059e+37
        %v3111 = vand.u32 %v2944, 2147483648
        %v3112 = vor.u32 1.1754944e-38, %v3111
        %v3113 = vsel %vm3110, %v3112, %v3108
        %v3114 = vmul.f32 1.0, %v3113
        %v3115 = vrcp.pop %v2945
        %v3116 = vmul.f32 %v2945, %v3115
        %v3117 = vsub.f32 1.0, %v3116
        %v3118 = vmul.f32 %v3115, %v3117
        %v3119 = vadd.f32 %v3115, %v3118
        %vm3120 = vweird.f32 %v2945
        %vm3121 = vweird.f32 %v3115
        %vm3122 = vmor %vm3120, %vm3121
        %v3123 = vsel %vm3122, %v3115, %v3119
        %v3124 = vand.u32 2147483647, %v2945
        %vm3125 = vcmp.eq.f32.partialorder %v3124, 8.507059e+37
        %v3126 = vand.u32 %v2945, 2147483648
        %v3127 = vor.u32 1.1754944e-38, %v3126
        %v3128 = vsel %vm3125, %v3127, %v3123
        %v3129 = vmul.f32 1.0, %v3128
        %v3130 = vrcp.pop %v2946
        %v3131 = vmul.f32 %v2946, %v3130
        %v3132 = vsub.f32 1.0, %v3131
        %v3133 = vmul.f32 %v3130, %v3132
        %v3134 = vadd.f32 %v3130, %v3133
        %vm3135 = vweird.f32 %v2946
        %vm3136 = vweird.f32 %v3130
        %vm3137 = vmor %vm3135, %vm3136
        %v3138 = vsel %vm3137, %v3130, %v3134
        %v3139 = vand.u32 2147483647, %v2946
        %vm3140 = vcmp.eq.f32.partialorder %v3139, 8.507059e+37
        %v3141 = vand.u32 %v2946, 2147483648
        %v3142 = vor.u32 1.1754944e-38, %v3141
        %v3143 = vsel %vm3140, %v3142, %v3138
        %v3144 = vmul.f32 1.0, %v3143
        %v3145 = vrcp.pop %v2947
        %v3146 = vmul.f32 %v2947, %v3145
        %v3147 = vsub.f32 1.0, %v3146
        %v3148 = vmul.f32 %v3145, %v3147
        %v3149 = vadd.f32 %v3145, %v3148
        %vm3150 = vweird.f32 %v2947
        %vm3151 = vweird.f32 %v3145
        %vm3152 = vmor %vm3150, %vm3151
        %v3153 = vsel %vm3152, %v3145, %v3149
        %v3154 = vand.u32 2147483647, %v2947
        %vm3155 = vcmp.eq.f32.partialorder %v3154, 8.507059e+37
        %v3156 = vand.u32 %v2947, 2147483648
        %v3157 = vor.u32 1.1754944e-38, %v3156
        %v3158 = vsel %vm3155, %v3157, %v3153
        %v3159 = vmul.f32 1.0, %v3158
        %v3160 = vrcp.pop %v2948
        %v3161 = vmul.f32 %v2948, %v3160
        %v3162 = vsub.f32 1.0, %v3161
        %v3163 = vmul.f32 %v3160, %v3162
        %v3164 = vadd.f32 %v3160, %v3163
        %vm3165 = vweird.f32 %v2948
        %vm3166 = vweird.f32 %v3160
        %vm3167 = vmor %vm3165, %vm3166
        %v3168 = vsel %vm3167, %v3160, %v3164
        %v3169 = vand.u32 2147483647, %v2948
        %vm3170 = vcmp.eq.f32.partialorder %v3169, 8.507059e+37
        %v3171 = vand.u32 %v2948, 2147483648
        %v3172 = vor.u32 1.1754944e-38, %v3171
        %v3173 = vsel %vm3170, %v3172, %v3168
        %v3174 = vmul.f32 1.0, %v3173
        %v3175 = vrcp.pop %v2949
        %v3176 = vmul.f32 %v2949, %v3175
        %v3177 = vsub.f32 1.0, %v3176
        %v3178 = vmul.f32 %v3175, %v3177
        %v3179 = vadd.f32 %v3175, %v3178
        %vm3180 = vweird.f32 %v2949
        %vm3181 = vweird.f32 %v3175
        %vm3182 = vmor %vm3180, %vm3181
        %v3183 = vsel %vm3182, %v3175, %v3179
        %v3184 = vand.u32 2147483647, %v2949
        %vm3185 = vcmp.eq.f32.partialorder %v3184, 8.507059e+37
        %v3186 = vand.u32 %v2949, 2147483648
        %v3187 = vor.u32 1.1754944e-38, %v3186
        %v3188 = vsel %vm3185, %v3187, %v3183
        %v3189 = vmul.f32 1.0, %v3188
        %3190 = vst.msk [vmem:[%s820] sm:$0xff] %vm2459, %v2964
        %3191 = vst.msk [vmem:[%s820 + $0x8] sm:$0xff] %vm2459, %v2979
        %3192 = vst.msk [vmem:[%s820 + $0x10] sm:$0xff] %vm2459, %v2994
        %3193 = vst.msk [vmem:[%s820 + $0x18] sm:$0xff] %vm2459, %v3009
        %3194 = vst.msk [vmem:[%s820 + $0x20] sm:$0xff] %vm2459, %v3024
        %3195 = vst.msk [vmem:[%s820 + $0x28] sm:$0xff] %vm2459, %v3039
        %3196 = vst.msk [vmem:[%s820 + $0x30] sm:$0xff] %vm2459, %v3054
        %3197 = vst.msk [vmem:[%s820 + $0x38] sm:$0xff] %vm2459, %v3069
        %3198 = vst.msk [vmem:[%s820 + $0x40] sm:$0xff] %vm2459, %v3084
        %3199 = vst.msk [vmem:[%s820 + $0x48] sm:$0xff] %vm2459, %v3099
        %3200 = vst.msk [vmem:[%s820 + $0x50] sm:$0xff] %vm2459, %v3114
        %3201 = vst.msk [vmem:[%s820 + $0x58] sm:$0xff] %vm2459, %v3129
        %3202 = vst.msk [vmem:[%s820 + $0x60] sm:$0xff] %vm2459, %v3144
        %3203 = vst.msk [vmem:[%s820 + $0x68] sm:$0xff] %vm2459, %v3159
        %3204 = vst.msk [vmem:[%s820 + $0x70] sm:$0xff] %vm2459, %v3174
        %3205 = vst.msk [vmem:[%s820 + $0x78] sm:$0xff] %vm2459, %v3189
        %s3206 = smul.u32 16, %s16
        %p3207 = scmp.lt.s32.totalorder %s3206, 31
        %s3208 = scalar_select %p3207, %s3206, 31
        %s3209 = smul.addr %s3208, 8
        %s3210 = scalar_lea.vmem %s5, %s3209
        // Predicated region
        $region64: #{tpu_custom_call.1} parent=58 // pred_check
          %p3211 = pneg %p144
        $region65: #{tpu_custom_call.1} parent=58 // pred_check_branch
          %3213 = sbr.rel (%p3211) target = $region67
        $region66: #{tpu_custom_call.1} parent=58 // pred_region
          %s3214 = smul.u32 16, %s16
        $region67: #{tpu_custom_call.1} parent=58 // pred_fallthru
          _
      $region59: #{tpu_custom_call.1} parent=5 // pred_fallthru
        _
      %p3215 = scmp.le.s32.totalorder 2, %s11
      // Predicated region
      $region68: #{tpu_custom_call.1} parent=5 // pred_check
        %p3216 = pneg %p3215
      $region69: #{tpu_custom_call.1} parent=5 // pred_check_branch
        %3218 = sbr.rel (%p3216) target = $region71
      $region70: #{tpu_custom_call.1} parent=5 // pred_region
        %s3219 = ssub.s32 %s11, 2
        // Predicated region
        $region72: #{tpu_custom_call.1} parent=70 // pred_check
          %p3220 = pneg %p150
        $region73: #{tpu_custom_call.1} parent=70 // pred_check_branch
          %3222 = sbr.rel (%p3220) target = $region75
        $region74: #{tpu_custom_call.1} parent=70 // pred_region
          %s3223 = smul.u32 16, %s17
          %p3224 = scmp.lt.s32.totalorder %s3223, 31
          %s3225 = scalar_select %p3224, %s3223, 31
          %s3226 = smul.addr %s3225, 8
          %s3227 = scalar_lea.vmem %s5, %s3226
        $region75: #{tpu_custom_call.1} parent=70 // pred_fallthru
          _
      $region71: #{tpu_custom_call.1} parent=5 // pred_fallthru
        _
    $region6: #{tpu_custom_call.1} parent=1 // loop_footer
      %s15 = sadd.s32 1, %s11
    $region7: #{tpu_custom_call.1} parent=1 // loop_footer_branch
      %10 = sbr.rel target = $region3
    $region8: #{tpu_custom_call.1} parent=1 // loop_exit
      _

</llo_original>
